<compile_context>
chip_gen: v7x
topology: tpu7x:2x2x1
jax: 0.10.0
libtpu: 0.0.40
codegen_flags: <defaults>
</compile_context>

<pallas_src>
import math

import jax
import jax.numpy as jnp
from jax.experimental import pallas as pl
from jax.experimental.pallas import tpu as pltpu


# Set to jnp.bfloat16 on v6e/v7x to halve HBM traffic for the MXU matmul
# inputs; kept at f32 here so numerics match PyTorch f32 inference closely.
MXU_DTYPE = jnp.float32

_TILE_M = 256                    # rows per grid step (128-aligned for v5e MXU)
_VMEM_LIMIT = 32 * 1024 * 1024   # explicit scoped-VMEM budget (safe on v5e/v6e/v7x)


def _cparams(semantics):
    return pltpu.CompilerParams(
        dimension_semantics=semantics, vmem_limit_bytes=_VMEM_LIMIT)


# ----------------------------------------------------------------------------
# Pallas kernels: MXU matmul with fused epilogues (BN scale/shift, ReLU,
# residual add, second shortcut matmul) and the fused pool+fc+classifier head.
# ----------------------------------------------------------------------------
def _conv_bnrelu_kernel(cols_ref, w_ref, s_ref, b_ref, o_ref):
    # relu( (cols @ W) * scale + shift )
    y = jnp.dot(cols_ref[...], w_ref[...], preferred_element_type=jnp.float32)
    o_ref[...] = jnp.maximum(y * s_ref[...] + b_ref[...], 0.0)


def _conv_dual_out_kernel(cols_ref, w_ref, s_ref, b_ref, y_ref, o_ref):
    # Emits both the raw conv output (needed later as an identity shortcut)
    # and its BN+ReLU, in one HBM read of the columns.
    y = jnp.dot(cols_ref[...], w_ref[...], preferred_element_type=jnp.float32)
    y_ref[...] = y
    o_ref[...] = jnp.maximum(y * s_ref[...] + b_ref[...], 0.0)


def _conv_add_bnrelu_kernel(cols_ref, w_ref, res_ref, s_ref, b_ref, o_ref):
    # relu( (cols @ W + residual) * scale + shift )   -- identity shortcut
    y = (jnp.dot(cols_ref[...], w_ref[...], preferred_element_type=jnp.float32)
         + res_ref[...])
    o_ref[...] = jnp.maximum(y * s_ref[...] + b_ref[...], 0.0)


def _conv_shortcut_bnrelu_kernel(cols_ref, w_ref, sc_ref, wsc_ref,
                                 s_ref, b_ref, o_ref):
    # relu( (cols @ W + sc_cols @ Wsc) * scale + shift ) -- projection shortcut
    y = (jnp.dot(cols_ref[...], w_ref[...], preferred_element_type=jnp.float32)
         + jnp.dot(sc_ref[...], wsc_ref[...], preferred_element_type=jnp.float32))
    o_ref[...] = jnp.maximum(y * s_ref[...] + b_ref[...], 0.0)


def _pool_head_kernel(y_ref, w_ref, b_ref, o_ref):
    # global-avg-pool over spatial + (fc ∘ classifier_3) as one matmul
    pooled = jnp.mean(y_ref[...], axis=1)                       # (N, C)
    o_ref[...] = (jnp.dot(pooled, w_ref[...],
                          preferred_element_type=jnp.float32) + b_ref[...])


# ----------------------------------------------------------------------------
# pallas_call wrappers
# ----------------------------------------------------------------------------
def fused_conv_bn_relu(cols, w, scale, shift, *, residual=None,
                       sc_cols=None, sc_w=None, emit_pre_bn=False):
    """relu((cols @ w [+ residual | + sc_cols @ sc_w]) * scale + shift).

    Optionally also emits the raw (pre-BN) matmul result as a second output.
    The M axis (rows) is tiled with a parallel grid.
    """
    M, K = cols.shape
    _, C = w.shape
    tm = min(M, _TILE_M)
    assert M % tm == 0, (M, tm)
    grid = (M // tm,)

    def row2d(width):
        return pl.BlockSpec((tm, width), lambda i: (i, 0))

    def rep2d(shape):
        return pl.BlockSpec(shape, lambda i: (0, 0))

    operands = [cols.astype(MXU_DTYPE), w.astype(MXU_DTYPE)]
    in_specs = [row2d(K), rep2d((K, C))]

    if residual is not None:
        kernel = _conv_add_bnrelu_kernel
        operands.append(residual.astype(jnp.float32))
        in_specs.append(row2d(C))
    elif sc_cols is not None:
        kernel = _conv_shortcut_bnrelu_kernel
        Ks = sc_cols.shape[1]
        operands += [sc_cols.astype(MXU_DTYPE), sc_w.astype(MXU_DTYPE)]
        in_specs += [row2d(Ks), rep2d((Ks, C))]
    elif emit_pre_bn:
        kernel = _conv_dual_out_kernel
    else:
        kernel = _conv_bnrelu_kernel

    operands += [scale.reshape(1, C).astype(jnp.float32),
                 shift.reshape(1, C).astype(jnp.float32)]
    in_specs += [rep2d((1, C)), rep2d((1, C))]

    if emit_pre_bn:
        out_shape = (jax.ShapeDtypeStruct((M, C), jnp.float32),
                     jax.ShapeDtypeStruct((M, C), jnp.float32))
        out_specs = (row2d(C), row2d(C))
    else:
        out_shape = jax.ShapeDtypeStruct((M, C), jnp.float32)
        out_specs = row2d(C)

    return pl.pallas_call(
        kernel,
        out_shape=out_shape,
        grid=grid,
        in_specs=in_specs,
        out_specs=out_specs,
        compiler_params=_cparams(("parallel",)),
    )(*operands)


def pallas_pool_head(y3d, w_head, b_head):
    """Fused global-avg-pool + fc + classifier_3 (one kernel, one launch)."""
    N, HW, C = y3d.shape
    _, NC = w_head.shape
    return pl.pallas_call(
        _pool_head_kernel,
        out_shape=jax.ShapeDtypeStruct((N, NC), jnp.float32),
        grid=(1,),
        in_specs=[pl.BlockSpec((N, HW, C), lambda i: (0, 0, 0)),
                  pl.BlockSpec((C, NC), lambda i: (0, 0)),
                  pl.BlockSpec((1, NC), lambda i: (0, 0))],
        out_specs=pl.BlockSpec((N, NC), lambda i: (0, 0)),
        compiler_params=_cparams(("arbitrary",)),
    )(y3d.astype(jnp.float32), w_head.astype(jnp.float32),
      b_head.reshape(1, NC).astype(jnp.float32))


# ----------------------------------------------------------------------------
# Plain-JAX glue: im2col window extraction & eval-mode BN folding.
# TODO(synk): the 3x3 window extraction (im2col) stays as plain-JAX glue; a
# fully in-kernel tap loop would need strided in-kernel slicing for the
# stride-2 convs, which is kept out for lowering robustness at these shapes.
# ----------------------------------------------------------------------------
def _im2col(x_nhwc, k, stride, pad):
    N, H, W, C = x_nhwc.shape
    xp = jnp.pad(x_nhwc, ((0, 0), (pad, pad), (pad, pad), (0, 0)))
    Ho = (H + 2 * pad - k) // stride + 1
    Wo = (W + 2 * pad - k) // stride + 1
    patches = []
    for i in range(k):
        for j in range(k):
            patches.append(
                xp[:, i: i + stride * Ho: stride, j: j + stride * Wo: stride, :])
    cols = jnp.concatenate(patches, axis=-1)          # (N, Ho, Wo, k*k*C)
    return cols.reshape(N * Ho * Wo, k * k * C), (N, Ho, Wo)


def _bn_fold(bn, eps=1e-5):
    # Eval-mode BN as per-channel affine: x*scale + shift.
    scale = bn["gamma"] * jax.lax.rsqrt(bn["var"] + eps)
    shift = bn["beta"] - bn["mean"] * scale
    return scale, shift


# ----------------------------------------------------------------------------
# Parameter construction (deterministic, matches PyTorch module shapes)
# ----------------------------------------------------------------------------
def _conv_init(key, kh, kw, cin, cout):
    n = kh * kw * cout
    return jax.random.normal(key, (kh, kw, cin, cout), jnp.float32) * math.sqrt(2.0 / n)


def _bn_init(c):
    return {
        "gamma": jnp.ones((c,), jnp.float32),
        "beta": jnp.zeros((c,), jnp.float32),
        "mean": jnp.zeros((c,), jnp.float32),
        "var": jnp.ones((c,), jnp.float32),
    }


def _linear_init(key, cin, cout):
    kw_, kb_ = jax.random.split(key)
    bound = 1.0 / math.sqrt(cin)
    w = jax.random.uniform(kw_, (cin, cout), jnp.float32, -bound, bound)
    b = jax.random.uniform(kb_, (cout,), jnp.float32, -bound, bound)
    return w, b


def make_params(num_classes, key):
    keys = jax.random.split(key, 16)
    widths = [16, 16, 32, 64]  # WideResNet-10-1

    def block_params(kbase, cin, cout):
        k1, k2, k3 = jax.random.split(kbase, 3)
        p = {
            "bn1": _bn_init(cin),
            "conv1_w": _conv_init(k1, 3, 3, cin, cout),
            "bn2": _bn_init(cout),
            "conv2_w": _conv_init(k2, 3, 3, cout, cout),
        }
        if cin != cout:
            p["convs_w"] = _conv_init(k3, 1, 1, cin, cout)
        return p

    fc_w, fc_b = _linear_init(keys[5], widths[3], num_classes)
    cls_w, cls_b = _linear_init(keys[6], num_classes, num_classes)
    return {
        "conv0_w": _conv_init(keys[0], 3, 3, 3, widths[0]),
        "block1": block_params(keys[1], widths[0], widths[1]),
        "block2": block_params(keys[2], widths[1], widths[2]),
        "block3": block_params(keys[3], widths[2], widths[3]),
        "bn_final": _bn_init(widths[3]),
        "fc_w": fc_w,
        "fc_b": fc_b,
        "cls3_w": cls_w,  # classifier_3.weight (stored as (in, out))
        "cls3_b": cls_b,  # classifier_3.bias
    }


# ----------------------------------------------------------------------------
# Forward pass (8 fused pallas_calls total)
# ----------------------------------------------------------------------------
def haframe_wideresnet_forward(x_nchw, params):
    # PyTorch input is NCHW; convert to NHWC once for all kernels.
    x = jnp.transpose(x_nchw, (0, 2, 3, 1)).astype(jnp.float32)
    N, H, W, cin = x.shape

    # Pad input channels 3 -> 8 (zeros) so conv0's reduction K = 9*8 = 72 is
    # sublane aligned; zero weight rows contribute nothing to the dot.
    cin_pad = 8
    x = jnp.pad(x, ((0, 0), (0, 0), (0, 0), (0, cin_pad - cin)))
    w0 = jnp.pad(params["conv0_w"], ((0, 0), (0, 0), (0, cin_pad - cin), (0, 0)))

    # ---- conv0, with block1's bn1+relu fused as the epilogue ----------------
    # x0 (raw conv output) is also needed as block1's identity shortcut, so the
    # kernel emits both tensors from a single read of the im2col columns.
    s1, b1 = _bn_fold(params["block1"]["bn1"])
    cols, (_, Ho, Wo) = _im2col(x, 3, 1, 1)
    x0_2d, o1_2d = fused_conv_bn_relu(cols, w0.reshape(-1, 16), s1, b1,
                                      emit_pre_bn=True)
    o1 = o1_2d.reshape(N, Ho, Wo, 16)

    # ---- block1 (16 -> 16, stride 1, identity shortcut) ---------------------
    p = params["block1"]
    s2, b2 = _bn_fold(p["bn2"])
    cols, _ = _im2col(o1, 3, 1, 1)
    h = fused_conv_bn_relu(cols, p["conv1_w"].reshape(-1, 16), s2, b2)
    h = h.reshape(N, Ho, Wo, 16)

    # conv2 + identity residual + block2's bn1+relu epilogue -> o2 directly
    s_next, b_next = _bn_fold(params["block2"]["bn1"])
    cols, _ = _im2col(h, 3, 1, 1)
    o2 = fused_conv_bn_relu(cols, p["conv2_w"].reshape(-1, 16), s_next, b_next,
                            residual=x0_2d)
    o2 = o2.reshape(N, Ho, Wo, 16)

    # ---- block2 (16 -> 32, stride 2, projection shortcut) -------------------
    p = params["block2"]
    s2, b2 = _bn_fold(p["bn2"])
    cols, (_, Ho, Wo) = _im2col(o2, 3, 2, 1)
    h = fused_conv_bn_relu(cols, p["conv1_w"].reshape(-1, 32), s2, b2)
    h = h.reshape(N, Ho, Wo, 32)

    # conv2 + fused 1x1 stride-2 projection shortcut + block3's bn1+relu
    sc_cols = o2[:, ::2, ::2, :].reshape(-1, 16)
    s_next, b_next = _bn_fold(params["block3"]["bn1"])
    cols, _ = _im2col(h, 3, 1, 1)
    o3 = fused_conv_bn_relu(cols, p["conv2_w"].reshape(-1, 32), s_next, b_next,
                            sc_cols=sc_cols, sc_w=p["convs_w"].reshape(16, 32))
    o3 = o3.reshape(N, Ho, Wo, 32)

    # ---- block3 (32 -> 64, stride 2, projection shortcut) -------------------
    # Final BN+ReLU of the backbone is fused as conv2's epilogue.
    p = params["block3"]
    s2, b2 = _bn_fold(p["bn2"])
    cols, (_, Ho, Wo) = _im2col(o3, 3, 2, 1)
    h = fused_conv_bn_relu(cols, p["conv1_w"].reshape(-1, 64), s2, b2)
    h = h.reshape(N, Ho, Wo, 64)

    sc_cols = o3[:, ::2, ::2, :].reshape(-1, 32)
    s_f, b_f = _bn_fold(params["bn_final"])
    cols, _ = _im2col(h, 3, 1, 1)
    y = fused_conv_bn_relu(cols, p["conv2_w"].reshape(-1, 64), s_f, b_f,
                           sc_cols=sc_cols, sc_w=p["convs_w"].reshape(32, 64))
    y = y.reshape(N, Ho * Wo, 64)

    # ---- head: global-avg-pool + fc + classifier_3 fused into ONE kernel ----
    # Exact merge (no nonlinearity between the two linears):
    #   out = (pool @ fc_w + fc_b) @ cls3_w + cls3_b
    #       =  pool @ (fc_w @ cls3_w) + (fc_b @ cls3_w + cls3_b)
    w_head = params["fc_w"] @ params["cls3_w"]
    b_head = params["fc_b"] @ params["cls3_w"] + params["cls3_b"]
    return pallas_pool_head(y, w_head, b_head)


# TODO(synk): PyTorch BatchNorm training-mode batch statistics are not
# reproduced; eval-mode (running-stats) semantics are implemented instead.

if __name__ == "__main__":
    num_classes = 8
    key = jax.random.PRNGKey(0)
    k_params, k_x = jax.random.split(key)

    params = make_params(num_classes, k_params)
    x = jax.random.normal(k_x, (2, 3, 16, 16), jnp.float32)  # NCHW like PyTorch

    fwd = jax.jit(lambda inp: haframe_wideresnet_forward(inp, params))
    out = fwd(x)
    jax.block_until_ready(out)

    assert out.shape == (2, num_classes)
    assert jnp.all(jnp.isfinite(out))
    print("KERNEL_OK")
</pallas_src>

<mosaic_0001>
module attributes {stable_mosaic.version = 11 : i64} {
  func.func @_conv_dual_out_kernel(%arg0: i32, %arg1: memref<256x72xf32, #tpu.memory_space<vmem>>, %arg2: memref<72x16xf32, #tpu.memory_space<vmem>>, %arg3: memref<1x16xf32, #tpu.memory_space<vmem>>, %arg4: memref<1x16xf32, #tpu.memory_space<vmem>>, %arg5: memref<256x16xf32, #tpu.memory_space<vmem>>, %arg6: memref<256x16xf32, #tpu.memory_space<vmem>>) attributes {dimension_semantics = [#tpu.dimension_semantics<parallel>], iteration_bounds = array<i64: 2>, scalar_prefetch = 0 : i64, scratch_operands = 0 : i64, tpu.core_type = #tpu.core_type<tc>, window_params = [{transform_indices = @transform_0, window_bounds = array<i64: 256, 72>}, {pipeline_mode = #tpu.pipeline_mode<synchronous>, transform_indices = @transform_1, window_bounds = array<i64: 72, 16>}, {pipeline_mode = #tpu.pipeline_mode<synchronous>, transform_indices = @transform_2, window_bounds = array<i64: 1, 16>}, {pipeline_mode = #tpu.pipeline_mode<synchronous>, transform_indices = @transform_3, window_bounds = array<i64: 1, 16>}, {transform_indices = @transform_4, window_bounds = array<i64: 256, 16>}, {transform_indices = @transform_5, window_bounds = array<i64: 256, 16>}]} {
    %c0 = arith.constant 0 : index
    %c0_0 = arith.constant 0 : index
    %0 = vector.load %arg1[%c0, %c0_0] : memref<256x72xf32, #tpu.memory_space<vmem>>, vector<256x72xf32>
    %c0_1 = arith.constant 0 : index
    %c0_2 = arith.constant 0 : index
    %1 = vector.load %arg2[%c0_1, %c0_2] : memref<72x16xf32, #tpu.memory_space<vmem>>, vector<72x16xf32>
    %cst = arith.constant dense<0.000000e+00> : vector<256x16xf32>
    %2 = tpu.matmul %0, %1, %cst {dimension_numbers = #tpu.dot_dimension_numbers<[1], [0], [0], [1], [0, 0, 1, 1], [], []>} : vector<256x72xf32>, vector<72x16xf32>, vector<256x16xf32> -> vector<256x16xf32>
    %c0_3 = arith.constant 0 : index
    %c0_4 = arith.constant 0 : index
    %3 = vector.load %arg5[%c0_3, %c0_4] : memref<256x16xf32, #tpu.memory_space<vmem>>, vector<256x16xf32>
    tpu.vector_store %arg5[%c0_3, %c0_4], %2 {strides = array<i32>} : memref<256x16xf32, #tpu.memory_space<vmem>>, vector<256x16xf32>,
    %c0_5 = arith.constant 0 : index
    %c0_6 = arith.constant 0 : index
    %4 = vector.load %arg3[%c0_5, %c0_6] : memref<1x16xf32, #tpu.memory_space<vmem>>, vector<1x16xf32>
    %5 = vector.broadcast %4 : vector<1x16xf32> to vector<256x16xf32>
    %6 = arith.mulf %2, %5 : vector<256x16xf32>
    %c0_7 = arith.constant 0 : index
    %c0_8 = arith.constant 0 : index
    %7 = vector.load %arg4[%c0_7, %c0_8] : memref<1x16xf32, #tpu.memory_space<vmem>>, vector<1x16xf32>
    %8 = vector.broadcast %7 : vector<1x16xf32> to vector<256x16xf32>
    %9 = arith.addf %6, %8 : vector<256x16xf32>
    %cst_9 = arith.constant 0.000000e+00 : f32
    %10 = vector.broadcast %cst_9 : f32 to vector<256x16xf32>
    %11 = arith.maximumf %9, %10 : vector<256x16xf32>
    %c0_10 = arith.constant 0 : index
    %c0_11 = arith.constant 0 : index
    %12 = vector.load %arg6[%c0_10, %c0_11] : memref<256x16xf32, #tpu.memory_space<vmem>>, vector<256x16xf32>
    tpu.vector_store %arg6[%c0_10, %c0_11], %11 {strides = array<i32>} : memref<256x16xf32, #tpu.memory_space<vmem>>, vector<256x16xf32>,
    return
  }
  func.func @transform_0(%arg0: i32) -> (i32, i32) {
    %c0_i32 = arith.constant 0 : i32
    %c0_i32_0 = arith.constant 0 : i32
    return %arg0, %c0_i32 : i32, i32
  }
  func.func @transform_1(%arg0: i32) -> (i32, i32) {
    %c0_i32 = arith.constant 0 : i32
    %c0_i32_0 = arith.constant 0 : i32
    %c0_i32_1 = arith.constant 0 : i32
    return %c0_i32, %c0_i32_0 : i32, i32
  }
  func.func @transform_2(%arg0: i32) -> (i32, i32) {
    %c0_i32 = arith.constant 0 : i32
    %c0_i32_0 = arith.constant 0 : i32
    %c0_i32_1 = arith.constant 0 : i32
    return %c0_i32, %c0_i32_0 : i32, i32
  }
  func.func @transform_3(%arg0: i32) -> (i32, i32) {
    %c0_i32 = arith.constant 0 : i32
    %c0_i32_0 = arith.constant 0 : i32
    %c0_i32_1 = arith.constant 0 : i32
    return %c0_i32, %c0_i32_0 : i32, i32
  }
  func.func @transform_4(%arg0: i32) -> (i32, i32) {
    %c0_i32 = arith.constant 0 : i32
    %c0_i32_0 = arith.constant 0 : i32
    return %arg0, %c0_i32 : i32, i32
  }
  func.func @transform_5(%arg0: i32) -> (i32, i32) {
    %c0_i32 = arith.constant 0 : i32
    %c0_i32_0 = arith.constant 0 : i32
    return %arg0, %c0_i32 : i32, i32
  }
}

module attributes {stable_mosaic.version = 11 : i64} {
  func.func @_conv_bnrelu_kernel(%arg0: i32, %arg1: memref<256x144xf32, #tpu.memory_space<vmem>>, %arg2: memref<144x16xf32, #tpu.memory_space<vmem>>, %arg3: memref<1x16xf32, #tpu.memory_space<vmem>>, %arg4: memref<1x16xf32, #tpu.memory_space<vmem>>, %arg5: memref<256x16xf32, #tpu.memory_space<vmem>>) attributes {dimension_semantics = [#tpu.dimension_semantics<parallel>], iteration_bounds = array<i64: 2>, scalar_prefetch = 0 : i64, scratch_operands = 0 : i64, tpu.core_type = #tpu.core_type<tc>, window_params = [{transform_indices = @transform_0, window_bounds = array<i64: 256, 144>}, {pipeline_mode = #tpu.pipeline_mode<synchronous>, transform_indices = @transform_1, window_bounds = array<i64: 144, 16>}, {pipeline_mode = #tpu.pipeline_mode<synchronous>, transform_indices = @transform_2, window_bounds = array<i64: 1, 16>}, {pipeline_mode = #tpu.pipeline_mode<synchronous>, transform_indices = @transform_3, window_bounds = array<i64: 1, 16>}, {transform_indices = @transform_4, window_bounds = array<i64: 256, 16>}]} {
    %c0 = arith.constant 0 : index
    %c0_0 = arith.constant 0 : index
    %0 = vector.load %arg1[%c0, %c0_0] : memref<256x144xf32, #tpu.memory_space<vmem>>, vector<256x144xf32>
    %c0_1 = arith.constant 0 : index
    %c0_2 = arith.constant 0 : index
    %1 = vector.load %arg2[%c0_1, %c0_2] : memref<144x16xf32, #tpu.memory_space<vmem>>, vector<144x16xf32>
    %cst = arith.constant dense<0.000000e+00> : vector<256x16xf32>
    %2 = tpu.matmul %0, %1, %cst {dimension_numbers = #tpu.dot_dimension_numbers<[1], [0], [0], [1], [0, 0, 1, 1], [], []>} : vector<256x144xf32>, vector<144x16xf32>, vector<256x16xf32> -> vector<256x16xf32>
    %c0_3 = arith.constant 0 : index
    %c0_4 = arith.constant 0 : index
    %3 = vector.load %arg3[%c0_3, %c0_4] : memref<1x16xf32, #tpu.memory_space<vmem>>, vector<1x16xf32>
    %4 = vector.broadcast %3 : vector<1x16xf32> to vector<256x16xf32>
    %5 = arith.mulf %2, %4 : vector<256x16xf32>
    %c0_5 = arith.constant 0 : index
    %c0_6 = arith.constant 0 : index
    %6 = vector.load %arg4[%c0_5, %c0_6] : memref<1x16xf32, #tpu.memory_space<vmem>>, vector<1x16xf32>
    %7 = vector.broadcast %6 : vector<1x16xf32> to vector<256x16xf32>
    %8 = arith.addf %5, %7 : vector<256x16xf32>
    %cst_7 = arith.constant 0.000000e+00 : f32
    %9 = vector.broadcast %cst_7 : f32 to vector<256x16xf32>
    %10 = arith.maximumf %8, %9 : vector<256x16xf32>
    %c0_8 = arith.constant 0 : index
    %c0_9 = arith.constant 0 : index
    %11 = vector.load %arg5[%c0_8, %c0_9] : memref<256x16xf32, #tpu.memory_space<vmem>>, vector<256x16xf32>
    tpu.vector_store %arg5[%c0_8, %c0_9], %10 {strides = array<i32>} : memref<256x16xf32, #tpu.memory_space<vmem>>, vector<256x16xf32>,
    return
  }
  func.func @transform_0(%arg0: i32) -> (i32, i32) {
    %c0_i32 = arith.constant 0 : i32
    %c0_i32_0 = arith.constant 0 : i32
    return %arg0, %c0_i32 : i32, i32
  }
  func.func @transform_1(%arg0: i32) -> (i32, i32) {
    %c0_i32 = arith.constant 0 : i32
    %c0_i32_0 = arith.constant 0 : i32
    %c0_i32_1 = arith.constant 0 : i32
    return %c0_i32, %c0_i32_0 : i32, i32
  }
  func.func @transform_2(%arg0: i32) -> (i32, i32) {
    %c0_i32 = arith.constant 0 : i32
    %c0_i32_0 = arith.constant 0 : i32
    %c0_i32_1 = arith.constant 0 : i32
    return %c0_i32, %c0_i32_0 : i32, i32
  }
  func.func @transform_3(%arg0: i32) -> (i32, i32) {
    %c0_i32 = arith.constant 0 : i32
    %c0_i32_0 = arith.constant 0 : i32
    %c0_i32_1 = arith.constant 0 : i32
    return %c0_i32, %c0_i32_0 : i32, i32
  }
  func.func @transform_4(%arg0: i32) -> (i32, i32) {
    %c0_i32 = arith.constant 0 : i32
    %c0_i32_0 = arith.constant 0 : i32
    return %arg0, %c0_i32 : i32, i32
  }
}

module attributes {stable_mosaic.version = 11 : i64} {
  func.func @_conv_add_bnrelu_kernel(%arg0: i32, %arg1: memref<256x144xf32, #tpu.memory_space<vmem>>, %arg2: memref<144x16xf32, #tpu.memory_space<vmem>>, %arg3: memref<256x16xf32, #tpu.memory_space<vmem>>, %arg4: memref<1x16xf32, #tpu.memory_space<vmem>>, %arg5: memref<1x16xf32, #tpu.memory_space<vmem>>, %arg6: memref<256x16xf32, #tpu.memory_space<vmem>>) attributes {dimension_semantics = [#tpu.dimension_semantics<parallel>], iteration_bounds = array<i64: 2>, scalar_prefetch = 0 : i64, scratch_operands = 0 : i64, tpu.core_type = #tpu.core_type<tc>, window_params = [{transform_indices = @transform_0, window_bounds = array<i64: 256, 144>}, {pipeline_mode = #tpu.pipeline_mode<synchronous>, transform_indices = @transform_1, window_bounds = array<i64: 144, 16>}, {transform_indices = @transform_2, window_bounds = array<i64: 256, 16>}, {pipeline_mode = #tpu.pipeline_mode<synchronous>, transform_indices = @transform_3, window_bounds = array<i64: 1, 16>}, {pipeline_mode = #tpu.pipeline_mode<synchronous>, transform_indices = @transform_4, window_bounds = array<i64: 1, 16>}, {transform_indices = @transform_5, window_bounds = array<i64: 256, 16>}]} {
    %c0 = arith.constant 0 : index
    %c0_0 = arith.constant 0 : index
    %0 = vector.load %arg1[%c0, %c0_0] : memref<256x144xf32, #tpu.memory_space<vmem>>, vector<256x144xf32>
    %c0_1 = arith.constant 0 : index
    %c0_2 = arith.constant 0 : index
    %1 = vector.load %arg2[%c0_1, %c0_2] : memref<144x16xf32, #tpu.memory_space<vmem>>, vector<144x16xf32>
    %cst = arith.constant dense<0.000000e+00> : vector<256x16xf32>
    %2 = tpu.matmul %0, %1, %cst {dimension_numbers = #tpu.dot_dimension_numbers<[1], [0], [0], [1], [0, 0, 1, 1], [], []>} : vector<256x144xf32>, vector<144x16xf32>, vector<256x16xf32> -> vector<256x16xf32>
    %c0_3 = arith.constant 0 : index
    %c0_4 = arith.constant 0 : index
    %3 = vector.load %arg3[%c0_3, %c0_4] : memref<256x16xf32, #tpu.memory_space<vmem>>, vector<256x16xf32>
    %4 = arith.addf %2, %3 : vector<256x16xf32>
    %c0_5 = arith.constant 0 : index
    %c0_6 = arith.constant 0 : index
    %5 = vector.load %arg4[%c0_5, %c0_6] : memref<1x16xf32, #tpu.memory_space<vmem>>, vector<1x16xf32>
    %6 = vector.broadcast %5 : vector<1x16xf32> to vector<256x16xf32>
    %7 = arith.mulf %4, %6 : vector<256x16xf32>
    %c0_7 = arith.constant 0 : index
    %c0_8 = arith.constant 0 : index
    %8 = vector.load %arg5[%c0_7, %c0_8] : memref<1x16xf32, #tpu.memory_space<vmem>>, vector<1x16xf32>
    %9 = vector.broadcast %8 : vector<1x16xf32> to vector<256x16xf32>
    %10 = arith.addf %7, %9 : vector<256x16xf32>
    %cst_9 = arith.constant 0.000000e+00 : f32
    %11 = vector.broadcast %cst_9 : f32 to vector<256x16xf32>
    %12 = arith.maximumf %10, %11 : vector<256x16xf32>
    %c0_10 = arith.constant 0 : index
    %c0_11 = arith.constant 0 : index
    %13 = vector.load %arg6[%c0_10, %c0_11] : memref<256x16xf32, #tpu.memory_space<vmem>>, vector<256x16xf32>
    tpu.vector_store %arg6[%c0_10, %c0_11], %12 {strides = array<i32>} : memref<256x16xf32, #tpu.memory_space<vmem>>, vector<256x16xf32>,
    return
  }
  func.func @transform_0(%arg0: i32) -> (i32, i32) {
    %c0_i32 = arith.constant 0 : i32
    %c0_i32_0 = arith.constant 0 : i32
    return %arg0, %c0_i32 : i32, i32
  }
  func.func @transform_1(%arg0: i32) -> (i32, i32) {
    %c0_i32 = arith.constant 0 : i32
    %c0_i32_0 = arith.constant 0 : i32
    %c0_i32_1 = arith.constant 0 : i32
    return %c0_i32, %c0_i32_0 : i32, i32
  }
  func.func @transform_2(%arg0: i32) -> (i32, i32) {
    %c0_i32 = arith.constant 0 : i32
    %c0_i32_0 = arith.constant 0 : i32
    return %arg0, %c0_i32 : i32, i32
  }
  func.func @transform_3(%arg0: i32) -> (i32, i32) {
    %c0_i32 = arith.constant 0 : i32
    %c0_i32_0 = arith.constant 0 : i32
    %c0_i32_1 = arith.constant 0 : i32
    return %c0_i32, %c0_i32_0 : i32, i32
  }
  func.func @transform_4(%arg0: i32) -> (i32, i32) {
    %c0_i32 = arith.constant 0 : i32
    %c0_i32_0 = arith.constant 0 : i32
    %c0_i32_1 = arith.constant 0 : i32
    return %c0_i32, %c0_i32_0 : i32, i32
  }
  func.func @transform_5(%arg0: i32) -> (i32, i32) {
    %c0_i32 = arith.constant 0 : i32
    %c0_i32_0 = arith.constant 0 : i32
    return %arg0, %c0_i32 : i32, i32
  }
}

module attributes {stable_mosaic.version = 11 : i64} {
  func.func @_conv_bnrelu_kernel(%arg0: i32, %arg1: memref<128x144xf32, #tpu.memory_space<vmem>>, %arg2: memref<144x32xf32, #tpu.memory_space<vmem>>, %arg3: memref<1x32xf32, #tpu.memory_space<vmem>>, %arg4: memref<1x32xf32, #tpu.memory_space<vmem>>, %arg5: memref<128x32xf32, #tpu.memory_space<vmem>>) attributes {dimension_semantics = [#tpu.dimension_semantics<parallel>], iteration_bounds = array<i64: 1>, scalar_prefetch = 0 : i64, scratch_operands = 0 : i64, tpu.core_type = #tpu.core_type<tc>, window_params = [{transform_indices = @transform_0, window_bounds = array<i64: 128, 144>}, {pipeline_mode = #tpu.pipeline_mode<synchronous>, transform_indices = @transform_1, window_bounds = array<i64: 144, 32>}, {pipeline_mode = #tpu.pipeline_mode<synchronous>, transform_indices = @transform_2, window_bounds = array<i64: 1, 32>}, {pipeline_mode = #tpu.pipeline_mode<synchronous>, transform_indices = @transform_3, window_bounds = array<i64: 1, 32>}, {transform_indices = @transform_4, window_bounds = array<i64: 128, 32>}]} {
    %c0 = arith.constant 0 : index
    %c0_0 = arith.constant 0 : index
    %0 = vector.load %arg1[%c0, %c0_0] : memref<128x144xf32, #tpu.memory_space<vmem>>, vector<128x144xf32>
    %c0_1 = arith.constant 0 : index
    %c0_2 = arith.constant 0 : index
    %1 = vector.load %arg2[%c0_1, %c0_2] : memref<144x32xf32, #tpu.memory_space<vmem>>, vector<144x32xf32>
    %cst = arith.constant dense<0.000000e+00> : vector<128x32xf32>
    %2 = tpu.matmul %0, %1, %cst {dimension_numbers = #tpu.dot_dimension_numbers<[1], [0], [0], [1], [0, 0, 1, 1], [], []>} : vector<128x144xf32>, vector<144x32xf32>, vector<128x32xf32> -> vector<128x32xf32>
    %c0_3 = arith.constant 0 : index
    %c0_4 = arith.constant 0 : index
    %3 = vector.load %arg3[%c0_3, %c0_4] : memref<1x32xf32, #tpu.memory_space<vmem>>, vector<1x32xf32>
    %4 = vector.broadcast %3 : vector<1x32xf32> to vector<128x32xf32>
    %5 = arith.mulf %2, %4 : vector<128x32xf32>
    %c0_5 = arith.constant 0 : index
    %c0_6 = arith.constant 0 : index
    %6 = vector.load %arg4[%c0_5, %c0_6] : memref<1x32xf32, #tpu.memory_space<vmem>>, vector<1x32xf32>
    %7 = vector.broadcast %6 : vector<1x32xf32> to vector<128x32xf32>
    %8 = arith.addf %5, %7 : vector<128x32xf32>
    %cst_7 = arith.constant 0.000000e+00 : f32
    %9 = vector.broadcast %cst_7 : f32 to vector<128x32xf32>
    %10 = arith.maximumf %8, %9 : vector<128x32xf32>
    %c0_8 = arith.constant 0 : index
    %c0_9 = arith.constant 0 : index
    %11 = vector.load %arg5[%c0_8, %c0_9] : memref<128x32xf32, #tpu.memory_space<vmem>>, vector<128x32xf32>
    tpu.vector_store %arg5[%c0_8, %c0_9], %10 {strides = array<i32>} : memref<128x32xf32, #tpu.memory_space<vmem>>, vector<128x32xf32>,
    return
  }
  func.func @transform_0(%arg0: i32) -> (i32, i32) {
    %c0_i32 = arith.constant 0 : i32
    %c0_i32_0 = arith.constant 0 : i32
    return %arg0, %c0_i32 : i32, i32
  }
  func.func @transform_1(%arg0: i32) -> (i32, i32) {
    %c0_i32 = arith.constant 0 : i32
    %c0_i32_0 = arith.constant 0 : i32
    %c0_i32_1 = arith.constant 0 : i32
    return %c0_i32, %c0_i32_0 : i32, i32
  }
  func.func @transform_2(%arg0: i32) -> (i32, i32) {
    %c0_i32 = arith.constant 0 : i32
    %c0_i32_0 = arith.constant 0 : i32
    %c0_i32_1 = arith.constant 0 : i32
    return %c0_i32, %c0_i32_0 : i32, i32
  }
  func.func @transform_3(%arg0: i32) -> (i32, i32) {
    %c0_i32 = arith.constant 0 : i32
    %c0_i32_0 = arith.constant 0 : i32
    %c0_i32_1 = arith.constant 0 : i32
    return %c0_i32, %c0_i32_0 : i32, i32
  }
  func.func @transform_4(%arg0: i32) -> (i32, i32) {
    %c0_i32 = arith.constant 0 : i32
    %c0_i32_0 = arith.constant 0 : i32
    return %arg0, %c0_i32 : i32, i32
  }
}

module attributes {stable_mosaic.version = 11 : i64} {
  func.func @_conv_shortcut_bnrelu_kernel(%arg0: i32, %arg1: memref<128x288xf32, #tpu.memory_space<vmem>>, %arg2: memref<288x32xf32, #tpu.memory_space<vmem>>, %arg3: memref<128x16xf32, #tpu.memory_space<vmem>>, %arg4: memref<16x32xf32, #tpu.memory_space<vmem>>, %arg5: memref<1x32xf32, #tpu.memory_space<vmem>>, %arg6: memref<1x32xf32, #tpu.memory_space<vmem>>, %arg7: memref<128x32xf32, #tpu.memory_space<vmem>>) attributes {dimension_semantics = [#tpu.dimension_semantics<parallel>], iteration_bounds = array<i64: 1>, scalar_prefetch = 0 : i64, scratch_operands = 0 : i64, tpu.core_type = #tpu.core_type<tc>, window_params = [{transform_indices = @transform_0, window_bounds = array<i64: 128, 288>}, {pipeline_mode = #tpu.pipeline_mode<synchronous>, transform_indices = @transform_1, window_bounds = array<i64: 288, 32>}, {transform_indices = @transform_2, window_bounds = array<i64: 128, 16>}, {pipeline_mode = #tpu.pipeline_mode<synchronous>, transform_indices = @transform_3, window_bounds = array<i64: 16, 32>}, {pipeline_mode = #tpu.pipeline_mode<synchronous>, transform_indices = @transform_4, window_bounds = array<i64: 1, 32>}, {pipeline_mode = #tpu.pipeline_mode<synchronous>, transform_indices = @transform_5, window_bounds = array<i64: 1, 32>}, {transform_indices = @transform_6, window_bounds = array<i64: 128, 32>}]} {
    %c0 = arith.constant 0 : index
    %c0_0 = arith.constant 0 : index
    %0 = vector.load %arg1[%c0, %c0_0] : memref<128x288xf32, #tpu.memory_space<vmem>>, vector<128x288xf32>
    %c0_1 = arith.constant 0 : index
    %c0_2 = arith.constant 0 : index
    %1 = vector.load %arg2[%c0_1, %c0_2] : memref<288x32xf32, #tpu.memory_space<vmem>>, vector<288x32xf32>
    %cst = arith.constant dense<0.000000e+00> : vector<128x32xf32>
    %2 = tpu.matmul %0, %1, %cst {dimension_numbers = #tpu.dot_dimension_numbers<[1], [0], [0], [1], [0, 0, 1, 1], [], []>} : vector<128x288xf32>, vector<288x32xf32>, vector<128x32xf32> -> vector<128x32xf32>
    %c0_3 = arith.constant 0 : index
    %c0_4 = arith.constant 0 : index
    %3 = vector.load %arg3[%c0_3, %c0_4] : memref<128x16xf32, #tpu.memory_space<vmem>>, vector<128x16xf32>
    %c0_5 = arith.constant 0 : index
    %c0_6 = arith.constant 0 : index
    %4 = vector.load %arg4[%c0_5, %c0_6] : memref<16x32xf32, #tpu.memory_space<vmem>>, vector<16x32xf32>
    %cst_7 = arith.constant dense<0.000000e+00> : vector<128x32xf32>
    %5 = tpu.matmul %3, %4, %cst_7 {dimension_numbers = #tpu.dot_dimension_numbers<[1], [0], [0], [1], [0, 0, 1, 1], [], []>} : vector<128x16xf32>, vector<16x32xf32>, vector<128x32xf32> -> vector<128x32xf32>
    %6 = arith.addf %2, %5 : vector<128x32xf32>
    %c0_8 = arith.constant 0 : index
    %c0_9 = arith.constant 0 : index
    %7 = vector.load %arg5[%c0_8, %c0_9] : memref<1x32xf32, #tpu.memory_space<vmem>>, vector<1x32xf32>
    %8 = vector.broadcast %7 : vector<1x32xf32> to vector<128x32xf32>
    %9 = arith.mulf %6, %8 : vector<128x32xf32>
    %c0_10 = arith.constant 0 : index
    %c0_11 = arith.constant 0 : index
    %10 = vector.load %arg6[%c0_10, %c0_11] : memref<1x32xf32, #tpu.memory_space<vmem>>, vector<1x32xf32>
    %11 = vector.broadcast %10 : vector<1x32xf32> to vector<128x32xf32>
    %12 = arith.addf %9, %11 : vector<128x32xf32>
    %cst_12 = arith.constant 0.000000e+00 : f32
    %13 = vector.broadcast %cst_12 : f32 to vector<128x32xf32>
    %14 = arith.maximumf %12, %13 : vector<128x32xf32>
    %c0_13 = arith.constant 0 : index
    %c0_14 = arith.constant 0 : index
    %15 = vector.load %arg7[%c0_13, %c0_14] : memref<128x32xf32, #tpu.memory_space<vmem>>, vector<128x32xf32>
    tpu.vector_store %arg7[%c0_13, %c0_14], %14 {strides = array<i32>} : memref<128x32xf32, #tpu.memory_space<vmem>>, vector<128x32xf32>,
    return
  }
  func.func @transform_0(%arg0: i32) -> (i32, i32) {
    %c0_i32 = arith.constant 0 : i32
    %c0_i32_0 = arith.constant 0 : i32
    return %arg0, %c0_i32 : i32, i32
  }
  func.func @transform_1(%arg0: i32) -> (i32, i32) {
    %c0_i32 = arith.constant 0 : i32
    %c0_i32_0 = arith.constant 0 : i32
    %c0_i32_1 = arith.constant 0 : i32
    return %c0_i32, %c0_i32_0 : i32, i32
  }
  func.func @transform_2(%arg0: i32) -> (i32, i32) {
    %c0_i32 = arith.constant 0 : i32
    %c0_i32_0 = arith.constant 0 : i32
    return %arg0, %c0_i32 : i32, i32
  }
  func.func @transform_3(%arg0: i32) -> (i32, i32) {
    %c0_i32 = arith.constant 0 : i32
    %c0_i32_0 = arith.constant 0 : i32
    %c0_i32_1 = arith.constant 0 : i32
    return %c0_i32, %c0_i32_0 : i32, i32
  }
  func.func @transform_4(%arg0: i32) -> (i32, i32) {
    %c0_i32 = arith.constant 0 : i32
    %c0_i32_0 = arith.constant 0 : i32
    %c0_i32_1 = arith.constant 0 : i32
    return %c0_i32, %c0_i32_0 : i32, i32
  }
  func.func @transform_5(%arg0: i32) -> (i32, i32) {
    %c0_i32 = arith.constant 0 : i32
    %c0_i32_0 = arith.constant 0 : i32
    %c0_i32_1 = arith.constant 0 : i32
    return %c0_i32, %c0_i32_0 : i32, i32
  }
  func.func @transform_6(%arg0: i32) -> (i32, i32) {
    %c0_i32 = arith.constant 0 : i32
    %c0_i32_0 = arith.constant 0 : i32
    return %arg0, %c0_i32 : i32, i32
  }
}

module attributes {stable_mosaic.version = 11 : i64} {
  func.func @_conv_bnrelu_kernel(%arg0: i32, %arg1: memref<32x288xf32, #tpu.memory_space<vmem>>, %arg2: memref<288x64xf32, #tpu.memory_space<vmem>>, %arg3: memref<1x64xf32, #tpu.memory_space<vmem>>, %arg4: memref<1x64xf32, #tpu.memory_space<vmem>>, %arg5: memref<32x64xf32, #tpu.memory_space<vmem>>) attributes {dimension_semantics = [#tpu.dimension_semantics<parallel>], iteration_bounds = array<i64: 1>, scalar_prefetch = 0 : i64, scratch_operands = 0 : i64, tpu.core_type = #tpu.core_type<tc>, window_params = [{transform_indices = @transform_0, window_bounds = array<i64: 32, 288>}, {pipeline_mode = #tpu.pipeline_mode<synchronous>, transform_indices = @transform_1, window_bounds = array<i64: 288, 64>}, {pipeline_mode = #tpu.pipeline_mode<synchronous>, transform_indices = @transform_2, window_bounds = array<i64: 1, 64>}, {pipeline_mode = #tpu.pipeline_mode<synchronous>, transform_indices = @transform_3, window_bounds = array<i64: 1, 64>}, {transform_indices = @transform_4, window_bounds = array<i64: 32, 64>}]} {
    %c0 = arith.constant 0 : index
    %c0_0 = arith.constant 0 : index
    %0 = vector.load %arg1[%c0, %c0_0] : memref<32x288xf32, #tpu.memory_space<vmem>>, vector<32x288xf32>
    %c0_1 = arith.constant 0 : index
    %c0_2 = arith.constant 0 : index
    %1 = vector.load %arg2[%c0_1, %c0_2] : memref<288x64xf32, #tpu.memory_space<vmem>>, vector<288x64xf32>
    %cst = arith.constant dense<0.000000e+00> : vector<32x64xf32>
    %2 = tpu.matmul %0, %1, %cst {dimension_numbers = #tpu.dot_dimension_numbers<[1], [0], [0], [1], [0, 0, 1, 1], [], []>} : vector<32x288xf32>, vector<288x64xf32>, vector<32x64xf32> -> vector<32x64xf32>
    %c0_3 = arith.constant 0 : index
    %c0_4 = arith.constant 0 : index
    %3 = vector.load %arg3[%c0_3, %c0_4] : memref<1x64xf32, #tpu.memory_space<vmem>>, vector<1x64xf32>
    %4 = vector.broadcast %3 : vector<1x64xf32> to vector<32x64xf32>
    %5 = arith.mulf %2, %4 : vector<32x64xf32>
    %c0_5 = arith.constant 0 : index
    %c0_6 = arith.constant 0 : index
    %6 = vector.load %arg4[%c0_5, %c0_6] : memref<1x64xf32, #tpu.memory_space<vmem>>, vector<1x64xf32>
    %7 = vector.broadcast %6 : vector<1x64xf32> to vector<32x64xf32>
    %8 = arith.addf %5, %7 : vector<32x64xf32>
    %cst_7 = arith.constant 0.000000e+00 : f32
    %9 = vector.broadcast %cst_7 : f32 to vector<32x64xf32>
    %10 = arith.maximumf %8, %9 : vector<32x64xf32>
    %c0_8 = arith.constant 0 : index
    %c0_9 = arith.constant 0 : index
    %11 = vector.load %arg5[%c0_8, %c0_9] : memref<32x64xf32, #tpu.memory_space<vmem>>, vector<32x64xf32>
    tpu.vector_store %arg5[%c0_8, %c0_9], %10 {strides = array<i32>} : memref<32x64xf32, #tpu.memory_space<vmem>>, vector<32x64xf32>,
    return
  }
  func.func @transform_0(%arg0: i32) -> (i32, i32) {
    %c0_i32 = arith.constant 0 : i32
    %c0_i32_0 = arith.constant 0 : i32
    return %arg0, %c0_i32 : i32, i32
  }
  func.func @transform_1(%arg0: i32) -> (i32, i32) {
    %c0_i32 = arith.constant 0 : i32
    %c0_i32_0 = arith.constant 0 : i32
    %c0_i32_1 = arith.constant 0 : i32
    return %c0_i32, %c0_i32_0 : i32, i32
  }
  func.func @transform_2(%arg0: i32) -> (i32, i32) {
    %c0_i32 = arith.constant 0 : i32
    %c0_i32_0 = arith.constant 0 : i32
    %c0_i32_1 = arith.constant 0 : i32
    return %c0_i32, %c0_i32_0 : i32, i32
  }
  func.func @transform_3(%arg0: i32) -> (i32, i32) {
    %c0_i32 = arith.constant 0 : i32
    %c0_i32_0 = arith.constant 0 : i32
    %c0_i32_1 = arith.constant 0 : i32
    return %c0_i32, %c0_i32_0 : i32, i32
  }
  func.func @transform_4(%arg0: i32) -> (i32, i32) {
    %c0_i32 = arith.constant 0 : i32
    %c0_i32_0 = arith.constant 0 : i32
    return %arg0, %c0_i32 : i32, i32
  }
}

module attributes {stable_mosaic.version = 11 : i64} {
  func.func @_pool_head_kernel(%arg0: i32, %arg1: memref<2x16x64xf32, #tpu.memory_space<vmem>>, %arg2: memref<64x8xf32, #tpu.memory_space<vmem>>, %arg3: memref<1x8xf32, #tpu.memory_space<vmem>>, %arg4: memref<2x8xf32, #tpu.memory_space<vmem>>) attributes {dimension_semantics = [#tpu.dimension_semantics<arbitrary>], iteration_bounds = array<i64: 1>, scalar_prefetch = 0 : i64, scratch_operands = 0 : i64, tpu.core_type = #tpu.core_type<tc>, window_params = [{pipeline_mode = #tpu.pipeline_mode<synchronous>, transform_indices = @transform_0, window_bounds = array<i64: 2, 16, 64>}, {pipeline_mode = #tpu.pipeline_mode<synchronous>, transform_indices = @transform_1, window_bounds = array<i64: 64, 8>}, {pipeline_mode = #tpu.pipeline_mode<synchronous>, transform_indices = @transform_2, window_bounds = array<i64: 1, 8>}, {pipeline_mode = #tpu.pipeline_mode<synchronous>, transform_indices = @transform_3, window_bounds = array<i64: 2, 8>}]} {
    %c0 = arith.constant 0 : index
    %c0_0 = arith.constant 0 : index
    %c0_1 = arith.constant 0 : index
    %0 = vector.load %arg1[%c0, %c0_0, %c0_1] : memref<2x16x64xf32, #tpu.memory_space<vmem>>, vector<2x16x64xf32>
    %cst = arith.constant dense<0.000000e+00> : vector<2x64xf32>
    %1 = vector.multi_reduction <add>, %0, %cst [1] : vector<2x16x64xf32> to vector<2x64xf32>
    %cst_2 = arith.constant 1.600000e+01 : f32
    %2 = vector.broadcast %cst_2 : f32 to vector<2x64xf32>
    %3 = arith.divf %1, %2 : vector<2x64xf32>
    %c0_3 = arith.constant 0 : index
    %c0_4 = arith.constant 0 : index
    %4 = vector.load %arg2[%c0_3, %c0_4] : memref<64x8xf32, #tpu.memory_space<vmem>>, vector<64x8xf32>
    %cst_5 = arith.constant dense<0.000000e+00> : vector<2x8xf32>
    %5 = tpu.matmul %3, %4, %cst_5 {dimension_numbers = #tpu.dot_dimension_numbers<[1], [0], [0], [1], [0, 0, 1, 1], [], []>} : vector<2x64xf32>, vector<64x8xf32>, vector<2x8xf32> -> vector<2x8xf32>
    %c0_6 = arith.constant 0 : index
    %c0_7 = arith.constant 0 : index
    %6 = vector.load %arg3[%c0_6, %c0_7] : memref<1x8xf32, #tpu.memory_space<vmem>>, vector<1x8xf32>
    %7 = vector.broadcast %6 : vector<1x8xf32> to vector<2x8xf32>
    %8 = arith.addf %5, %7 : vector<2x8xf32>
    %c0_8 = arith.constant 0 : index
    %c0_9 = arith.constant 0 : index
    %9 = vector.load %arg4[%c0_8, %c0_9] : memref<2x8xf32, #tpu.memory_space<vmem>>, vector<2x8xf32>
    tpu.vector_store %arg4[%c0_8, %c0_9], %8 {strides = array<i32>} : memref<2x8xf32, #tpu.memory_space<vmem>>, vector<2x8xf32>,
    return
  }
  func.func @transform_0(%arg0: i32) -> (i32, i32, i32) {
    %c0_i32 = arith.constant 0 : i32
    %c0_i32_0 = arith.constant 0 : i32
    %c0_i32_1 = arith.constant 0 : i32
    %c0_i32_2 = arith.constant 0 : i32
    return %c0_i32, %c0_i32_0, %c0_i32_1 : i32, i32, i32
  }
  func.func @transform_1(%arg0: i32) -> (i32, i32) {
    %c0_i32 = arith.constant 0 : i32
    %c0_i32_0 = arith.constant 0 : i32
    %c0_i32_1 = arith.constant 0 : i32
    return %c0_i32, %c0_i32_0 : i32, i32
  }
  func.func @transform_2(%arg0: i32) -> (i32, i32) {
    %c0_i32 = arith.constant 0 : i32
    %c0_i32_0 = arith.constant 0 : i32
    %c0_i32_1 = arith.constant 0 : i32
    return %c0_i32, %c0_i32_0 : i32, i32
  }
  func.func @transform_3(%arg0: i32) -> (i32, i32) {
    %c0_i32 = arith.constant 0 : i32
    %c0_i32_0 = arith.constant 0 : i32
    %c0_i32_1 = arith.constant 0 : i32
    return %c0_i32, %c0_i32_0 : i32, i32
  }
}

module attributes {stable_mosaic.version = 11 : i64} {
  func.func @_conv_shortcut_bnrelu_kernel(%arg0: i32, %arg1: memref<32x576xf32, #tpu.memory_space<vmem>>, %arg2: memref<576x64xf32, #tpu.memory_space<vmem>>, %arg3: memref<32x32xf32, #tpu.memory_space<vmem>>, %arg4: memref<32x64xf32, #tpu.memory_space<vmem>>, %arg5: memref<1x64xf32, #tpu.memory_space<vmem>>, %arg6: memref<1x64xf32, #tpu.memory_space<vmem>>, %arg7: memref<32x64xf32, #tpu.memory_space<vmem>>) attributes {dimension_semantics = [#tpu.dimension_semantics<parallel>], iteration_bounds = array<i64: 1>, scalar_prefetch = 0 : i64, scratch_operands = 0 : i64, tpu.core_type = #tpu.core_type<tc>, window_params = [{transform_indices = @transform_0, window_bounds = array<i64: 32, 576>}, {pipeline_mode = #tpu.pipeline_mode<synchronous>, transform_indices = @transform_1, window_bounds = array<i64: 576, 64>}, {transform_indices = @transform_2, window_bounds = array<i64: 32, 32>}, {pipeline_mode = #tpu.pipeline_mode<synchronous>, transform_indices = @transform_3, window_bounds = array<i64: 32, 64>}, {pipeline_mode = #tpu.pipeline_mode<synchronous>, transform_indices = @transform_4, window_bounds = array<i64: 1, 64>}, {pipeline_mode = #tpu.pipeline_mode<synchronous>, transform_indices = @transform_5, window_bounds = array<i64: 1, 64>}, {transform_indices = @transform_6, window_bounds = array<i64: 32, 64>}]} {
    %c0 = arith.constant 0 : index
    %c0_0 = arith.constant 0 : index
    %0 = vector.load %arg1[%c0, %c0_0] : memref<32x576xf32, #tpu.memory_space<vmem>>, vector<32x576xf32>
    %c0_1 = arith.constant 0 : index
    %c0_2 = arith.constant 0 : index
    %1 = vector.load %arg2[%c0_1, %c0_2] : memref<576x64xf32, #tpu.memory_space<vmem>>, vector<576x64xf32>
    %cst = arith.constant dense<0.000000e+00> : vector<32x64xf32>
    %2 = tpu.matmul %0, %1, %cst {dimension_numbers = #tpu.dot_dimension_numbers<[1], [0], [0], [1], [0, 0, 1, 1], [], []>} : vector<32x576xf32>, vector<576x64xf32>, vector<32x64xf32> -> vector<32x64xf32>
    %c0_3 = arith.constant 0 : index
    %c0_4 = arith.constant 0 : index
    %3 = vector.load %arg3[%c0_3, %c0_4] : memref<32x32xf32, #tpu.memory_space<vmem>>, vector<32x32xf32>
    %c0_5 = arith.constant 0 : index
    %c0_6 = arith.constant 0 : index
    %4 = vector.load %arg4[%c0_5, %c0_6] : memref<32x64xf32, #tpu.memory_space<vmem>>, vector<32x64xf32>
    %cst_7 = arith.constant dense<0.000000e+00> : vector<32x64xf32>
    %5 = tpu.matmul %3, %4, %cst_7 {dimension_numbers = #tpu.dot_dimension_numbers<[1], [0], [0], [1], [0, 0, 1, 1], [], []>} : vector<32x32xf32>, vector<32x64xf32>, vector<32x64xf32> -> vector<32x64xf32>
    %6 = arith.addf %2, %5 : vector<32x64xf32>
    %c0_8 = arith.constant 0 : index
    %c0_9 = arith.constant 0 : index
    %7 = vector.load %arg5[%c0_8, %c0_9] : memref<1x64xf32, #tpu.memory_space<vmem>>, vector<1x64xf32>
    %8 = vector.broadcast %7 : vector<1x64xf32> to vector<32x64xf32>
    %9 = arith.mulf %6, %8 : vector<32x64xf32>
    %c0_10 = arith.constant 0 : index
    %c0_11 = arith.constant 0 : index
    %10 = vector.load %arg6[%c0_10, %c0_11] : memref<1x64xf32, #tpu.memory_space<vmem>>, vector<1x64xf32>
    %11 = vector.broadcast %10 : vector<1x64xf32> to vector<32x64xf32>
    %12 = arith.addf %9, %11 : vector<32x64xf32>
    %cst_12 = arith.constant 0.000000e+00 : f32
    %13 = vector.broadcast %cst_12 : f32 to vector<32x64xf32>
    %14 = arith.maximumf %12, %13 : vector<32x64xf32>
    %c0_13 = arith.constant 0 : index
    %c0_14 = arith.constant 0 : index
    %15 = vector.load %arg7[%c0_13, %c0_14] : memref<32x64xf32, #tpu.memory_space<vmem>>, vector<32x64xf32>
    tpu.vector_store %arg7[%c0_13, %c0_14], %14 {strides = array<i32>} : memref<32x64xf32, #tpu.memory_space<vmem>>, vector<32x64xf32>,
    return
  }
  func.func @transform_0(%arg0: i32) -> (i32, i32) {
    %c0_i32 = arith.constant 0 : i32
    %c0_i32_0 = arith.constant 0 : i32
    return %arg0, %c0_i32 : i32, i32
  }
  func.func @transform_1(%arg0: i32) -> (i32, i32) {
    %c0_i32 = arith.constant 0 : i32
    %c0_i32_0 = arith.constant 0 : i32
    %c0_i32_1 = arith.constant 0 : i32
    return %c0_i32, %c0_i32_0 : i32, i32
  }
  func.func @transform_2(%arg0: i32) -> (i32, i32) {
    %c0_i32 = arith.constant 0 : i32
    %c0_i32_0 = arith.constant 0 : i32
    return %arg0, %c0_i32 : i32, i32
  }
  func.func @transform_3(%arg0: i32) -> (i32, i32) {
    %c0_i32 = arith.constant 0 : i32
    %c0_i32_0 = arith.constant 0 : i32
    %c0_i32_1 = arith.constant 0 : i32
    return %c0_i32, %c0_i32_0 : i32, i32
  }
  func.func @transform_4(%arg0: i32) -> (i32, i32) {
    %c0_i32 = arith.constant 0 : i32
    %c0_i32_0 = arith.constant 0 : i32
    %c0_i32_1 = arith.constant 0 : i32
    return %c0_i32, %c0_i32_0 : i32, i32
  }
  func.func @transform_5(%arg0: i32) -> (i32, i32) {
    %c0_i32 = arith.constant 0 : i32
    %c0_i32_0 = arith.constant 0 : i32
    %c0_i32_1 = arith.constant 0 : i32
    return %c0_i32, %c0_i32_0 : i32, i32
  }
  func.func @transform_6(%arg0: i32) -> (i32, i32) {
    %c0_i32 = arith.constant 0 : i32
    %c0_i32_0 = arith.constant 0 : i32
    return %arg0, %c0_i32 : i32, i32
  }
}

</mosaic_0001>

<llo_original>
// kernel: _lambda_.8
$region0: #{_lambda_.8}
  #allocation0 [shape = 'u32[]', space=smem, size = 0x4, offset = 0x4, fixed_abs, tag = 'smem constant byte address 0x4 - core index']
  #allocation1 [shape = 'u32[144,128]{1,0:T(1,128)}', space=vmem, size = 0x12000, scoped, tag = 'internal scratch']
  %s0 = inlined_call_operand.vmem [shape: f32[512,72], index: 0, kind: input, shape index: {}]
  %s1 = inlined_call_operand.vmem [shape: f32[72,16], index: 1, kind: input, shape index: {}]
  %s2 = inlined_call_operand.vmem [shape: f32[1,16], index: 2, kind: input, shape index: {}]
  %s3 = inlined_call_operand.vmem [shape: f32[1,16], index: 3, kind: input, shape index: {}]
  %s4 = inlined_call_operand.vmem [shape: f32[512,16], index: 4, kind: output, shape index: {0}]
  %s5 = inlined_call_operand.vmem [shape: f32[512,16], index: 5, kind: output, shape index: {1}]
  %6 = xla_tuple %s4, %s5
  %s7 = sld [smem:[#allocation0]]
  $region57: #{_lambda_.8} parent=0
    _
  %s9 = ssub.s32 1, %s7
  %s10 = scalar_select 0, %s9, %s7
  loop: start=0, step=1, limit=4
  $region2: #{_lambda_.8} parent=0 // loop_pre_header
    _
  $region3: #{_lambda_.8} parent=0 // loop_header
    %s12 = sphi 0, %s16
    %p13 = scmp.ge.s32.totalorder %s12, 4
    %s22 = sphi 0, %s24
    %s25 = sphi 0, %s22
    %s26 = sphi 0, %s25
    %s42 = sphi 0, %s26
    %s46 = sphi 0, %s46
    %s48 = sphi 0, %s46
    %s49 = sphi 0, %s48
    %s63 = sphi 0, %s49
    %s67 = sphi 0, %s67
    %s69 = sphi 0, %s67
    %s70 = sphi 0, %s69
    %s84 = sphi 0, %s70
    %s88 = sphi 0, %s88
    %s90 = sphi 0, %s88
    %s91 = sphi 0, %s90
    %s105 = sphi 0, %s91
    %s111 = sphi 0, %s113
    %s114 = sphi 0, %s111
    %s115 = sphi 0, %s114
    %s131 = sphi 0, %s115
    %s137 = sphi 0, %s139
    %s140 = sphi 0, %s137
    %s141 = sphi 0, %s140
    %s157 = sphi 0, %s141
  $region4: #{_lambda_.8} parent=0 // loop_header_branch
    %15 = sbr.rel (%p13) target = $region8
  $region5: #{_lambda_.8} parent=0 // loop_body
    %s17 = ssub.s32 %s12, 1
    %s18 = ssub.s32 %s12, 2
    %s19 = sadd.s32 %s12, 1
    %s20 = ssub.s32 %s12, %s19
    %p21 = scmp.eq.s32.totalorder %s20, 0
    %s23 = sadd.s32 %s22, 1
    %s24 = scalar_select %p21, %s22, %s23
    %p27 = pneg %p21
    %p28 = scmp.eq.s32.totalorder %s12, 1
    %p29 = por %p27, %p28
    %p30 = scmp.ne.s32.totalorder %s22, %s25
    %p31 = scmp.eq.s32.totalorder %s12, 0
    %p32 = por %p30, %p31
    %p33 = scmp.ne.s32.totalorder %s22, %s25
    %p34 = scmp.eq.s32.totalorder %s17, 1
    %p35 = por %p33, %p34
    %p36 = scmp.ne.s32.totalorder %s25, %s26
    %p37 = scmp.eq.s32.totalorder %s17, 0
    %p38 = por %p36, %p37
    %p39 = scmp.ne.s32.totalorder %s25, %s26
    %p40 = scmp.eq.s32.totalorder %s18, 1
    %p41 = por %p39, %p40
    %p43 = scmp.ne.s32.totalorder %s26, %s42
    %p44 = scmp.eq.s32.totalorder %s18, 0
    %p45 = por %p43, %p44
    %s47 = sadd.s32 %s46, 1
    %p50 = scmp.eq.s32.totalorder %s12, 1
    %p51 = scmp.ne.s32.totalorder %s46, %s48
    %p52 = scmp.eq.s32.totalorder %s12, 0
    %p53 = por %p51, %p52
    %p54 = scmp.ne.s32.totalorder %s46, %s48
    %p55 = scmp.eq.s32.totalorder %s17, 1
    %p56 = por %p54, %p55
    %p57 = scmp.ne.s32.totalorder %s48, %s49
    %p58 = scmp.eq.s32.totalorder %s17, 0
    %p59 = por %p57, %p58
    %p60 = scmp.ne.s32.totalorder %s48, %s49
    %p61 = scmp.eq.s32.totalorder %s18, 1
    %p62 = por %p60, %p61
    %p64 = scmp.ne.s32.totalorder %s49, %s63
    %p65 = scmp.eq.s32.totalorder %s18, 0
    %p66 = por %p64, %p65
    %s68 = sadd.s32 %s67, 1
    %p71 = scmp.eq.s32.totalorder %s12, 1
    %p72 = scmp.ne.s32.totalorder %s67, %s69
    %p73 = scmp.eq.s32.totalorder %s12, 0
    %p74 = por %p72, %p73
    %p75 = scmp.ne.s32.totalorder %s67, %s69
    %p76 = scmp.eq.s32.totalorder %s17, 1
    %p77 = por %p75, %p76
    %p78 = scmp.ne.s32.totalorder %s69, %s70
    %p79 = scmp.eq.s32.totalorder %s17, 0
    %p80 = por %p78, %p79
    %p81 = scmp.ne.s32.totalorder %s69, %s70
    %p82 = scmp.eq.s32.totalorder %s18, 1
    %p83 = por %p81, %p82
    %p85 = scmp.ne.s32.totalorder %s70, %s84
    %p86 = scmp.eq.s32.totalorder %s18, 0
    %p87 = por %p85, %p86
    %s89 = sadd.s32 %s88, 1
    %p92 = scmp.eq.s32.totalorder %s12, 1
    %p93 = scmp.ne.s32.totalorder %s88, %s90
    %p94 = scmp.eq.s32.totalorder %s12, 0
    %p95 = por %p93, %p94
    %p96 = scmp.ne.s32.totalorder %s88, %s90
    %p97 = scmp.eq.s32.totalorder %s17, 1
    %p98 = por %p96, %p97
    %p99 = scmp.ne.s32.totalorder %s90, %s91
    %p100 = scmp.eq.s32.totalorder %s17, 0
    %p101 = por %p99, %p100
    %p102 = scmp.ne.s32.totalorder %s90, %s91
    %p103 = scmp.eq.s32.totalorder %s18, 1
    %p104 = por %p102, %p103
    %p106 = scmp.ne.s32.totalorder %s91, %s105
    %p107 = scmp.eq.s32.totalorder %s18, 0
    %p108 = por %p106, %p107
    %s109 = ssub.s32 %s12, %s19
    %p110 = scmp.eq.s32.totalorder %s109, 0
    %s112 = sadd.s32 %s111, 1
    %s113 = scalar_select %p110, %s111, %s112
    %p116 = pneg %p110
    %p117 = scmp.eq.s32.totalorder %s12, 1
    %p118 = por %p116, %p117
    %p119 = scmp.ne.s32.totalorder %s111, %s114
    %p120 = scmp.eq.s32.totalorder %s12, 0
    %p121 = por %p119, %p120
    %p122 = scmp.ne.s32.totalorder %s111, %s114
    %p123 = scmp.eq.s32.totalorder %s17, 1
    %p124 = por %p122, %p123
    %p125 = scmp.ne.s32.totalorder %s114, %s115
    %p126 = scmp.eq.s32.totalorder %s17, 0
    %p127 = por %p125, %p126
    %p128 = scmp.ne.s32.totalorder %s114, %s115
    %p129 = scmp.eq.s32.totalorder %s18, 1
    %p130 = por %p128, %p129
    %p132 = scmp.ne.s32.totalorder %s115, %s131
    %p133 = scmp.eq.s32.totalorder %s18, 0
    %p134 = por %p132, %p133
    %s135 = ssub.s32 %s12, %s19
    %p136 = scmp.eq.s32.totalorder %s135, 0
    %s138 = sadd.s32 %s137, 1
    %s139 = scalar_select %p136, %s137, %s138
    %p142 = pneg %p136
    %p143 = scmp.eq.s32.totalorder %s12, 1
    %p144 = por %p142, %p143
    %p145 = scmp.ne.s32.totalorder %s137, %s140
    %p146 = scmp.eq.s32.totalorder %s12, 0
    %p147 = por %p145, %p146
    %p148 = scmp.ne.s32.totalorder %s137, %s140
    %p149 = scmp.eq.s32.totalorder %s17, 1
    %p150 = por %p148, %p149
    %p151 = scmp.ne.s32.totalorder %s140, %s141
    %p152 = scmp.eq.s32.totalorder %s17, 0
    %p153 = por %p151, %p152
    %p154 = scmp.ne.s32.totalorder %s140, %s141
    %p155 = scmp.eq.s32.totalorder %s18, 1
    %p156 = por %p154, %p155
    %p158 = scmp.ne.s32.totalorder %s141, %s157
    %p159 = scmp.eq.s32.totalorder %s18, 0
    %p160 = por %p158, %p159
    %p161 = scmp.le.s32.totalorder 1, %s12
    %p162 = scmp.lt.s32.totalorder %s12, 3
    %p163 = pnand %p161, %p162
    %p164 = pneg %p163
    // Predicated region
    $region9: #{_lambda_.8} parent=5 // pred_check
      _
    $region10: #{_lambda_.8} parent=5 // pred_check_branch
      %166 = sbr.rel (%p163) target = $region12
    $region11: #{_lambda_.8} parent=5 // pred_region
      %s167 = ssub.s32 %s12, 1
      // Predicated region
      $region13: #{_lambda_.8} parent=11 // pred_check
        %p168 = pneg %p59
      $region14: #{_lambda_.8} parent=11 // pred_check_branch
        %170 = sbr.rel (%p168) target = $region16
      $region15: #{_lambda_.8} parent=11 // pred_region
        _
      $region16: #{_lambda_.8} parent=11 // pred_fallthru
        _
      // Predicated region
      $region17: #{_lambda_.8} parent=11 // pred_check
        %p171 = pneg %p80
      $region18: #{_lambda_.8} parent=11 // pred_check_branch
        %173 = sbr.rel (%p171) target = $region20
      $region19: #{_lambda_.8} parent=11 // pred_region
        _
      $region20: #{_lambda_.8} parent=11 // pred_fallthru
        _
      // Predicated region
      $region21: #{_lambda_.8} parent=11 // pred_check
        %p174 = pneg %p101
      $region22: #{_lambda_.8} parent=11 // pred_check_branch
        %176 = sbr.rel (%p174) target = $region24
      $region23: #{_lambda_.8} parent=11 // pred_region
        _
      $region24: #{_lambda_.8} parent=11 // pred_fallthru
        _
    $region12: #{_lambda_.8} parent=5 // pred_fallthru
      _
    %p177 = scmp.lt.s32.totalorder %s12, 2
    // Predicated region
    $region25: #{_lambda_.8} parent=5 // pred_check
      %p178 = pneg %p177
    $region26: #{_lambda_.8} parent=5 // pred_check_branch
      %180 = sbr.rel (%p178) target = $region28
    $region27: #{_lambda_.8} parent=5 // pred_region
      // Predicated region
      $region29: #{_lambda_.8} parent=27 // pred_check
        %p181 = pneg %p32
      $region30: #{_lambda_.8} parent=27 // pred_check_branch
        %183 = sbr.rel (%p181) target = $region32
      $region31: #{_lambda_.8} parent=27 // pred_region
        %s184 = smul.u32 32, %s12
        %p185 = scmp.lt.s32.totalorder %s184, 63
        %s186 = scalar_select %p185, %s184, 63
        %s187 = smul.addr %s186, 8
        %s188 = scalar_lea.vmem %s0, %s187
        %s189 = smul.u32 32, %s12
      $region32: #{_lambda_.8} parent=27 // pred_fallthru
        _
    $region28: #{_lambda_.8} parent=5 // pred_fallthru
      _
    %p190 = scmp.le.s32.totalorder 1, %s12
    %p191 = scmp.lt.s32.totalorder %s12, 3
    %p192 = pnand %p190, %p191
    %p193 = pneg %p192
    // Predicated region
    $region33: #{_lambda_.8} parent=5 // pred_check
      _
    $region34: #{_lambda_.8} parent=5 // pred_check_branch
      %195 = sbr.rel (%p192) target = $region36
    $region35: #{_lambda_.8} parent=5 // pred_region
      %s196 = ssub.s32 %s12, 1
      %s197 = smul.u32 32, %s17
      %p198 = scmp.lt.s32.totalorder %s197, 63
      %s199 = scalar_select %p198, %s197, 63
      %s200 = smul.addr %s199, 8
      %s201 = scalar_lea.vmem %s0, %s200
      %p202 = pneg %p38
      %p203 = pneg %p35
      %p204 = pneg %p59
      %p205 = pneg %p56
      %p206 = pneg %p80
      %p207 = pneg %p77
      %p208 = pneg %p101
      %p209 = pneg %p98
      %p210 = pneg %p127
      %p211 = pneg %p124
      %s212 = smul.u32 32, %s17
      %p213 = scmp.lt.s32.totalorder %s212, 63
      %s214 = scalar_select %p213, %s212, 63
      %s215 = smul.addr %s214, 8
      %s216 = scalar_lea.vmem %s4, %s215
      %p217 = pneg %p153
      %p218 = pneg %p150
      %s219 = smul.u32 32, %s17
      %p220 = scmp.lt.s32.totalorder %s219, 63
      %s221 = scalar_select %p220, %s219, 63
      %s222 = smul.addr %s221, 8
      %s223 = scalar_lea.vmem %s5, %s222
      %s224 = smul.u32 32, %s17
      %p225 = scmp.lt.s32.totalorder %s224, 63
      %s226 = scalar_select %p225, %s224, 63
      %s227 = smul.addr %s226, 8
      %s228 = scalar_lea.vmem %s0, %s227
      %s229 = smul.u32 32, %s17
      %s230 = smul.u32 32, %s17
      %p231 = scmp.lt.s32.totalorder %s230, 63
      %s232 = scalar_select %p231, %s230, 63
      %s233 = smul.addr %s232, 8
      %s234 = scalar_lea.vmem %s4, %s233
      %s235 = smul.u32 32, %s17
      %s236 = smul.u32 32, %s17
      %p237 = scmp.lt.s32.totalorder %s236, 63
      %s238 = scalar_select %p237, %s236, 63
      %s239 = smul.addr %s238, 8
      %s240 = scalar_lea.vmem %s5, %s239
      %s241 = smul.u32 32, %s17
      %v242 = vld [vmem:[%s228] sm:$0xff]
      %v243 = vld [vmem:[%s228 + $0x8] sm:$0xff]
      %v244 = vld [vmem:[%s228 + $0x10] sm:$0xff]
      %v245 = vld [vmem:[%s228 + $0x18] sm:$0xff]
      %v246 = vld [vmem:[%s228 + $0x20] sm:$0xff]
      %v247 = vld [vmem:[%s228 + $0x28] sm:$0xff]
      %v248 = vld [vmem:[%s228 + $0x30] sm:$0xff]
      %v249 = vld [vmem:[%s228 + $0x38] sm:$0xff]
      %v250 = vld [vmem:[%s228 + $0x40] sm:$0xff]
      %v251 = vld [vmem:[%s228 + $0x48] sm:$0xff]
      %v252 = vld [vmem:[%s228 + $0x50] sm:$0xff]
      %v253 = vld [vmem:[%s228 + $0x58] sm:$0xff]
      %v254 = vld [vmem:[%s228 + $0x60] sm:$0xff]
      %v255 = vld [vmem:[%s228 + $0x68] sm:$0xff]
      %v256 = vld [vmem:[%s228 + $0x70] sm:$0xff]
      %v257 = vld [vmem:[%s228 + $0x78] sm:$0xff]
      %v258 = vld [vmem:[%s228 + $0x80] sm:$0xff]
      %v259 = vld [vmem:[%s228 + $0x88] sm:$0xff]
      %v260 = vld [vmem:[%s228 + $0x90] sm:$0xff]
      %v261 = vld [vmem:[%s228 + $0x98] sm:$0xff]
      %v262 = vld [vmem:[%s228 + $0xa0] sm:$0xff]
      %v263 = vld [vmem:[%s228 + $0xa8] sm:$0xff]
      %v264 = vld [vmem:[%s228 + $0xb0] sm:$0xff]
      %v265 = vld [vmem:[%s228 + $0xb8] sm:$0xff]
      %v266 = vld [vmem:[%s228 + $0xc0] sm:$0xff]
      %v267 = vld [vmem:[%s228 + $0xc8] sm:$0xff]
      %v268 = vld [vmem:[%s228 + $0xd0] sm:$0xff]
      %v269 = vld [vmem:[%s228 + $0xd8] sm:$0xff]
      %v270 = vld [vmem:[%s228 + $0xe0] sm:$0xff]
      %v271 = vld [vmem:[%s228 + $0xe8] sm:$0xff]
      %v272 = vld [vmem:[%s228 + $0xf0] sm:$0xff]
      %v273 = vld [vmem:[%s228 + $0xf8] sm:$0xff]
      %v274 = vld [vmem:[%s1] sm:$0xff]
      %v275 = vld [vmem:[%s1 + $0x8] sm:$0xff]
      %v276 = vld [vmem:[%s1 + $0x10] sm:$0xff]
      %v277 = vld [vmem:[%s1 + $0x18] sm:$0xff]
      %v278 = vld [vmem:[%s1 + $0x20] sm:$0xff]
      %v279 = vld [vmem:[%s1 + $0x28] sm:$0xff]
      %v280 = vld [vmem:[%s1 + $0x30] sm:$0xff]
      %v281 = vld [vmem:[%s1 + $0x38] sm:$0xff]
      %v282 = vld [vmem:[%s1 + $0x40] sm:$0xff]
      %vm283 = vcmask 588800
      %v285 = vsel %vm283, %v242, 0
      %v288 = vsel %vm283, %v243, 0
      %v291 = vsel %vm283, %v244, 0
      %v294 = vsel %vm283, %v245, 0
      %v297 = vsel %vm283, %v246, 0
      %v300 = vsel %vm283, %v247, 0
      %v303 = vsel %vm283, %v248, 0
      %v306 = vsel %vm283, %v249, 0
      %v309 = vsel %vm283, %v250, 0
      %v312 = vsel %vm283, %v251, 0
      %v315 = vsel %vm283, %v252, 0
      %v318 = vsel %vm283, %v253, 0
      %v321 = vsel %vm283, %v254, 0
      %v324 = vsel %vm283, %v255, 0
      %v327 = vsel %vm283, %v256, 0
      %v330 = vsel %vm283, %v257, 0
      %v333 = vsel %vm283, %v258, 0
      %v336 = vsel %vm283, %v259, 0
      %v339 = vsel %vm283, %v260, 0
      %v342 = vsel %vm283, %v261, 0
      %v345 = vsel %vm283, %v262, 0
      %v348 = vsel %vm283, %v263, 0
      %v351 = vsel %vm283, %v264, 0
      %v354 = vsel %vm283, %v265, 0
      %v357 = vsel %vm283, %v266, 0
      %v360 = vsel %vm283, %v267, 0
      %v363 = vsel %vm283, %v268, 0
      %v366 = vsel %vm283, %v269, 0
      %v369 = vsel %vm283, %v270, 0
      %v372 = vsel %vm283, %v271, 0
      %v375 = vsel %vm283, %v272, 0
      %v378 = vsel %vm283, %v273, 0
      %380 = vmatprep.subr.mxu0 0.0
      %381 = vmatpush1.msra.mxu0 %v274
      %382 = vmatprep.subr.mxu0 0.0
      %383 = vmatpush1.msra.mxu0 %v275
      %384 = vmatprep.subr.mxu0 0.0
      %385 = vmatpush1.msra.mxu0 %v276
      %386 = vmatprep.subr.mxu0 0.0
      %387 = vmatpush1.msra.mxu0 %v277
      %388 = vmatprep.subr.mxu0 0.0
      %389 = vmatpush1.msra.mxu0 %v278
      %390 = vmatprep.subr.mxu0 0.0
      %391 = vmatpush1.msra.mxu0 %v279
      %392 = vmatprep.subr.mxu0 0.0
      %393 = vmatpush1.msra.mxu0 %v280
      %394 = vmatprep.subr.mxu0 0.0
      %395 = vmatpush1.msra.mxu0 %v281
      %396 = vmatprep.subr.mxu0 0.0
      %397 = vmatpush1.msra.mxu0 %v282
      %398 = vmatprep.subr.mxu0 0.0
      %399 = vmatpush1.msra.mxu0 0.0
      %400 = vmatprep.subr.mxu0 0.0
      %401 = vmatpush1.msra.mxu0 0.0
      %402 = vmatprep.subr.mxu0 0.0
      %403 = vmatpush1.msra.mxu0 0.0
      %404 = vmatprep.subr.mxu0 0.0
      %405 = vmatpush1.msra.mxu0 0.0
      %406 = vmatprep.subr.mxu0 0.0
      %407 = vmatpush1.msra.mxu0 0.0
      %408 = vmatprep.subr.mxu0 0.0
      %409 = vmatpush1.msra.mxu0 0.0
      %410 = vmatprep.subr.mxu0 0.0
      %411 = vmatpush1.msra.mxu0 0.0
      %412 = vmatprep.subr.mxu0 0.0
      %413 = vmatpush1.msra.mxu0 0.0
      %414 = vmatprep.subr.mxu0 0.0
      %415 = vmatpush1.msra.mxu0 0.0
      %416 = vmatprep.subr.mxu0 0.0
      %417 = vmatpush1.msra.mxu0 0.0
      %418 = vmatprep.subr.mxu0 0.0
      %419 = vmatpush1.msra.mxu0 0.0
      %420 = vmatprep.subr.mxu0 0.0
      %421 = vmatpush1.msra.mxu0 0.0
      %422 = vmatprep.subr.mxu0 0.0
      %423 = vmatpush1.msra.mxu0 0.0
      %424 = vmatprep.subr.mxu0 0.0
      %425 = vmatpush1.msra.mxu0 0.0
      %426 = vmatprep.subr.mxu0 0.0
      %427 = vmatpush1.msra.mxu0 0.0
      %428 = vmatprep.subr.mxu0 0.0
      %429 = vmatpush1.msra.mxu0 0.0
      %430 = vmatprep.subr.mxu0 0.0
      %431 = vmatpush1.msra.mxu0 0.0
      %432 = vmatprep.subr.mxu0 0.0
      %433 = vmatpush1.msra.mxu0 0.0
      %434 = vmatprep.subr.mxu0 0.0
      %435 = vmatpush1.msra.mxu0 0.0
      %436 = vmatprep.subr.mxu0 0.0
      %437 = vmatpush1.msra.mxu0 0.0
      %438 = vmatprep.subr.mxu0 0.0
      %439 = vmatpush1.msra.mxu0 0.0
      %440 = vmatprep.subr.mxu0 0.0
      %441 = vmatpush1.msra.mxu0 0.0
      %442 = vmatprep.subr.mxu0 0.0
      %443 = vmatpush1.msra.mxu0 0.0
      %444 = vmatprep.mubr.f32.mxu0 0.0
      %445 = vmatmul.mubr.f32.gmra.mrb[0].mxu0 %v285
      %v446 = vpop.f32.mrb[0].mxu0
      %v447 = vadd.f32 0.0, %v446
      %v448 = vpop.f32.mrb[0].mxu0
      %449 = vmatprep.mubr.f32.mxu0 0.0
      %450 = vmatmul.mubr.f32.gmra.mrb[0].mxu0 %v288
      %v451 = vpop.f32.mrb[0].mxu0
      %v452 = vadd.f32 0.0, %v451
      %v453 = vpop.f32.mrb[0].mxu0
      %454 = vmatprep.mubr.f32.mxu0 0.0
      %455 = vmatmul.mubr.f32.gmra.mrb[0].mxu0 %v291
      %v456 = vpop.f32.mrb[0].mxu0
      %v457 = vadd.f32 0.0, %v456
      %v458 = vpop.f32.mrb[0].mxu0
      %459 = vmatprep.mubr.f32.mxu0 0.0
      %460 = vmatmul.mubr.f32.gmra.mrb[0].mxu0 %v294
      %v461 = vpop.f32.mrb[0].mxu0
      %v462 = vadd.f32 0.0, %v461
      %v463 = vpop.f32.mrb[0].mxu0
      %464 = vmatprep.mubr.f32.mxu0 0.0
      %465 = vmatmul.mubr.f32.gmra.mrb[0].mxu0 %v297
      %v466 = vpop.f32.mrb[0].mxu0
      %v467 = vadd.f32 0.0, %v466
      %v468 = vpop.f32.mrb[0].mxu0
      %469 = vmatprep.mubr.f32.mxu0 0.0
      %470 = vmatmul.mubr.f32.gmra.mrb[0].mxu0 %v300
      %v471 = vpop.f32.mrb[0].mxu0
      %v472 = vadd.f32 0.0, %v471
      %v473 = vpop.f32.mrb[0].mxu0
      %474 = vmatprep.mubr.f32.mxu0 0.0
      %475 = vmatmul.mubr.f32.gmra.mrb[0].mxu0 %v303
      %v476 = vpop.f32.mrb[0].mxu0
      %v477 = vadd.f32 0.0, %v476
      %v478 = vpop.f32.mrb[0].mxu0
      %479 = vmatprep.mubr.f32.mxu0 0.0
      %480 = vmatmul.mubr.f32.gmra.mrb[0].mxu0 %v306
      %v481 = vpop.f32.mrb[0].mxu0
      %v482 = vadd.f32 0.0, %v481
      %v483 = vpop.f32.mrb[0].mxu0
      %484 = vmatprep.mubr.f32.mxu0 0.0
      %485 = vmatmul.mubr.f32.gmra.mrb[0].mxu0 %v309
      %v486 = vpop.f32.mrb[0].mxu0
      %v487 = vadd.f32 0.0, %v486
      %v488 = vpop.f32.mrb[0].mxu0
      %489 = vmatprep.mubr.f32.mxu0 0.0
      %490 = vmatmul.mubr.f32.gmra.mrb[0].mxu0 %v312
      %v491 = vpop.f32.mrb[0].mxu0
      %v492 = vadd.f32 0.0, %v491
      %v493 = vpop.f32.mrb[0].mxu0
      %494 = vmatprep.mubr.f32.mxu0 0.0
      %495 = vmatmul.mubr.f32.gmra.mrb[0].mxu0 %v315
      %v496 = vpop.f32.mrb[0].mxu0
      %v497 = vadd.f32 0.0, %v496
      %v498 = vpop.f32.mrb[0].mxu0
      %499 = vmatprep.mubr.f32.mxu0 0.0
      %500 = vmatmul.mubr.f32.gmra.mrb[0].mxu0 %v318
      %v501 = vpop.f32.mrb[0].mxu0
      %v502 = vadd.f32 0.0, %v501
      %v503 = vpop.f32.mrb[0].mxu0
      %504 = vmatprep.mubr.f32.mxu0 0.0
      %505 = vmatmul.mubr.f32.gmra.mrb[0].mxu0 %v321
      %v506 = vpop.f32.mrb[0].mxu0
      %v507 = vadd.f32 0.0, %v506
      %v508 = vpop.f32.mrb[0].mxu0
      %509 = vmatprep.mubr.f32.mxu0 0.0
      %510 = vmatmul.mubr.f32.gmra.mrb[0].mxu0 %v324
      %v511 = vpop.f32.mrb[0].mxu0
      %v512 = vadd.f32 0.0, %v511
      %v513 = vpop.f32.mrb[0].mxu0
      %514 = vmatprep.mubr.f32.mxu0 0.0
      %515 = vmatmul.mubr.f32.gmra.mrb[0].mxu0 %v327
      %v516 = vpop.f32.mrb[0].mxu0
      %v517 = vadd.f32 0.0, %v516
      %v518 = vpop.f32.mrb[0].mxu0
      %519 = vmatprep.mubr.f32.mxu0 0.0
      %520 = vmatmul.mubr.f32.gmra.mrb[0].mxu0 %v330
      %v521 = vpop.f32.mrb[0].mxu0
      %v522 = vadd.f32 0.0, %v521
      %v523 = vpop.f32.mrb[0].mxu0
      %524 = vmatprep.mubr.f32.mxu0 0.0
      %525 = vmatmul.mubr.f32.gmra.mrb[0].mxu0 %v333
      %v526 = vpop.f32.mrb[0].mxu0
      %v527 = vadd.f32 0.0, %v526
      %v528 = vpop.f32.mrb[0].mxu0
      %529 = vmatprep.mubr.f32.mxu0 0.0
      %530 = vmatmul.mubr.f32.gmra.mrb[0].mxu0 %v336
      %v531 = vpop.f32.mrb[0].mxu0
      %v532 = vadd.f32 0.0, %v531
      %v533 = vpop.f32.mrb[0].mxu0
      %534 = vmatprep.mubr.f32.mxu0 0.0
      %535 = vmatmul.mubr.f32.gmra.mrb[0].mxu0 %v339
      %v536 = vpop.f32.mrb[0].mxu0
      %v537 = vadd.f32 0.0, %v536
      %v538 = vpop.f32.mrb[0].mxu0
      %539 = vmatprep.mubr.f32.mxu0 0.0
      %540 = vmatmul.mubr.f32.gmra.mrb[0].mxu0 %v342
      %v541 = vpop.f32.mrb[0].mxu0
      %v542 = vadd.f32 0.0, %v541
      %v543 = vpop.f32.mrb[0].mxu0
      %544 = vmatprep.mubr.f32.mxu0 0.0
      %545 = vmatmul.mubr.f32.gmra.mrb[0].mxu0 %v345
      %v546 = vpop.f32.mrb[0].mxu0
      %v547 = vadd.f32 0.0, %v546
      %v548 = vpop.f32.mrb[0].mxu0
      %549 = vmatprep.mubr.f32.mxu0 0.0
      %550 = vmatmul.mubr.f32.gmra.mrb[0].mxu0 %v348
      %v551 = vpop.f32.mrb[0].mxu0
      %v552 = vadd.f32 0.0, %v551
      %v553 = vpop.f32.mrb[0].mxu0
      %554 = vmatprep.mubr.f32.mxu0 0.0
      %555 = vmatmul.mubr.f32.gmra.mrb[0].mxu0 %v351
      %v556 = vpop.f32.mrb[0].mxu0
      %v557 = vadd.f32 0.0, %v556
      %v558 = vpop.f32.mrb[0].mxu0
      %559 = vmatprep.mubr.f32.mxu0 0.0
      %560 = vmatmul.mubr.f32.gmra.mrb[0].mxu0 %v354
      %v561 = vpop.f32.mrb[0].mxu0
      %v562 = vadd.f32 0.0, %v561
      %v563 = vpop.f32.mrb[0].mxu0
      %564 = vmatprep.mubr.f32.mxu0 0.0
      %565 = vmatmul.mubr.f32.gmra.mrb[0].mxu0 %v357
      %v566 = vpop.f32.mrb[0].mxu0
      %v567 = vadd.f32 0.0, %v566
      %v568 = vpop.f32.mrb[0].mxu0
      %569 = vmatprep.mubr.f32.mxu0 0.0
      %570 = vmatmul.mubr.f32.gmra.mrb[0].mxu0 %v360
      %v571 = vpop.f32.mrb[0].mxu0
      %v572 = vadd.f32 0.0, %v571
      %v573 = vpop.f32.mrb[0].mxu0
      %574 = vmatprep.mubr.f32.mxu0 0.0
      %575 = vmatmul.mubr.f32.gmra.mrb[0].mxu0 %v363
      %v576 = vpop.f32.mrb[0].mxu0
      %v577 = vadd.f32 0.0, %v576
      %v578 = vpop.f32.mrb[0].mxu0
      %579 = vmatprep.mubr.f32.mxu0 0.0
      %580 = vmatmul.mubr.f32.gmra.mrb[0].mxu0 %v366
      %v581 = vpop.f32.mrb[0].mxu0
      %v582 = vadd.f32 0.0, %v581
      %v583 = vpop.f32.mrb[0].mxu0
      %584 = vmatprep.mubr.f32.mxu0 0.0
      %585 = vmatmul.mubr.f32.gmra.mrb[0].mxu0 %v369
      %v586 = vpop.f32.mrb[0].mxu0
      %v587 = vadd.f32 0.0, %v586
      %v588 = vpop.f32.mrb[0].mxu0
      %589 = vmatprep.mubr.f32.mxu0 0.0
      %590 = vmatmul.mubr.f32.gmra.mrb[0].mxu0 %v372
      %v591 = vpop.f32.mrb[0].mxu0
      %v592 = vadd.f32 0.0, %v591
      %v593 = vpop.f32.mrb[0].mxu0
      %594 = vmatprep.mubr.f32.mxu0 0.0
      %595 = vmatmul.mubr.f32.gmra.mrb[0].mxu0 %v375
      %v596 = vpop.f32.mrb[0].mxu0
      %v597 = vadd.f32 0.0, %v596
      %v598 = vpop.f32.mrb[0].mxu0
      %599 = vmatprep.mubr.f32.mxu0 0.0
      %600 = vmatmul.mubr.f32.gmra.mrb[0].mxu0 %v378
      %v601 = vpop.f32.mrb[0].mxu0
      %v602 = vadd.f32 0.0, %v601
      %v603 = vpop.f32.mrb[0].mxu0
      %604 = vdwg.mxu0
      %vm605 = vcmask 130048
      %606 = vst.msk [vmem:[%s234] sm:$0xff] %vm605, %v447
      %607 = vst.msk [vmem:[%s234 + $0x8] sm:$0xff] %vm605, %v452
      %608 = vst.msk [vmem:[%s234 + $0x10] sm:$0xff] %vm605, %v457
      %609 = vst.msk [vmem:[%s234 + $0x18] sm:$0xff] %vm605, %v462
      %610 = vst.msk [vmem:[%s234 + $0x20] sm:$0xff] %vm605, %v467
      %611 = vst.msk [vmem:[%s234 + $0x28] sm:$0xff] %vm605, %v472
      %612 = vst.msk [vmem:[%s234 + $0x30] sm:$0xff] %vm605, %v477
      %613 = vst.msk [vmem:[%s234 + $0x38] sm:$0xff] %vm605, %v482
      %614 = vst.msk [vmem:[%s234 + $0x40] sm:$0xff] %vm605, %v487
      %615 = vst.msk [vmem:[%s234 + $0x48] sm:$0xff] %vm605, %v492
      %616 = vst.msk [vmem:[%s234 + $0x50] sm:$0xff] %vm605, %v497
      %617 = vst.msk [vmem:[%s234 + $0x58] sm:$0xff] %vm605, %v502
      %618 = vst.msk [vmem:[%s234 + $0x60] sm:$0xff] %vm605, %v507
      %619 = vst.msk [vmem:[%s234 + $0x68] sm:$0xff] %vm605, %v512
      %620 = vst.msk [vmem:[%s234 + $0x70] sm:$0xff] %vm605, %v517
      %621 = vst.msk [vmem:[%s234 + $0x78] sm:$0xff] %vm605, %v522
      %622 = vst.msk [vmem:[%s234 + $0x80] sm:$0xff] %vm605, %v527
      %623 = vst.msk [vmem:[%s234 + $0x88] sm:$0xff] %vm605, %v532
      %624 = vst.msk [vmem:[%s234 + $0x90] sm:$0xff] %vm605, %v537
      %625 = vst.msk [vmem:[%s234 + $0x98] sm:$0xff] %vm605, %v542
      %626 = vst.msk [vmem:[%s234 + $0xa0] sm:$0xff] %vm605, %v547
      %627 = vst.msk [vmem:[%s234 + $0xa8] sm:$0xff] %vm605, %v552
      %628 = vst.msk [vmem:[%s234 + $0xb0] sm:$0xff] %vm605, %v557
      %629 = vst.msk [vmem:[%s234 + $0xb8] sm:$0xff] %vm605, %v562
      %630 = vst.msk [vmem:[%s234 + $0xc0] sm:$0xff] %vm605, %v567
      %631 = vst.msk [vmem:[%s234 + $0xc8] sm:$0xff] %vm605, %v572
      %632 = vst.msk [vmem:[%s234 + $0xd0] sm:$0xff] %vm605, %v577
      %633 = vst.msk [vmem:[%s234 + $0xd8] sm:$0xff] %vm605, %v582
      %634 = vst.msk [vmem:[%s234 + $0xe0] sm:$0xff] %vm605, %v587
      %635 = vst.msk [vmem:[%s234 + $0xe8] sm:$0xff] %vm605, %v592
      %636 = vst.msk [vmem:[%s234 + $0xf0] sm:$0xff] %vm605, %v597
      %637 = vst.msk [vmem:[%s234 + $0xf8] sm:$0xff] %vm605, %v602
      %v638 = vld [vmem:[%s2] sm:$0x1]
      %v640 = vlaneseq
      %v641 = vshrl.u32 %v640, 7
      %v642 = vsub.s32 0, %v641
      %v643 = vrot.slane %v638, %v642
      %v645 = vmul.f32 %v447, %v643
      %v646 = vmul.f32 %v452, %v643
      %v647 = vmul.f32 %v457, %v643
      %v648 = vmul.f32 %v462, %v643
      %v649 = vmul.f32 %v467, %v643
      %v650 = vmul.f32 %v472, %v643
      %v651 = vmul.f32 %v477, %v643
      %v652 = vmul.f32 %v482, %v643
      %v653 = vmul.f32 %v487, %v643
      %v654 = vmul.f32 %v492, %v643
      %v655 = vmul.f32 %v497, %v643
      %v656 = vmul.f32 %v502, %v643
      %v657 = vmul.f32 %v507, %v643
      %v658 = vmul.f32 %v512, %v643
      %v659 = vmul.f32 %v517, %v643
      %v660 = vmul.f32 %v522, %v643
      %v661 = vmul.f32 %v527, %v643
      %v662 = vmul.f32 %v532, %v643
      %v663 = vmul.f32 %v537, %v643
      %v664 = vmul.f32 %v542, %v643
      %v665 = vmul.f32 %v547, %v643
      %v666 = vmul.f32 %v552, %v643
      %v667 = vmul.f32 %v557, %v643
      %v668 = vmul.f32 %v562, %v643
      %v669 = vmul.f32 %v567, %v643
      %v670 = vmul.f32 %v572, %v643
      %v671 = vmul.f32 %v577, %v643
      %v672 = vmul.f32 %v582, %v643
      %v673 = vmul.f32 %v587, %v643
      %v674 = vmul.f32 %v592, %v643
      %v675 = vmul.f32 %v597, %v643
      %v676 = vmul.f32 %v602, %v643
      %v677 = vld [vmem:[%s3] sm:$0x1]
      %v679 = vlaneseq
      %v680 = vshrl.u32 %v679, 7
      %v681 = vsub.s32 0, %v680
      %v682 = vrot.slane %v677, %v681
      %v684 = vadd.f32 %v645, %v682
      %v685 = vadd.f32 %v646, %v682
      %v686 = vadd.f32 %v647, %v682
      %v687 = vadd.f32 %v648, %v682
      %v688 = vadd.f32 %v649, %v682
      %v689 = vadd.f32 %v650, %v682
      %v690 = vadd.f32 %v651, %v682
      %v691 = vadd.f32 %v652, %v682
      %v692 = vadd.f32 %v653, %v682
      %v693 = vadd.f32 %v654, %v682
      %v694 = vadd.f32 %v655, %v682
      %v695 = vadd.f32 %v656, %v682
      %v696 = vadd.f32 %v657, %v682
      %v697 = vadd.f32 %v658, %v682
      %v698 = vadd.f32 %v659, %v682
      %v699 = vadd.f32 %v660, %v682
      %v700 = vadd.f32 %v661, %v682
      %v701 = vadd.f32 %v662, %v682
      %v702 = vadd.f32 %v663, %v682
      %v703 = vadd.f32 %v664, %v682
      %v704 = vadd.f32 %v665, %v682
      %v705 = vadd.f32 %v666, %v682
      %v706 = vadd.f32 %v667, %v682
      %v707 = vadd.f32 %v668, %v682
      %v708 = vadd.f32 %v669, %v682
      %v709 = vadd.f32 %v670, %v682
      %v710 = vadd.f32 %v671, %v682
      %v711 = vadd.f32 %v672, %v682
      %v712 = vadd.f32 %v673, %v682
      %v713 = vadd.f32 %v674, %v682
      %v714 = vadd.f32 %v675, %v682
      %v715 = vadd.f32 %v676, %v682
      %v716 = vmax.f32 %v684, 0.0
      %v717 = vmax.f32 %v685, 0.0
      %v718 = vmax.f32 %v686, 0.0
      %v719 = vmax.f32 %v687, 0.0
      %v720 = vmax.f32 %v688, 0.0
      %v721 = vmax.f32 %v689, 0.0
      %v722 = vmax.f32 %v690, 0.0
      %v723 = vmax.f32 %v691, 0.0
      %v724 = vmax.f32 %v692, 0.0
      %v725 = vmax.f32 %v693, 0.0
      %v726 = vmax.f32 %v694, 0.0
      %v727 = vmax.f32 %v695, 0.0
      %v728 = vmax.f32 %v696, 0.0
      %v729 = vmax.f32 %v697, 0.0
      %v730 = vmax.f32 %v698, 0.0
      %v731 = vmax.f32 %v699, 0.0
      %v732 = vmax.f32 %v700, 0.0
      %v733 = vmax.f32 %v701, 0.0
      %v734 = vmax.f32 %v702, 0.0
      %v735 = vmax.f32 %v703, 0.0
      %v736 = vmax.f32 %v704, 0.0
      %v737 = vmax.f32 %v705, 0.0
      %v738 = vmax.f32 %v706, 0.0
      %v739 = vmax.f32 %v707, 0.0
      %v740 = vmax.f32 %v708, 0.0
      %v741 = vmax.f32 %v709, 0.0
      %v742 = vmax.f32 %v710, 0.0
      %v743 = vmax.f32 %v711, 0.0
      %v744 = vmax.f32 %v712, 0.0
      %v745 = vmax.f32 %v713, 0.0
      %v746 = vmax.f32 %v714, 0.0
      %v747 = vmax.f32 %v715, 0.0
      %748 = vst.msk [vmem:[%s240] sm:$0xff] %vm605, %v716
      %749 = vst.msk [vmem:[%s240 + $0x8] sm:$0xff] %vm605, %v717
      %750 = vst.msk [vmem:[%s240 + $0x10] sm:$0xff] %vm605, %v718
      %751 = vst.msk [vmem:[%s240 + $0x18] sm:$0xff] %vm605, %v719
      %752 = vst.msk [vmem:[%s240 + $0x20] sm:$0xff] %vm605, %v720
      %753 = vst.msk [vmem:[%s240 + $0x28] sm:$0xff] %vm605, %v721
      %754 = vst.msk [vmem:[%s240 + $0x30] sm:$0xff] %vm605, %v722
      %755 = vst.msk [vmem:[%s240 + $0x38] sm:$0xff] %vm605, %v723
      %756 = vst.msk [vmem:[%s240 + $0x40] sm:$0xff] %vm605, %v724
      %757 = vst.msk [vmem:[%s240 + $0x48] sm:$0xff] %vm605, %v725
      %758 = vst.msk [vmem:[%s240 + $0x50] sm:$0xff] %vm605, %v726
      %759 = vst.msk [vmem:[%s240 + $0x58] sm:$0xff] %vm605, %v727
      %760 = vst.msk [vmem:[%s240 + $0x60] sm:$0xff] %vm605, %v728
      %761 = vst.msk [vmem:[%s240 + $0x68] sm:$0xff] %vm605, %v729
      %762 = vst.msk [vmem:[%s240 + $0x70] sm:$0xff] %vm605, %v730
      %763 = vst.msk [vmem:[%s240 + $0x78] sm:$0xff] %vm605, %v731
      %764 = vst.msk [vmem:[%s240 + $0x80] sm:$0xff] %vm605, %v732
      %765 = vst.msk [vmem:[%s240 + $0x88] sm:$0xff] %vm605, %v733
      %766 = vst.msk [vmem:[%s240 + $0x90] sm:$0xff] %vm605, %v734
      %767 = vst.msk [vmem:[%s240 + $0x98] sm:$0xff] %vm605, %v735
      %768 = vst.msk [vmem:[%s240 + $0xa0] sm:$0xff] %vm605, %v736
      %769 = vst.msk [vmem:[%s240 + $0xa8] sm:$0xff] %vm605, %v737
      %770 = vst.msk [vmem:[%s240 + $0xb0] sm:$0xff] %vm605, %v738
      %771 = vst.msk [vmem:[%s240 + $0xb8] sm:$0xff] %vm605, %v739
      %772 = vst.msk [vmem:[%s240 + $0xc0] sm:$0xff] %vm605, %v740
      %773 = vst.msk [vmem:[%s240 + $0xc8] sm:$0xff] %vm605, %v741
      %774 = vst.msk [vmem:[%s240 + $0xd0] sm:$0xff] %vm605, %v742
      %775 = vst.msk [vmem:[%s240 + $0xd8] sm:$0xff] %vm605, %v743
      %776 = vst.msk [vmem:[%s240 + $0xe0] sm:$0xff] %vm605, %v744
      %777 = vst.msk [vmem:[%s240 + $0xe8] sm:$0xff] %vm605, %v745
      %778 = vst.msk [vmem:[%s240 + $0xf0] sm:$0xff] %vm605, %v746
      %779 = vst.msk [vmem:[%s240 + $0xf8] sm:$0xff] %vm605, %v747
      %s780 = smul.u32 32, %s17
      %p781 = scmp.lt.s32.totalorder %s780, 63
      %s782 = scalar_select %p781, %s780, 63
      %s783 = smul.addr %s782, 8
      %s784 = scalar_lea.vmem %s4, %s783
      %s785 = smul.u32 32, %s17
      %p786 = scmp.lt.s32.totalorder %s785, 63
      %s787 = scalar_select %p786, %s785, 63
      %s788 = smul.addr %s787, 8
      %s789 = scalar_lea.vmem %s5, %s788
      // Predicated region
      $region37: #{_lambda_.8} parent=35 // pred_check
        %p790 = pneg %p124
      $region38: #{_lambda_.8} parent=35 // pred_check_branch
        %792 = sbr.rel (%p790) target = $region40
      $region39: #{_lambda_.8} parent=35 // pred_region
        %s793 = smul.u32 32, %s17
      $region40: #{_lambda_.8} parent=35 // pred_fallthru
        _
      // Predicated region
      $region41: #{_lambda_.8} parent=35 // pred_check
        %p794 = pneg %p150
      $region42: #{_lambda_.8} parent=35 // pred_check_branch
        %796 = sbr.rel (%p794) target = $region44
      $region43: #{_lambda_.8} parent=35 // pred_region
        %s797 = smul.u32 32, %s17
      $region44: #{_lambda_.8} parent=35 // pred_fallthru
        _
    $region36: #{_lambda_.8} parent=5 // pred_fallthru
      _
    %p798 = scmp.le.s32.totalorder 2, %s12
    // Predicated region
    $region45: #{_lambda_.8} parent=5 // pred_check
      %p799 = pneg %p798
    $region46: #{_lambda_.8} parent=5 // pred_check_branch
      %801 = sbr.rel (%p799) target = $region48
    $region47: #{_lambda_.8} parent=5 // pred_region
      %s802 = ssub.s32 %s12, 2
      // Predicated region
      $region49: #{_lambda_.8} parent=47 // pred_check
        %p803 = pneg %p130
      $region50: #{_lambda_.8} parent=47 // pred_check_branch
        %805 = sbr.rel (%p803) target = $region52
      $region51: #{_lambda_.8} parent=47 // pred_region
        %s806 = smul.u32 32, %s18
        %p807 = scmp.lt.s32.totalorder %s806, 63
        %s808 = scalar_select %p807, %s806, 63
        %s809 = smul.addr %s808, 8
        %s810 = scalar_lea.vmem %s4, %s809
      $region52: #{_lambda_.8} parent=47 // pred_fallthru
        _
      // Predicated region
      $region53: #{_lambda_.8} parent=47 // pred_check
        %p811 = pneg %p156
      $region54: #{_lambda_.8} parent=47 // pred_check_branch
        %813 = sbr.rel (%p811) target = $region56
      $region55: #{_lambda_.8} parent=47 // pred_region
        %s814 = smul.u32 32, %s18
        %p815 = scmp.lt.s32.totalorder %s814, 63
        %s816 = scalar_select %p815, %s814, 63
        %s817 = smul.addr %s816, 8
        %s818 = scalar_lea.vmem %s5, %s817
      $region56: #{_lambda_.8} parent=47 // pred_fallthru
        _
    $region48: #{_lambda_.8} parent=5 // pred_fallthru
      _
  $region6: #{_lambda_.8} parent=0 // loop_footer
    %s16 = sadd.s32 1, %s12
  $region7: #{_lambda_.8} parent=0 // loop_footer_branch
    %11 = sbr.rel target = $region3
  $region8: #{_lambda_.8} parent=0 // loop_exit
    _

// kernel: _lambda_.9
$region0: #{_lambda_.9}
  #allocation0 [shape = 'u32[]', space=smem, size = 0x4, offset = 0x4, fixed_abs, tag = 'smem constant byte address 0x4 - core index']
  #allocation1 [shape = 'u32[144,128]{1,0:T(1,128)}', space=vmem, size = 0x12000, scoped, tag = 'internal scratch']
  %s0 = inlined_call_operand.vmem [shape: f32[512,144], index: 0, kind: input, shape index: {}]
  %s1 = inlined_call_operand.vmem [shape: f32[144,16], index: 1, kind: input, shape index: {}]
  %s2 = inlined_call_operand.vmem [shape: f32[1,16], index: 2, kind: input, shape index: {}]
  %s3 = inlined_call_operand.vmem [shape: f32[1,16], index: 3, kind: input, shape index: {}]
  %s4 = inlined_call_operand.vmem [shape: f32[512,16], index: 4, kind: output, shape index: {}]
  %s5 = sld [smem:[#allocation0]]
  $region49: #{_lambda_.9} parent=0
    _
  %s7 = ssub.s32 1, %s5
  %s8 = scalar_select 0, %s7, %s5
  loop: start=0, step=1, limit=4
  $region2: #{_lambda_.9} parent=0 // loop_pre_header
    _
  $region3: #{_lambda_.9} parent=0 // loop_header
    %s10 = sphi 0, %s14
    %p11 = scmp.ge.s32.totalorder %s10, 4
    %s20 = sphi 0, %s22
    %s23 = sphi 0, %s20
    %s24 = sphi 0, %s23
    %s40 = sphi 0, %s24
    %s44 = sphi 0, %s44
    %s46 = sphi 0, %s44
    %s47 = sphi 0, %s46
    %s61 = sphi 0, %s47
    %s65 = sphi 0, %s65
    %s67 = sphi 0, %s65
    %s68 = sphi 0, %s67
    %s82 = sphi 0, %s68
    %s86 = sphi 0, %s86
    %s88 = sphi 0, %s86
    %s89 = sphi 0, %s88
    %s103 = sphi 0, %s89
    %s109 = sphi 0, %s111
    %s112 = sphi 0, %s109
    %s113 = sphi 0, %s112
    %s129 = sphi 0, %s113
  $region4: #{_lambda_.9} parent=0 // loop_header_branch
    %13 = sbr.rel (%p11) target = $region8
  $region5: #{_lambda_.9} parent=0 // loop_body
    %s15 = ssub.s32 %s10, 1
    %s16 = ssub.s32 %s10, 2
    %s17 = sadd.s32 %s10, 1
    %s18 = ssub.s32 %s10, %s17
    %p19 = scmp.eq.s32.totalorder %s18, 0
    %s21 = sadd.s32 %s20, 1
    %s22 = scalar_select %p19, %s20, %s21
    %p25 = pneg %p19
    %p26 = scmp.eq.s32.totalorder %s10, 1
    %p27 = por %p25, %p26
    %p28 = scmp.ne.s32.totalorder %s20, %s23
    %p29 = scmp.eq.s32.totalorder %s10, 0
    %p30 = por %p28, %p29
    %p31 = scmp.ne.s32.totalorder %s20, %s23
    %p32 = scmp.eq.s32.totalorder %s15, 1
    %p33 = por %p31, %p32
    %p34 = scmp.ne.s32.totalorder %s23, %s24
    %p35 = scmp.eq.s32.totalorder %s15, 0
    %p36 = por %p34, %p35
    %p37 = scmp.ne.s32.totalorder %s23, %s24
    %p38 = scmp.eq.s32.totalorder %s16, 1
    %p39 = por %p37, %p38
    %p41 = scmp.ne.s32.totalorder %s24, %s40
    %p42 = scmp.eq.s32.totalorder %s16, 0
    %p43 = por %p41, %p42
    %s45 = sadd.s32 %s44, 1
    %p48 = scmp.eq.s32.totalorder %s10, 1
    %p49 = scmp.ne.s32.totalorder %s44, %s46
    %p50 = scmp.eq.s32.totalorder %s10, 0
    %p51 = por %p49, %p50
    %p52 = scmp.ne.s32.totalorder %s44, %s46
    %p53 = scmp.eq.s32.totalorder %s15, 1
    %p54 = por %p52, %p53
    %p55 = scmp.ne.s32.totalorder %s46, %s47
    %p56 = scmp.eq.s32.totalorder %s15, 0
    %p57 = por %p55, %p56
    %p58 = scmp.ne.s32.totalorder %s46, %s47
    %p59 = scmp.eq.s32.totalorder %s16, 1
    %p60 = por %p58, %p59
    %p62 = scmp.ne.s32.totalorder %s47, %s61
    %p63 = scmp.eq.s32.totalorder %s16, 0
    %p64 = por %p62, %p63
    %s66 = sadd.s32 %s65, 1
    %p69 = scmp.eq.s32.totalorder %s10, 1
    %p70 = scmp.ne.s32.totalorder %s65, %s67
    %p71 = scmp.eq.s32.totalorder %s10, 0
    %p72 = por %p70, %p71
    %p73 = scmp.ne.s32.totalorder %s65, %s67
    %p74 = scmp.eq.s32.totalorder %s15, 1
    %p75 = por %p73, %p74
    %p76 = scmp.ne.s32.totalorder %s67, %s68
    %p77 = scmp.eq.s32.totalorder %s15, 0
    %p78 = por %p76, %p77
    %p79 = scmp.ne.s32.totalorder %s67, %s68
    %p80 = scmp.eq.s32.totalorder %s16, 1
    %p81 = por %p79, %p80
    %p83 = scmp.ne.s32.totalorder %s68, %s82
    %p84 = scmp.eq.s32.totalorder %s16, 0
    %p85 = por %p83, %p84
    %s87 = sadd.s32 %s86, 1
    %p90 = scmp.eq.s32.totalorder %s10, 1
    %p91 = scmp.ne.s32.totalorder %s86, %s88
    %p92 = scmp.eq.s32.totalorder %s10, 0
    %p93 = por %p91, %p92
    %p94 = scmp.ne.s32.totalorder %s86, %s88
    %p95 = scmp.eq.s32.totalorder %s15, 1
    %p96 = por %p94, %p95
    %p97 = scmp.ne.s32.totalorder %s88, %s89
    %p98 = scmp.eq.s32.totalorder %s15, 0
    %p99 = por %p97, %p98
    %p100 = scmp.ne.s32.totalorder %s88, %s89
    %p101 = scmp.eq.s32.totalorder %s16, 1
    %p102 = por %p100, %p101
    %p104 = scmp.ne.s32.totalorder %s89, %s103
    %p105 = scmp.eq.s32.totalorder %s16, 0
    %p106 = por %p104, %p105
    %s107 = ssub.s32 %s10, %s17
    %p108 = scmp.eq.s32.totalorder %s107, 0
    %s110 = sadd.s32 %s109, 1
    %s111 = scalar_select %p108, %s109, %s110
    %p114 = pneg %p108
    %p115 = scmp.eq.s32.totalorder %s10, 1
    %p116 = por %p114, %p115
    %p117 = scmp.ne.s32.totalorder %s109, %s112
    %p118 = scmp.eq.s32.totalorder %s10, 0
    %p119 = por %p117, %p118
    %p120 = scmp.ne.s32.totalorder %s109, %s112
    %p121 = scmp.eq.s32.totalorder %s15, 1
    %p122 = por %p120, %p121
    %p123 = scmp.ne.s32.totalorder %s112, %s113
    %p124 = scmp.eq.s32.totalorder %s15, 0
    %p125 = por %p123, %p124
    %p126 = scmp.ne.s32.totalorder %s112, %s113
    %p127 = scmp.eq.s32.totalorder %s16, 1
    %p128 = por %p126, %p127
    %p130 = scmp.ne.s32.totalorder %s113, %s129
    %p131 = scmp.eq.s32.totalorder %s16, 0
    %p132 = por %p130, %p131
    %p133 = scmp.le.s32.totalorder 1, %s10
    %p134 = scmp.lt.s32.totalorder %s10, 3
    %p135 = pnand %p133, %p134
    %p136 = pneg %p135
    // Predicated region
    $region9: #{_lambda_.9} parent=5 // pred_check
      _
    $region10: #{_lambda_.9} parent=5 // pred_check_branch
      %138 = sbr.rel (%p135) target = $region12
    $region11: #{_lambda_.9} parent=5 // pred_region
      %s139 = ssub.s32 %s10, 1
      // Predicated region
      $region13: #{_lambda_.9} parent=11 // pred_check
        %p140 = pneg %p57
      $region14: #{_lambda_.9} parent=11 // pred_check_branch
        %142 = sbr.rel (%p140) target = $region16
      $region15: #{_lambda_.9} parent=11 // pred_region
        _
      $region16: #{_lambda_.9} parent=11 // pred_fallthru
        _
      // Predicated region
      $region17: #{_lambda_.9} parent=11 // pred_check
        %p143 = pneg %p78
      $region18: #{_lambda_.9} parent=11 // pred_check_branch
        %145 = sbr.rel (%p143) target = $region20
      $region19: #{_lambda_.9} parent=11 // pred_region
        _
      $region20: #{_lambda_.9} parent=11 // pred_fallthru
        _
      // Predicated region
      $region21: #{_lambda_.9} parent=11 // pred_check
        %p146 = pneg %p99
      $region22: #{_lambda_.9} parent=11 // pred_check_branch
        %148 = sbr.rel (%p146) target = $region24
      $region23: #{_lambda_.9} parent=11 // pred_region
        _
      $region24: #{_lambda_.9} parent=11 // pred_fallthru
        _
    $region12: #{_lambda_.9} parent=5 // pred_fallthru
      _
    %p149 = scmp.lt.s32.totalorder %s10, 2
    // Predicated region
    $region25: #{_lambda_.9} parent=5 // pred_check
      %p150 = pneg %p149
    $region26: #{_lambda_.9} parent=5 // pred_check_branch
      %152 = sbr.rel (%p150) target = $region28
    $region27: #{_lambda_.9} parent=5 // pred_region
      // Predicated region
      $region29: #{_lambda_.9} parent=27 // pred_check
        %p153 = pneg %p30
      $region30: #{_lambda_.9} parent=27 // pred_check_branch
        %155 = sbr.rel (%p153) target = $region32
      $region31: #{_lambda_.9} parent=27 // pred_region
        %s156 = smul.u32 32, %s10
        %p157 = scmp.lt.s32.totalorder %s156, 63
        %s158 = scalar_select %p157, %s156, 63
        %s159 = smul.addr %s158, 2
        %s160 = smul.addr %s159, 8
        %s161 = scalar_lea.vmem %s0, %s160
        %s162 = smul.u32 32, %s10
      $region32: #{_lambda_.9} parent=27 // pred_fallthru
        _
    $region28: #{_lambda_.9} parent=5 // pred_fallthru
      _
    %p163 = scmp.le.s32.totalorder 1, %s10
    %p164 = scmp.lt.s32.totalorder %s10, 3
    %p165 = pnand %p163, %p164
    %p166 = pneg %p165
    // Predicated region
    $region33: #{_lambda_.9} parent=5 // pred_check
      _
    $region34: #{_lambda_.9} parent=5 // pred_check_branch
      %168 = sbr.rel (%p165) target = $region36
    $region35: #{_lambda_.9} parent=5 // pred_region
      %s169 = ssub.s32 %s10, 1
      %s170 = smul.u32 32, %s15
      %p171 = scmp.lt.s32.totalorder %s170, 63
      %s172 = scalar_select %p171, %s170, 63
      %s173 = smul.addr %s172, 2
      %s174 = smul.addr %s173, 8
      %s175 = scalar_lea.vmem %s0, %s174
      %p176 = pneg %p36
      %p177 = pneg %p33
      %p178 = pneg %p57
      %p179 = pneg %p54
      %p180 = pneg %p78
      %p181 = pneg %p75
      %p182 = pneg %p99
      %p183 = pneg %p96
      %p184 = pneg %p125
      %p185 = pneg %p122
      %s186 = smul.u32 32, %s15
      %p187 = scmp.lt.s32.totalorder %s186, 63
      %s188 = scalar_select %p187, %s186, 63
      %s189 = smul.addr %s188, 8
      %s190 = scalar_lea.vmem %s4, %s189
      %s191 = smul.u32 32, %s15
      %p192 = scmp.lt.s32.totalorder %s191, 63
      %s193 = scalar_select %p192, %s191, 63
      %s194 = smul.addr %s193, 2
      %s195 = smul.addr %s194, 8
      %s196 = scalar_lea.vmem %s0, %s195
      %s197 = smul.u32 32, %s15
      %s198 = smul.u32 32, %s15
      %p199 = scmp.lt.s32.totalorder %s198, 63
      %s200 = scalar_select %p199, %s198, 63
      %s201 = smul.addr %s200, 8
      %s202 = scalar_lea.vmem %s4, %s201
      %s203 = smul.u32 32, %s15
      %v204 = vld [vmem:[%s196] sm:$0xff]
      %v205 = vld [vmem:[%s196 + $0x8] sm:$0xff]
      %v206 = vld [vmem:[%s196 + $0x10] sm:$0xff]
      %v207 = vld [vmem:[%s196 + $0x18] sm:$0xff]
      %v208 = vld [vmem:[%s196 + $0x20] sm:$0xff]
      %v209 = vld [vmem:[%s196 + $0x28] sm:$0xff]
      %v210 = vld [vmem:[%s196 + $0x30] sm:$0xff]
      %v211 = vld [vmem:[%s196 + $0x38] sm:$0xff]
      %v212 = vld [vmem:[%s196 + $0x40] sm:$0xff]
      %v213 = vld [vmem:[%s196 + $0x48] sm:$0xff]
      %v214 = vld [vmem:[%s196 + $0x50] sm:$0xff]
      %v215 = vld [vmem:[%s196 + $0x58] sm:$0xff]
      %v216 = vld [vmem:[%s196 + $0x60] sm:$0xff]
      %v217 = vld [vmem:[%s196 + $0x68] sm:$0xff]
      %v218 = vld [vmem:[%s196 + $0x70] sm:$0xff]
      %v219 = vld [vmem:[%s196 + $0x78] sm:$0xff]
      %v220 = vld [vmem:[%s196 + $0x80] sm:$0xff]
      %v221 = vld [vmem:[%s196 + $0x88] sm:$0xff]
      %v222 = vld [vmem:[%s196 + $0x90] sm:$0xff]
      %v223 = vld [vmem:[%s196 + $0x98] sm:$0xff]
      %v224 = vld [vmem:[%s196 + $0xa0] sm:$0xff]
      %v225 = vld [vmem:[%s196 + $0xa8] sm:$0xff]
      %v226 = vld [vmem:[%s196 + $0xb0] sm:$0xff]
      %v227 = vld [vmem:[%s196 + $0xb8] sm:$0xff]
      %v228 = vld [vmem:[%s196 + $0xc0] sm:$0xff]
      %v229 = vld [vmem:[%s196 + $0xc8] sm:$0xff]
      %v230 = vld [vmem:[%s196 + $0xd0] sm:$0xff]
      %v231 = vld [vmem:[%s196 + $0xd8] sm:$0xff]
      %v232 = vld [vmem:[%s196 + $0xe0] sm:$0xff]
      %v233 = vld [vmem:[%s196 + $0xe8] sm:$0xff]
      %v234 = vld [vmem:[%s196 + $0xf0] sm:$0xff]
      %v235 = vld [vmem:[%s196 + $0xf8] sm:$0xff]
      %v236 = vld [vmem:[%s196 + $0x100] sm:$0xff]
      %v237 = vld [vmem:[%s196 + $0x108] sm:$0xff]
      %v238 = vld [vmem:[%s196 + $0x110] sm:$0xff]
      %v239 = vld [vmem:[%s196 + $0x118] sm:$0xff]
      %v240 = vld [vmem:[%s196 + $0x120] sm:$0xff]
      %v241 = vld [vmem:[%s196 + $0x128] sm:$0xff]
      %v242 = vld [vmem:[%s196 + $0x130] sm:$0xff]
      %v243 = vld [vmem:[%s196 + $0x138] sm:$0xff]
      %v244 = vld [vmem:[%s196 + $0x140] sm:$0xff]
      %v245 = vld [vmem:[%s196 + $0x148] sm:$0xff]
      %v246 = vld [vmem:[%s196 + $0x150] sm:$0xff]
      %v247 = vld [vmem:[%s196 + $0x158] sm:$0xff]
      %v248 = vld [vmem:[%s196 + $0x160] sm:$0xff]
      %v249 = vld [vmem:[%s196 + $0x168] sm:$0xff]
      %v250 = vld [vmem:[%s196 + $0x170] sm:$0xff]
      %v251 = vld [vmem:[%s196 + $0x178] sm:$0xff]
      %v252 = vld [vmem:[%s196 + $0x180] sm:$0xff]
      %v253 = vld [vmem:[%s196 + $0x188] sm:$0xff]
      %v254 = vld [vmem:[%s196 + $0x190] sm:$0xff]
      %v255 = vld [vmem:[%s196 + $0x198] sm:$0xff]
      %v256 = vld [vmem:[%s196 + $0x1a0] sm:$0xff]
      %v257 = vld [vmem:[%s196 + $0x1a8] sm:$0xff]
      %v258 = vld [vmem:[%s196 + $0x1b0] sm:$0xff]
      %v259 = vld [vmem:[%s196 + $0x1b8] sm:$0xff]
      %v260 = vld [vmem:[%s196 + $0x1c0] sm:$0xff]
      %v261 = vld [vmem:[%s196 + $0x1c8] sm:$0xff]
      %v262 = vld [vmem:[%s196 + $0x1d0] sm:$0xff]
      %v263 = vld [vmem:[%s196 + $0x1d8] sm:$0xff]
      %v264 = vld [vmem:[%s196 + $0x1e0] sm:$0xff]
      %v265 = vld [vmem:[%s196 + $0x1e8] sm:$0xff]
      %v266 = vld [vmem:[%s196 + $0x1f0] sm:$0xff]
      %v267 = vld [vmem:[%s196 + $0x1f8] sm:$0xff]
      %v268 = vld [vmem:[%s1] sm:$0xff]
      %v269 = vld [vmem:[%s1 + $0x8] sm:$0xff]
      %v270 = vld [vmem:[%s1 + $0x10] sm:$0xff]
      %v271 = vld [vmem:[%s1 + $0x18] sm:$0xff]
      %v272 = vld [vmem:[%s1 + $0x20] sm:$0xff]
      %v273 = vld [vmem:[%s1 + $0x28] sm:$0xff]
      %v274 = vld [vmem:[%s1 + $0x30] sm:$0xff]
      %v275 = vld [vmem:[%s1 + $0x38] sm:$0xff]
      %v276 = vld [vmem:[%s1 + $0x40] sm:$0xff]
      %v277 = vld [vmem:[%s1 + $0x48] sm:$0xff]
      %v278 = vld [vmem:[%s1 + $0x50] sm:$0xff]
      %v279 = vld [vmem:[%s1 + $0x58] sm:$0xff]
      %v280 = vld [vmem:[%s1 + $0x60] sm:$0xff]
      %v281 = vld [vmem:[%s1 + $0x68] sm:$0xff]
      %v282 = vld [vmem:[%s1 + $0x70] sm:$0xff]
      %v283 = vld [vmem:[%s1 + $0x78] sm:$0xff]
      %v284 = vld [vmem:[%s1 + $0x80] sm:$0xff]
      %v285 = vld [vmem:[%s1 + $0x88] sm:$0xff]
      %vm286 = vcmask 130048
      %v288 = vsel %vm286, %v205, 0
      %v291 = vsel %vm286, %v207, 0
      %v294 = vsel %vm286, %v209, 0
      %v297 = vsel %vm286, %v211, 0
      %v300 = vsel %vm286, %v213, 0
      %v303 = vsel %vm286, %v215, 0
      %v306 = vsel %vm286, %v217, 0
      %v309 = vsel %vm286, %v219, 0
      %v312 = vsel %vm286, %v221, 0
      %v315 = vsel %vm286, %v223, 0
      %v318 = vsel %vm286, %v225, 0
      %v321 = vsel %vm286, %v227, 0
      %v324 = vsel %vm286, %v229, 0
      %v327 = vsel %vm286, %v231, 0
      %v330 = vsel %vm286, %v233, 0
      %v333 = vsel %vm286, %v235, 0
      %v336 = vsel %vm286, %v237, 0
      %v339 = vsel %vm286, %v239, 0
      %v342 = vsel %vm286, %v241, 0
      %v345 = vsel %vm286, %v243, 0
      %v348 = vsel %vm286, %v245, 0
      %v351 = vsel %vm286, %v247, 0
      %v354 = vsel %vm286, %v249, 0
      %v357 = vsel %vm286, %v251, 0
      %v360 = vsel %vm286, %v253, 0
      %v363 = vsel %vm286, %v255, 0
      %v366 = vsel %vm286, %v257, 0
      %v369 = vsel %vm286, %v259, 0
      %v372 = vsel %vm286, %v261, 0
      %v375 = vsel %vm286, %v263, 0
      %v378 = vsel %vm286, %v265, 0
      %v381 = vsel %vm286, %v267, 0
      %383 = vmatprep.subr.mxu0 0.0
      %384 = vmatpush1.msra.mxu0 %v268
      %385 = vmatprep.subr.mxu0 0.0
      %386 = vmatpush1.msra.mxu0 %v269
      %387 = vmatprep.subr.mxu0 0.0
      %388 = vmatpush1.msra.mxu0 %v270
      %389 = vmatprep.subr.mxu0 0.0
      %390 = vmatpush1.msra.mxu0 %v271
      %391 = vmatprep.subr.mxu0 0.0
      %392 = vmatpush1.msra.mxu0 %v272
      %393 = vmatprep.subr.mxu0 0.0
      %394 = vmatpush1.msra.mxu0 %v273
      %395 = vmatprep.subr.mxu0 0.0
      %396 = vmatpush1.msra.mxu0 %v274
      %397 = vmatprep.subr.mxu0 0.0
      %398 = vmatpush1.msra.mxu0 %v275
      %399 = vmatprep.subr.mxu0 0.0
      %400 = vmatpush1.msra.mxu0 %v276
      %401 = vmatprep.subr.mxu0 0.0
      %402 = vmatpush1.msra.mxu0 %v277
      %403 = vmatprep.subr.mxu0 0.0
      %404 = vmatpush1.msra.mxu0 %v278
      %405 = vmatprep.subr.mxu0 0.0
      %406 = vmatpush1.msra.mxu0 %v279
      %407 = vmatprep.subr.mxu0 0.0
      %408 = vmatpush1.msra.mxu0 %v280
      %409 = vmatprep.subr.mxu0 0.0
      %410 = vmatpush1.msra.mxu0 %v281
      %411 = vmatprep.subr.mxu0 0.0
      %412 = vmatpush1.msra.mxu0 %v282
      %413 = vmatprep.subr.mxu0 0.0
      %414 = vmatpush1.msra.mxu0 %v283
      %415 = vmatprep.subr.mxu0 0.0
      %416 = vmatpush1.msra.mxu0 %v284
      %417 = vmatprep.subr.mxu0 0.0
      %418 = vmatpush1.msra.mxu0 %v285
      %419 = vmatprep.subr.mxu0 0.0
      %420 = vmatpush1.msra.mxu0 0.0
      %421 = vmatprep.subr.mxu0 0.0
      %422 = vmatpush1.msra.mxu0 0.0
      %423 = vmatprep.subr.mxu0 0.0
      %424 = vmatpush1.msra.mxu0 0.0
      %425 = vmatprep.subr.mxu0 0.0
      %426 = vmatpush1.msra.mxu0 0.0
      %427 = vmatprep.subr.mxu0 0.0
      %428 = vmatpush1.msra.mxu0 0.0
      %429 = vmatprep.subr.mxu0 0.0
      %430 = vmatpush1.msra.mxu0 0.0
      %431 = vmatprep.subr.mxu0 0.0
      %432 = vmatpush1.msra.mxu0 0.0
      %433 = vmatprep.subr.mxu0 0.0
      %434 = vmatpush1.msra.mxu0 0.0
      %435 = vmatprep.subr.mxu0 0.0
      %436 = vmatpush1.msra.mxu0 0.0
      %437 = vmatprep.subr.mxu0 0.0
      %438 = vmatpush1.msra.mxu0 0.0
      %439 = vmatprep.subr.mxu0 0.0
      %440 = vmatpush1.msra.mxu0 0.0
      %441 = vmatprep.subr.mxu0 0.0
      %442 = vmatpush1.msra.mxu0 0.0
      %443 = vmatprep.subr.mxu0 0.0
      %444 = vmatpush1.msra.mxu0 0.0
      %445 = vmatprep.subr.mxu0 0.0
      %446 = vmatpush1.msra.mxu0 0.0
      %447 = vmatprep.mubr.f32.mxu0 %v288
      %448 = vmatmul.mubr.f32.gmra.mrb[0].mxu0 %v204
      %v449 = vpop.f32.mrb[0].mxu0
      %v450 = vadd.f32 0.0, %v449
      %v451 = vpop.f32.mrb[0].mxu0
      %452 = vmatprep.mubr.f32.mxu0 %v291
      %453 = vmatmul.mubr.f32.gmra.mrb[0].mxu0 %v206
      %v454 = vpop.f32.mrb[0].mxu0
      %v455 = vadd.f32 0.0, %v454
      %v456 = vpop.f32.mrb[0].mxu0
      %457 = vmatprep.mubr.f32.mxu0 %v294
      %458 = vmatmul.mubr.f32.gmra.mrb[0].mxu0 %v208
      %v459 = vpop.f32.mrb[0].mxu0
      %v460 = vadd.f32 0.0, %v459
      %v461 = vpop.f32.mrb[0].mxu0
      %462 = vmatprep.mubr.f32.mxu0 %v297
      %463 = vmatmul.mubr.f32.gmra.mrb[0].mxu0 %v210
      %v464 = vpop.f32.mrb[0].mxu0
      %v465 = vadd.f32 0.0, %v464
      %v466 = vpop.f32.mrb[0].mxu0
      %467 = vmatprep.mubr.f32.mxu0 %v300
      %468 = vmatmul.mubr.f32.gmra.mrb[0].mxu0 %v212
      %v469 = vpop.f32.mrb[0].mxu0
      %v470 = vadd.f32 0.0, %v469
      %v471 = vpop.f32.mrb[0].mxu0
      %472 = vmatprep.mubr.f32.mxu0 %v303
      %473 = vmatmul.mubr.f32.gmra.mrb[0].mxu0 %v214
      %v474 = vpop.f32.mrb[0].mxu0
      %v475 = vadd.f32 0.0, %v474
      %v476 = vpop.f32.mrb[0].mxu0
      %477 = vmatprep.mubr.f32.mxu0 %v306
      %478 = vmatmul.mubr.f32.gmra.mrb[0].mxu0 %v216
      %v479 = vpop.f32.mrb[0].mxu0
      %v480 = vadd.f32 0.0, %v479
      %v481 = vpop.f32.mrb[0].mxu0
      %482 = vmatprep.mubr.f32.mxu0 %v309
      %483 = vmatmul.mubr.f32.gmra.mrb[0].mxu0 %v218
      %v484 = vpop.f32.mrb[0].mxu0
      %v485 = vadd.f32 0.0, %v484
      %v486 = vpop.f32.mrb[0].mxu0
      %487 = vmatprep.mubr.f32.mxu0 %v312
      %488 = vmatmul.mubr.f32.gmra.mrb[0].mxu0 %v220
      %v489 = vpop.f32.mrb[0].mxu0
      %v490 = vadd.f32 0.0, %v489
      %v491 = vpop.f32.mrb[0].mxu0
      %492 = vmatprep.mubr.f32.mxu0 %v315
      %493 = vmatmul.mubr.f32.gmra.mrb[0].mxu0 %v222
      %v494 = vpop.f32.mrb[0].mxu0
      %v495 = vadd.f32 0.0, %v494
      %v496 = vpop.f32.mrb[0].mxu0
      %497 = vmatprep.mubr.f32.mxu0 %v318
      %498 = vmatmul.mubr.f32.gmra.mrb[0].mxu0 %v224
      %v499 = vpop.f32.mrb[0].mxu0
      %v500 = vadd.f32 0.0, %v499
      %v501 = vpop.f32.mrb[0].mxu0
      %502 = vmatprep.mubr.f32.mxu0 %v321
      %503 = vmatmul.mubr.f32.gmra.mrb[0].mxu0 %v226
      %v504 = vpop.f32.mrb[0].mxu0
      %v505 = vadd.f32 0.0, %v504
      %v506 = vpop.f32.mrb[0].mxu0
      %507 = vmatprep.mubr.f32.mxu0 %v324
      %508 = vmatmul.mubr.f32.gmra.mrb[0].mxu0 %v228
      %v509 = vpop.f32.mrb[0].mxu0
      %v510 = vadd.f32 0.0, %v509
      %v511 = vpop.f32.mrb[0].mxu0
      %512 = vmatprep.mubr.f32.mxu0 %v327
      %513 = vmatmul.mubr.f32.gmra.mrb[0].mxu0 %v230
      %v514 = vpop.f32.mrb[0].mxu0
      %v515 = vadd.f32 0.0, %v514
      %v516 = vpop.f32.mrb[0].mxu0
      %517 = vmatprep.mubr.f32.mxu0 %v330
      %518 = vmatmul.mubr.f32.gmra.mrb[0].mxu0 %v232
      %v519 = vpop.f32.mrb[0].mxu0
      %v520 = vadd.f32 0.0, %v519
      %v521 = vpop.f32.mrb[0].mxu0
      %522 = vmatprep.mubr.f32.mxu0 %v333
      %523 = vmatmul.mubr.f32.gmra.mrb[0].mxu0 %v234
      %v524 = vpop.f32.mrb[0].mxu0
      %v525 = vadd.f32 0.0, %v524
      %v526 = vpop.f32.mrb[0].mxu0
      %527 = vmatprep.mubr.f32.mxu0 %v336
      %528 = vmatmul.mubr.f32.gmra.mrb[0].mxu0 %v236
      %v529 = vpop.f32.mrb[0].mxu0
      %v530 = vadd.f32 0.0, %v529
      %v531 = vpop.f32.mrb[0].mxu0
      %532 = vmatprep.mubr.f32.mxu0 %v339
      %533 = vmatmul.mubr.f32.gmra.mrb[0].mxu0 %v238
      %v534 = vpop.f32.mrb[0].mxu0
      %v535 = vadd.f32 0.0, %v534
      %v536 = vpop.f32.mrb[0].mxu0
      %537 = vmatprep.mubr.f32.mxu0 %v342
      %538 = vmatmul.mubr.f32.gmra.mrb[0].mxu0 %v240
      %v539 = vpop.f32.mrb[0].mxu0
      %v540 = vadd.f32 0.0, %v539
      %v541 = vpop.f32.mrb[0].mxu0
      %542 = vmatprep.mubr.f32.mxu0 %v345
      %543 = vmatmul.mubr.f32.gmra.mrb[0].mxu0 %v242
      %v544 = vpop.f32.mrb[0].mxu0
      %v545 = vadd.f32 0.0, %v544
      %v546 = vpop.f32.mrb[0].mxu0
      %547 = vmatprep.mubr.f32.mxu0 %v348
      %548 = vmatmul.mubr.f32.gmra.mrb[0].mxu0 %v244
      %v549 = vpop.f32.mrb[0].mxu0
      %v550 = vadd.f32 0.0, %v549
      %v551 = vpop.f32.mrb[0].mxu0
      %552 = vmatprep.mubr.f32.mxu0 %v351
      %553 = vmatmul.mubr.f32.gmra.mrb[0].mxu0 %v246
      %v554 = vpop.f32.mrb[0].mxu0
      %v555 = vadd.f32 0.0, %v554
      %v556 = vpop.f32.mrb[0].mxu0
      %557 = vmatprep.mubr.f32.mxu0 %v354
      %558 = vmatmul.mubr.f32.gmra.mrb[0].mxu0 %v248
      %v559 = vpop.f32.mrb[0].mxu0
      %v560 = vadd.f32 0.0, %v559
      %v561 = vpop.f32.mrb[0].mxu0
      %562 = vmatprep.mubr.f32.mxu0 %v357
      %563 = vmatmul.mubr.f32.gmra.mrb[0].mxu0 %v250
      %v564 = vpop.f32.mrb[0].mxu0
      %v565 = vadd.f32 0.0, %v564
      %v566 = vpop.f32.mrb[0].mxu0
      %567 = vmatprep.mubr.f32.mxu0 %v360
      %568 = vmatmul.mubr.f32.gmra.mrb[0].mxu0 %v252
      %v569 = vpop.f32.mrb[0].mxu0
      %v570 = vadd.f32 0.0, %v569
      %v571 = vpop.f32.mrb[0].mxu0
      %572 = vmatprep.mubr.f32.mxu0 %v363
      %573 = vmatmul.mubr.f32.gmra.mrb[0].mxu0 %v254
      %v574 = vpop.f32.mrb[0].mxu0
      %v575 = vadd.f32 0.0, %v574
      %v576 = vpop.f32.mrb[0].mxu0
      %577 = vmatprep.mubr.f32.mxu0 %v366
      %578 = vmatmul.mubr.f32.gmra.mrb[0].mxu0 %v256
      %v579 = vpop.f32.mrb[0].mxu0
      %v580 = vadd.f32 0.0, %v579
      %v581 = vpop.f32.mrb[0].mxu0
      %582 = vmatprep.mubr.f32.mxu0 %v369
      %583 = vmatmul.mubr.f32.gmra.mrb[0].mxu0 %v258
      %v584 = vpop.f32.mrb[0].mxu0
      %v585 = vadd.f32 0.0, %v584
      %v586 = vpop.f32.mrb[0].mxu0
      %587 = vmatprep.mubr.f32.mxu0 %v372
      %588 = vmatmul.mubr.f32.gmra.mrb[0].mxu0 %v260
      %v589 = vpop.f32.mrb[0].mxu0
      %v590 = vadd.f32 0.0, %v589
      %v591 = vpop.f32.mrb[0].mxu0
      %592 = vmatprep.mubr.f32.mxu0 %v375
      %593 = vmatmul.mubr.f32.gmra.mrb[0].mxu0 %v262
      %v594 = vpop.f32.mrb[0].mxu0
      %v595 = vadd.f32 0.0, %v594
      %v596 = vpop.f32.mrb[0].mxu0
      %597 = vmatprep.mubr.f32.mxu0 %v378
      %598 = vmatmul.mubr.f32.gmra.mrb[0].mxu0 %v264
      %v599 = vpop.f32.mrb[0].mxu0
      %v600 = vadd.f32 0.0, %v599
      %v601 = vpop.f32.mrb[0].mxu0
      %602 = vmatprep.mubr.f32.mxu0 %v381
      %603 = vmatmul.mubr.f32.gmra.mrb[0].mxu0 %v266
      %v604 = vpop.f32.mrb[0].mxu0
      %v605 = vadd.f32 0.0, %v604
      %v606 = vpop.f32.mrb[0].mxu0
      %607 = vdwg.mxu0
      %v608 = vld [vmem:[%s2] sm:$0x1]
      %v610 = vlaneseq
      %v611 = vshrl.u32 %v610, 7
      %v612 = vsub.s32 0, %v611
      %v613 = vrot.slane %v608, %v612
      %v615 = vmul.f32 %v450, %v613
      %v616 = vmul.f32 %v455, %v613
      %v617 = vmul.f32 %v460, %v613
      %v618 = vmul.f32 %v465, %v613
      %v619 = vmul.f32 %v470, %v613
      %v620 = vmul.f32 %v475, %v613
      %v621 = vmul.f32 %v480, %v613
      %v622 = vmul.f32 %v485, %v613
      %v623 = vmul.f32 %v490, %v613
      %v624 = vmul.f32 %v495, %v613
      %v625 = vmul.f32 %v500, %v613
      %v626 = vmul.f32 %v505, %v613
      %v627 = vmul.f32 %v510, %v613
      %v628 = vmul.f32 %v515, %v613
      %v629 = vmul.f32 %v520, %v613
      %v630 = vmul.f32 %v525, %v613
      %v631 = vmul.f32 %v530, %v613
      %v632 = vmul.f32 %v535, %v613
      %v633 = vmul.f32 %v540, %v613
      %v634 = vmul.f32 %v545, %v613
      %v635 = vmul.f32 %v550, %v613
      %v636 = vmul.f32 %v555, %v613
      %v637 = vmul.f32 %v560, %v613
      %v638 = vmul.f32 %v565, %v613
      %v639 = vmul.f32 %v570, %v613
      %v640 = vmul.f32 %v575, %v613
      %v641 = vmul.f32 %v580, %v613
      %v642 = vmul.f32 %v585, %v613
      %v643 = vmul.f32 %v590, %v613
      %v644 = vmul.f32 %v595, %v613
      %v645 = vmul.f32 %v600, %v613
      %v646 = vmul.f32 %v605, %v613
      %v647 = vld [vmem:[%s3] sm:$0x1]
      %v649 = vlaneseq
      %v650 = vshrl.u32 %v649, 7
      %v651 = vsub.s32 0, %v650
      %v652 = vrot.slane %v647, %v651
      %v654 = vadd.f32 %v615, %v652
      %v655 = vadd.f32 %v616, %v652
      %v656 = vadd.f32 %v617, %v652
      %v657 = vadd.f32 %v618, %v652
      %v658 = vadd.f32 %v619, %v652
      %v659 = vadd.f32 %v620, %v652
      %v660 = vadd.f32 %v621, %v652
      %v661 = vadd.f32 %v622, %v652
      %v662 = vadd.f32 %v623, %v652
      %v663 = vadd.f32 %v624, %v652
      %v664 = vadd.f32 %v625, %v652
      %v665 = vadd.f32 %v626, %v652
      %v666 = vadd.f32 %v627, %v652
      %v667 = vadd.f32 %v628, %v652
      %v668 = vadd.f32 %v629, %v652
      %v669 = vadd.f32 %v630, %v652
      %v670 = vadd.f32 %v631, %v652
      %v671 = vadd.f32 %v632, %v652
      %v672 = vadd.f32 %v633, %v652
      %v673 = vadd.f32 %v634, %v652
      %v674 = vadd.f32 %v635, %v652
      %v675 = vadd.f32 %v636, %v652
      %v676 = vadd.f32 %v637, %v652
      %v677 = vadd.f32 %v638, %v652
      %v678 = vadd.f32 %v639, %v652
      %v679 = vadd.f32 %v640, %v652
      %v680 = vadd.f32 %v641, %v652
      %v681 = vadd.f32 %v642, %v652
      %v682 = vadd.f32 %v643, %v652
      %v683 = vadd.f32 %v644, %v652
      %v684 = vadd.f32 %v645, %v652
      %v685 = vadd.f32 %v646, %v652
      %v686 = vmax.f32 %v654, 0.0
      %v687 = vmax.f32 %v655, 0.0
      %v688 = vmax.f32 %v656, 0.0
      %v689 = vmax.f32 %v657, 0.0
      %v690 = vmax.f32 %v658, 0.0
      %v691 = vmax.f32 %v659, 0.0
      %v692 = vmax.f32 %v660, 0.0
      %v693 = vmax.f32 %v661, 0.0
      %v694 = vmax.f32 %v662, 0.0
      %v695 = vmax.f32 %v663, 0.0
      %v696 = vmax.f32 %v664, 0.0
      %v697 = vmax.f32 %v665, 0.0
      %v698 = vmax.f32 %v666, 0.0
      %v699 = vmax.f32 %v667, 0.0
      %v700 = vmax.f32 %v668, 0.0
      %v701 = vmax.f32 %v669, 0.0
      %v702 = vmax.f32 %v670, 0.0
      %v703 = vmax.f32 %v671, 0.0
      %v704 = vmax.f32 %v672, 0.0
      %v705 = vmax.f32 %v673, 0.0
      %v706 = vmax.f32 %v674, 0.0
      %v707 = vmax.f32 %v675, 0.0
      %v708 = vmax.f32 %v676, 0.0
      %v709 = vmax.f32 %v677, 0.0
      %v710 = vmax.f32 %v678, 0.0
      %v711 = vmax.f32 %v679, 0.0
      %v712 = vmax.f32 %v680, 0.0
      %v713 = vmax.f32 %v681, 0.0
      %v714 = vmax.f32 %v682, 0.0
      %v715 = vmax.f32 %v683, 0.0
      %v716 = vmax.f32 %v684, 0.0
      %v717 = vmax.f32 %v685, 0.0
      %718 = vst.msk [vmem:[%s202] sm:$0xff] %vm286, %v686
      %719 = vst.msk [vmem:[%s202 + $0x8] sm:$0xff] %vm286, %v687
      %720 = vst.msk [vmem:[%s202 + $0x10] sm:$0xff] %vm286, %v688
      %721 = vst.msk [vmem:[%s202 + $0x18] sm:$0xff] %vm286, %v689
      %722 = vst.msk [vmem:[%s202 + $0x20] sm:$0xff] %vm286, %v690
      %723 = vst.msk [vmem:[%s202 + $0x28] sm:$0xff] %vm286, %v691
      %724 = vst.msk [vmem:[%s202 + $0x30] sm:$0xff] %vm286, %v692
      %725 = vst.msk [vmem:[%s202 + $0x38] sm:$0xff] %vm286, %v693
      %726 = vst.msk [vmem:[%s202 + $0x40] sm:$0xff] %vm286, %v694
      %727 = vst.msk [vmem:[%s202 + $0x48] sm:$0xff] %vm286, %v695
      %728 = vst.msk [vmem:[%s202 + $0x50] sm:$0xff] %vm286, %v696
      %729 = vst.msk [vmem:[%s202 + $0x58] sm:$0xff] %vm286, %v697
      %730 = vst.msk [vmem:[%s202 + $0x60] sm:$0xff] %vm286, %v698
      %731 = vst.msk [vmem:[%s202 + $0x68] sm:$0xff] %vm286, %v699
      %732 = vst.msk [vmem:[%s202 + $0x70] sm:$0xff] %vm286, %v700
      %733 = vst.msk [vmem:[%s202 + $0x78] sm:$0xff] %vm286, %v701
      %734 = vst.msk [vmem:[%s202 + $0x80] sm:$0xff] %vm286, %v702
      %735 = vst.msk [vmem:[%s202 + $0x88] sm:$0xff] %vm286, %v703
      %736 = vst.msk [vmem:[%s202 + $0x90] sm:$0xff] %vm286, %v704
      %737 = vst.msk [vmem:[%s202 + $0x98] sm:$0xff] %vm286, %v705
      %738 = vst.msk [vmem:[%s202 + $0xa0] sm:$0xff] %vm286, %v706
      %739 = vst.msk [vmem:[%s202 + $0xa8] sm:$0xff] %vm286, %v707
      %740 = vst.msk [vmem:[%s202 + $0xb0] sm:$0xff] %vm286, %v708
      %741 = vst.msk [vmem:[%s202 + $0xb8] sm:$0xff] %vm286, %v709
      %742 = vst.msk [vmem:[%s202 + $0xc0] sm:$0xff] %vm286, %v710
      %743 = vst.msk [vmem:[%s202 + $0xc8] sm:$0xff] %vm286, %v711
      %744 = vst.msk [vmem:[%s202 + $0xd0] sm:$0xff] %vm286, %v712
      %745 = vst.msk [vmem:[%s202 + $0xd8] sm:$0xff] %vm286, %v713
      %746 = vst.msk [vmem:[%s202 + $0xe0] sm:$0xff] %vm286, %v714
      %747 = vst.msk [vmem:[%s202 + $0xe8] sm:$0xff] %vm286, %v715
      %748 = vst.msk [vmem:[%s202 + $0xf0] sm:$0xff] %vm286, %v716
      %749 = vst.msk [vmem:[%s202 + $0xf8] sm:$0xff] %vm286, %v717
      %s750 = smul.u32 32, %s15
      %p751 = scmp.lt.s32.totalorder %s750, 63
      %s752 = scalar_select %p751, %s750, 63
      %s753 = smul.addr %s752, 8
      %s754 = scalar_lea.vmem %s4, %s753
      // Predicated region
      $region37: #{_lambda_.9} parent=35 // pred_check
        %p755 = pneg %p122
      $region38: #{_lambda_.9} parent=35 // pred_check_branch
        %757 = sbr.rel (%p755) target = $region40
      $region39: #{_lambda_.9} parent=35 // pred_region
        %s758 = smul.u32 32, %s15
      $region40: #{_lambda_.9} parent=35 // pred_fallthru
        _
    $region36: #{_lambda_.9} parent=5 // pred_fallthru
      _
    %p759 = scmp.le.s32.totalorder 2, %s10
    // Predicated region
    $region41: #{_lambda_.9} parent=5 // pred_check
      %p760 = pneg %p759
    $region42: #{_lambda_.9} parent=5 // pred_check_branch
      %762 = sbr.rel (%p760) target = $region44
    $region43: #{_lambda_.9} parent=5 // pred_region
      %s763 = ssub.s32 %s10, 2
      // Predicated region
      $region45: #{_lambda_.9} parent=43 // pred_check
        %p764 = pneg %p128
      $region46: #{_lambda_.9} parent=43 // pred_check_branch
        %766 = sbr.rel (%p764) target = $region48
      $region47: #{_lambda_.9} parent=43 // pred_region
        %s767 = smul.u32 32, %s16
        %p768 = scmp.lt.s32.totalorder %s767, 63
        %s769 = scalar_select %p768, %s767, 63
        %s770 = smul.addr %s769, 8
        %s771 = scalar_lea.vmem %s4, %s770
      $region48: #{_lambda_.9} parent=43 // pred_fallthru
        _
    $region44: #{_lambda_.9} parent=5 // pred_fallthru
      _
  $region6: #{_lambda_.9} parent=0 // loop_footer
    %s14 = sadd.s32 1, %s10
  $region7: #{_lambda_.9} parent=0 // loop_footer_branch
    %9 = sbr.rel target = $region3
  $region8: #{_lambda_.9} parent=0 // loop_exit
    _

// kernel: _lambda_.10
$region0: #{_lambda_.10}
  #allocation0 [shape = 'u32[]', space=smem, size = 0x4, offset = 0x4, fixed_abs, tag = 'smem constant byte address 0x4 - core index']
  #allocation1 [shape = 'u32[144,128]{1,0:T(1,128)}', space=vmem, size = 0x12000, scoped, tag = 'internal scratch']
  %s0 = inlined_call_operand.vmem [shape: f32[512,144], index: 0, kind: input, shape index: {}]
  %s1 = inlined_call_operand.vmem [shape: f32[144,16], index: 1, kind: input, shape index: {}]
  %s2 = inlined_call_operand.vmem [shape: f32[512,16], index: 2, kind: input, shape index: {}]
  %s3 = inlined_call_operand.vmem [shape: f32[1,16], index: 3, kind: input, shape index: {}]
  %s4 = inlined_call_operand.vmem [shape: f32[1,16], index: 4, kind: input, shape index: {}]
  %s5 = inlined_call_operand.vmem [shape: f32[512,16], index: 5, kind: output, shape index: {}]
  %s6 = sld [smem:[#allocation0]]
  $region53: #{_lambda_.10} parent=0
    _
  %s8 = ssub.s32 1, %s6
  %s9 = scalar_select 0, %s8, %s6
  loop: start=0, step=1, limit=4
  $region2: #{_lambda_.10} parent=0 // loop_pre_header
    _
  $region3: #{_lambda_.10} parent=0 // loop_header
    %s11 = sphi 0, %s15
    %p12 = scmp.ge.s32.totalorder %s11, 4
    %s21 = sphi 0, %s23
    %s24 = sphi 0, %s21
    %s25 = sphi 0, %s24
    %s41 = sphi 0, %s25
    %s45 = sphi 0, %s45
    %s47 = sphi 0, %s45
    %s48 = sphi 0, %s47
    %s62 = sphi 0, %s48
    %s68 = sphi 0, %s70
    %s71 = sphi 0, %s68
    %s72 = sphi 0, %s71
    %s88 = sphi 0, %s72
    %s92 = sphi 0, %s92
    %s94 = sphi 0, %s92
    %s95 = sphi 0, %s94
    %s109 = sphi 0, %s95
    %s113 = sphi 0, %s113
    %s115 = sphi 0, %s113
    %s116 = sphi 0, %s115
    %s130 = sphi 0, %s116
    %s136 = sphi 0, %s138
    %s139 = sphi 0, %s136
    %s140 = sphi 0, %s139
    %s156 = sphi 0, %s140
  $region4: #{_lambda_.10} parent=0 // loop_header_branch
    %14 = sbr.rel (%p12) target = $region8
  $region5: #{_lambda_.10} parent=0 // loop_body
    %s16 = ssub.s32 %s11, 1
    %s17 = ssub.s32 %s11, 2
    %s18 = sadd.s32 %s11, 1
    %s19 = ssub.s32 %s11, %s18
    %p20 = scmp.eq.s32.totalorder %s19, 0
    %s22 = sadd.s32 %s21, 1
    %s23 = scalar_select %p20, %s21, %s22
    %p26 = pneg %p20
    %p27 = scmp.eq.s32.totalorder %s11, 1
    %p28 = por %p26, %p27
    %p29 = scmp.ne.s32.totalorder %s21, %s24
    %p30 = scmp.eq.s32.totalorder %s11, 0
    %p31 = por %p29, %p30
    %p32 = scmp.ne.s32.totalorder %s21, %s24
    %p33 = scmp.eq.s32.totalorder %s16, 1
    %p34 = por %p32, %p33
    %p35 = scmp.ne.s32.totalorder %s24, %s25
    %p36 = scmp.eq.s32.totalorder %s16, 0
    %p37 = por %p35, %p36
    %p38 = scmp.ne.s32.totalorder %s24, %s25
    %p39 = scmp.eq.s32.totalorder %s17, 1
    %p40 = por %p38, %p39
    %p42 = scmp.ne.s32.totalorder %s25, %s41
    %p43 = scmp.eq.s32.totalorder %s17, 0
    %p44 = por %p42, %p43
    %s46 = sadd.s32 %s45, 1
    %p49 = scmp.eq.s32.totalorder %s11, 1
    %p50 = scmp.ne.s32.totalorder %s45, %s47
    %p51 = scmp.eq.s32.totalorder %s11, 0
    %p52 = por %p50, %p51
    %p53 = scmp.ne.s32.totalorder %s45, %s47
    %p54 = scmp.eq.s32.totalorder %s16, 1
    %p55 = por %p53, %p54
    %p56 = scmp.ne.s32.totalorder %s47, %s48
    %p57 = scmp.eq.s32.totalorder %s16, 0
    %p58 = por %p56, %p57
    %p59 = scmp.ne.s32.totalorder %s47, %s48
    %p60 = scmp.eq.s32.totalorder %s17, 1
    %p61 = por %p59, %p60
    %p63 = scmp.ne.s32.totalorder %s48, %s62
    %p64 = scmp.eq.s32.totalorder %s17, 0
    %p65 = por %p63, %p64
    %s66 = ssub.s32 %s11, %s18
    %p67 = scmp.eq.s32.totalorder %s66, 0
    %s69 = sadd.s32 %s68, 1
    %s70 = scalar_select %p67, %s68, %s69
    %p73 = pneg %p67
    %p74 = scmp.eq.s32.totalorder %s11, 1
    %p75 = por %p73, %p74
    %p76 = scmp.ne.s32.totalorder %s68, %s71
    %p77 = scmp.eq.s32.totalorder %s11, 0
    %p78 = por %p76, %p77
    %p79 = scmp.ne.s32.totalorder %s68, %s71
    %p80 = scmp.eq.s32.totalorder %s16, 1
    %p81 = por %p79, %p80
    %p82 = scmp.ne.s32.totalorder %s71, %s72
    %p83 = scmp.eq.s32.totalorder %s16, 0
    %p84 = por %p82, %p83
    %p85 = scmp.ne.s32.totalorder %s71, %s72
    %p86 = scmp.eq.s32.totalorder %s17, 1
    %p87 = por %p85, %p86
    %p89 = scmp.ne.s32.totalorder %s72, %s88
    %p90 = scmp.eq.s32.totalorder %s17, 0
    %p91 = por %p89, %p90
    %s93 = sadd.s32 %s92, 1
    %p96 = scmp.eq.s32.totalorder %s11, 1
    %p97 = scmp.ne.s32.totalorder %s92, %s94
    %p98 = scmp.eq.s32.totalorder %s11, 0
    %p99 = por %p97, %p98
    %p100 = scmp.ne.s32.totalorder %s92, %s94
    %p101 = scmp.eq.s32.totalorder %s16, 1
    %p102 = por %p100, %p101
    %p103 = scmp.ne.s32.totalorder %s94, %s95
    %p104 = scmp.eq.s32.totalorder %s16, 0
    %p105 = por %p103, %p104
    %p106 = scmp.ne.s32.totalorder %s94, %s95
    %p107 = scmp.eq.s32.totalorder %s17, 1
    %p108 = por %p106, %p107
    %p110 = scmp.ne.s32.totalorder %s95, %s109
    %p111 = scmp.eq.s32.totalorder %s17, 0
    %p112 = por %p110, %p111
    %s114 = sadd.s32 %s113, 1
    %p117 = scmp.eq.s32.totalorder %s11, 1
    %p118 = scmp.ne.s32.totalorder %s113, %s115
    %p119 = scmp.eq.s32.totalorder %s11, 0
    %p120 = por %p118, %p119
    %p121 = scmp.ne.s32.totalorder %s113, %s115
    %p122 = scmp.eq.s32.totalorder %s16, 1
    %p123 = por %p121, %p122
    %p124 = scmp.ne.s32.totalorder %s115, %s116
    %p125 = scmp.eq.s32.totalorder %s16, 0
    %p126 = por %p124, %p125
    %p127 = scmp.ne.s32.totalorder %s115, %s116
    %p128 = scmp.eq.s32.totalorder %s17, 1
    %p129 = por %p127, %p128
    %p131 = scmp.ne.s32.totalorder %s116, %s130
    %p132 = scmp.eq.s32.totalorder %s17, 0
    %p133 = por %p131, %p132
    %s134 = ssub.s32 %s11, %s18
    %p135 = scmp.eq.s32.totalorder %s134, 0
    %s137 = sadd.s32 %s136, 1
    %s138 = scalar_select %p135, %s136, %s137
    %p141 = pneg %p135
    %p142 = scmp.eq.s32.totalorder %s11, 1
    %p143 = por %p141, %p142
    %p144 = scmp.ne.s32.totalorder %s136, %s139
    %p145 = scmp.eq.s32.totalorder %s11, 0
    %p146 = por %p144, %p145
    %p147 = scmp.ne.s32.totalorder %s136, %s139
    %p148 = scmp.eq.s32.totalorder %s16, 1
    %p149 = por %p147, %p148
    %p150 = scmp.ne.s32.totalorder %s139, %s140
    %p151 = scmp.eq.s32.totalorder %s16, 0
    %p152 = por %p150, %p151
    %p153 = scmp.ne.s32.totalorder %s139, %s140
    %p154 = scmp.eq.s32.totalorder %s17, 1
    %p155 = por %p153, %p154
    %p157 = scmp.ne.s32.totalorder %s140, %s156
    %p158 = scmp.eq.s32.totalorder %s17, 0
    %p159 = por %p157, %p158
    %p160 = scmp.le.s32.totalorder 1, %s11
    %p161 = scmp.lt.s32.totalorder %s11, 3
    %p162 = pnand %p160, %p161
    %p163 = pneg %p162
    // Predicated region
    $region9: #{_lambda_.10} parent=5 // pred_check
      _
    $region10: #{_lambda_.10} parent=5 // pred_check_branch
      %165 = sbr.rel (%p162) target = $region12
    $region11: #{_lambda_.10} parent=5 // pred_region
      %s166 = ssub.s32 %s11, 1
      // Predicated region
      $region13: #{_lambda_.10} parent=11 // pred_check
        %p167 = pneg %p58
      $region14: #{_lambda_.10} parent=11 // pred_check_branch
        %169 = sbr.rel (%p167) target = $region16
      $region15: #{_lambda_.10} parent=11 // pred_region
        _
      $region16: #{_lambda_.10} parent=11 // pred_fallthru
        _
      // Predicated region
      $region17: #{_lambda_.10} parent=11 // pred_check
        %p170 = pneg %p105
      $region18: #{_lambda_.10} parent=11 // pred_check_branch
        %172 = sbr.rel (%p170) target = $region20
      $region19: #{_lambda_.10} parent=11 // pred_region
        _
      $region20: #{_lambda_.10} parent=11 // pred_fallthru
        _
      // Predicated region
      $region21: #{_lambda_.10} parent=11 // pred_check
        %p173 = pneg %p126
      $region22: #{_lambda_.10} parent=11 // pred_check_branch
        %175 = sbr.rel (%p173) target = $region24
      $region23: #{_lambda_.10} parent=11 // pred_region
        _
      $region24: #{_lambda_.10} parent=11 // pred_fallthru
        _
    $region12: #{_lambda_.10} parent=5 // pred_fallthru
      _
    %p176 = scmp.lt.s32.totalorder %s11, 2
    // Predicated region
    $region25: #{_lambda_.10} parent=5 // pred_check
      %p177 = pneg %p176
    $region26: #{_lambda_.10} parent=5 // pred_check_branch
      %179 = sbr.rel (%p177) target = $region28
    $region27: #{_lambda_.10} parent=5 // pred_region
      // Predicated region
      $region29: #{_lambda_.10} parent=27 // pred_check
        %p180 = pneg %p31
      $region30: #{_lambda_.10} parent=27 // pred_check_branch
        %182 = sbr.rel (%p180) target = $region32
      $region31: #{_lambda_.10} parent=27 // pred_region
        %s183 = smul.u32 32, %s11
        %p184 = scmp.lt.s32.totalorder %s183, 63
        %s185 = scalar_select %p184, %s183, 63
        %s186 = smul.addr %s185, 2
        %s187 = smul.addr %s186, 8
        %s188 = scalar_lea.vmem %s0, %s187
        %s189 = smul.u32 32, %s11
      $region32: #{_lambda_.10} parent=27 // pred_fallthru
        _
      // Predicated region
      $region33: #{_lambda_.10} parent=27 // pred_check
        %p190 = pneg %p78
      $region34: #{_lambda_.10} parent=27 // pred_check_branch
        %192 = sbr.rel (%p190) target = $region36
      $region35: #{_lambda_.10} parent=27 // pred_region
        %s193 = smul.u32 32, %s11
        %p194 = scmp.lt.s32.totalorder %s193, 63
        %s195 = scalar_select %p194, %s193, 63
        %s196 = smul.addr %s195, 8
        %s197 = scalar_lea.vmem %s2, %s196
        %s198 = smul.u32 32, %s11
      $region36: #{_lambda_.10} parent=27 // pred_fallthru
        _
    $region28: #{_lambda_.10} parent=5 // pred_fallthru
      _
    %p199 = scmp.le.s32.totalorder 1, %s11
    %p200 = scmp.lt.s32.totalorder %s11, 3
    %p201 = pnand %p199, %p200
    %p202 = pneg %p201
    // Predicated region
    $region37: #{_lambda_.10} parent=5 // pred_check
      _
    $region38: #{_lambda_.10} parent=5 // pred_check_branch
      %204 = sbr.rel (%p201) target = $region40
    $region39: #{_lambda_.10} parent=5 // pred_region
      %s205 = ssub.s32 %s11, 1
      %s206 = smul.u32 32, %s16
      %p207 = scmp.lt.s32.totalorder %s206, 63
      %s208 = scalar_select %p207, %s206, 63
      %s209 = smul.addr %s208, 2
      %s210 = smul.addr %s209, 8
      %s211 = scalar_lea.vmem %s0, %s210
      %p212 = pneg %p37
      %p213 = pneg %p34
      %p214 = pneg %p58
      %p215 = pneg %p55
      %s216 = smul.u32 32, %s16
      %p217 = scmp.lt.s32.totalorder %s216, 63
      %s218 = scalar_select %p217, %s216, 63
      %s219 = smul.addr %s218, 8
      %s220 = scalar_lea.vmem %s2, %s219
      %p221 = pneg %p84
      %p222 = pneg %p81
      %p223 = pneg %p105
      %p224 = pneg %p102
      %p225 = pneg %p126
      %p226 = pneg %p123
      %p227 = pneg %p152
      %p228 = pneg %p149
      %s229 = smul.u32 32, %s16
      %p230 = scmp.lt.s32.totalorder %s229, 63
      %s231 = scalar_select %p230, %s229, 63
      %s232 = smul.addr %s231, 8
      %s233 = scalar_lea.vmem %s5, %s232
      %s234 = smul.u32 32, %s16
      %p235 = scmp.lt.s32.totalorder %s234, 63
      %s236 = scalar_select %p235, %s234, 63
      %s237 = smul.addr %s236, 2
      %s238 = smul.addr %s237, 8
      %s239 = scalar_lea.vmem %s0, %s238
      %s240 = smul.u32 32, %s16
      %s241 = smul.u32 32, %s16
      %p242 = scmp.lt.s32.totalorder %s241, 63
      %s243 = scalar_select %p242, %s241, 63
      %s244 = smul.addr %s243, 8
      %s245 = scalar_lea.vmem %s2, %s244
      %s246 = smul.u32 32, %s16
      %s247 = smul.u32 32, %s16
      %p248 = scmp.lt.s32.totalorder %s247, 63
      %s249 = scalar_select %p248, %s247, 63
      %s250 = smul.addr %s249, 8
      %s251 = scalar_lea.vmem %s5, %s250
      %s252 = smul.u32 32, %s16
      %v253 = vld [vmem:[%s239] sm:$0xff]
      %v254 = vld [vmem:[%s239 + $0x8] sm:$0xff]
      %v255 = vld [vmem:[%s239 + $0x10] sm:$0xff]
      %v256 = vld [vmem:[%s239 + $0x18] sm:$0xff]
      %v257 = vld [vmem:[%s239 + $0x20] sm:$0xff]
      %v258 = vld [vmem:[%s239 + $0x28] sm:$0xff]
      %v259 = vld [vmem:[%s239 + $0x30] sm:$0xff]
      %v260 = vld [vmem:[%s239 + $0x38] sm:$0xff]
      %v261 = vld [vmem:[%s239 + $0x40] sm:$0xff]
      %v262 = vld [vmem:[%s239 + $0x48] sm:$0xff]
      %v263 = vld [vmem:[%s239 + $0x50] sm:$0xff]
      %v264 = vld [vmem:[%s239 + $0x58] sm:$0xff]
      %v265 = vld [vmem:[%s239 + $0x60] sm:$0xff]
      %v266 = vld [vmem:[%s239 + $0x68] sm:$0xff]
      %v267 = vld [vmem:[%s239 + $0x70] sm:$0xff]
      %v268 = vld [vmem:[%s239 + $0x78] sm:$0xff]
      %v269 = vld [vmem:[%s239 + $0x80] sm:$0xff]
      %v270 = vld [vmem:[%s239 + $0x88] sm:$0xff]
      %v271 = vld [vmem:[%s239 + $0x90] sm:$0xff]
      %v272 = vld [vmem:[%s239 + $0x98] sm:$0xff]
      %v273 = vld [vmem:[%s239 + $0xa0] sm:$0xff]
      %v274 = vld [vmem:[%s239 + $0xa8] sm:$0xff]
      %v275 = vld [vmem:[%s239 + $0xb0] sm:$0xff]
      %v276 = vld [vmem:[%s239 + $0xb8] sm:$0xff]
      %v277 = vld [vmem:[%s239 + $0xc0] sm:$0xff]
      %v278 = vld [vmem:[%s239 + $0xc8] sm:$0xff]
      %v279 = vld [vmem:[%s239 + $0xd0] sm:$0xff]
      %v280 = vld [vmem:[%s239 + $0xd8] sm:$0xff]
      %v281 = vld [vmem:[%s239 + $0xe0] sm:$0xff]
      %v282 = vld [vmem:[%s239 + $0xe8] sm:$0xff]
      %v283 = vld [vmem:[%s239 + $0xf0] sm:$0xff]
      %v284 = vld [vmem:[%s239 + $0xf8] sm:$0xff]
      %v285 = vld [vmem:[%s239 + $0x100] sm:$0xff]
      %v286 = vld [vmem:[%s239 + $0x108] sm:$0xff]
      %v287 = vld [vmem:[%s239 + $0x110] sm:$0xff]
      %v288 = vld [vmem:[%s239 + $0x118] sm:$0xff]
      %v289 = vld [vmem:[%s239 + $0x120] sm:$0xff]
      %v290 = vld [vmem:[%s239 + $0x128] sm:$0xff]
      %v291 = vld [vmem:[%s239 + $0x130] sm:$0xff]
      %v292 = vld [vmem:[%s239 + $0x138] sm:$0xff]
      %v293 = vld [vmem:[%s239 + $0x140] sm:$0xff]
      %v294 = vld [vmem:[%s239 + $0x148] sm:$0xff]
      %v295 = vld [vmem:[%s239 + $0x150] sm:$0xff]
      %v296 = vld [vmem:[%s239 + $0x158] sm:$0xff]
      %v297 = vld [vmem:[%s239 + $0x160] sm:$0xff]
      %v298 = vld [vmem:[%s239 + $0x168] sm:$0xff]
      %v299 = vld [vmem:[%s239 + $0x170] sm:$0xff]
      %v300 = vld [vmem:[%s239 + $0x178] sm:$0xff]
      %v301 = vld [vmem:[%s239 + $0x180] sm:$0xff]
      %v302 = vld [vmem:[%s239 + $0x188] sm:$0xff]
      %v303 = vld [vmem:[%s239 + $0x190] sm:$0xff]
      %v304 = vld [vmem:[%s239 + $0x198] sm:$0xff]
      %v305 = vld [vmem:[%s239 + $0x1a0] sm:$0xff]
      %v306 = vld [vmem:[%s239 + $0x1a8] sm:$0xff]
      %v307 = vld [vmem:[%s239 + $0x1b0] sm:$0xff]
      %v308 = vld [vmem:[%s239 + $0x1b8] sm:$0xff]
      %v309 = vld [vmem:[%s239 + $0x1c0] sm:$0xff]
      %v310 = vld [vmem:[%s239 + $0x1c8] sm:$0xff]
      %v311 = vld [vmem:[%s239 + $0x1d0] sm:$0xff]
      %v312 = vld [vmem:[%s239 + $0x1d8] sm:$0xff]
      %v313 = vld [vmem:[%s239 + $0x1e0] sm:$0xff]
      %v314 = vld [vmem:[%s239 + $0x1e8] sm:$0xff]
      %v315 = vld [vmem:[%s239 + $0x1f0] sm:$0xff]
      %v316 = vld [vmem:[%s239 + $0x1f8] sm:$0xff]
      %v317 = vld [vmem:[%s1] sm:$0xff]
      %v318 = vld [vmem:[%s1 + $0x8] sm:$0xff]
      %v319 = vld [vmem:[%s1 + $0x10] sm:$0xff]
      %v320 = vld [vmem:[%s1 + $0x18] sm:$0xff]
      %v321 = vld [vmem:[%s1 + $0x20] sm:$0xff]
      %v322 = vld [vmem:[%s1 + $0x28] sm:$0xff]
      %v323 = vld [vmem:[%s1 + $0x30] sm:$0xff]
      %v324 = vld [vmem:[%s1 + $0x38] sm:$0xff]
      %v325 = vld [vmem:[%s1 + $0x40] sm:$0xff]
      %v326 = vld [vmem:[%s1 + $0x48] sm:$0xff]
      %v327 = vld [vmem:[%s1 + $0x50] sm:$0xff]
      %v328 = vld [vmem:[%s1 + $0x58] sm:$0xff]
      %v329 = vld [vmem:[%s1 + $0x60] sm:$0xff]
      %v330 = vld [vmem:[%s1 + $0x68] sm:$0xff]
      %v331 = vld [vmem:[%s1 + $0x70] sm:$0xff]
      %v332 = vld [vmem:[%s1 + $0x78] sm:$0xff]
      %v333 = vld [vmem:[%s1 + $0x80] sm:$0xff]
      %v334 = vld [vmem:[%s1 + $0x88] sm:$0xff]
      %v335 = vld [vmem:[%s245] sm:$0xff]
      %v336 = vld [vmem:[%s245 + $0x8] sm:$0xff]
      %v337 = vld [vmem:[%s245 + $0x10] sm:$0xff]
      %v338 = vld [vmem:[%s245 + $0x18] sm:$0xff]
      %v339 = vld [vmem:[%s245 + $0x20] sm:$0xff]
      %v340 = vld [vmem:[%s245 + $0x28] sm:$0xff]
      %v341 = vld [vmem:[%s245 + $0x30] sm:$0xff]
      %v342 = vld [vmem:[%s245 + $0x38] sm:$0xff]
      %v343 = vld [vmem:[%s245 + $0x40] sm:$0xff]
      %v344 = vld [vmem:[%s245 + $0x48] sm:$0xff]
      %v345 = vld [vmem:[%s245 + $0x50] sm:$0xff]
      %v346 = vld [vmem:[%s245 + $0x58] sm:$0xff]
      %v347 = vld [vmem:[%s245 + $0x60] sm:$0xff]
      %v348 = vld [vmem:[%s245 + $0x68] sm:$0xff]
      %v349 = vld [vmem:[%s245 + $0x70] sm:$0xff]
      %v350 = vld [vmem:[%s245 + $0x78] sm:$0xff]
      %v351 = vld [vmem:[%s245 + $0x80] sm:$0xff]
      %v352 = vld [vmem:[%s245 + $0x88] sm:$0xff]
      %v353 = vld [vmem:[%s245 + $0x90] sm:$0xff]
      %v354 = vld [vmem:[%s245 + $0x98] sm:$0xff]
      %v355 = vld [vmem:[%s245 + $0xa0] sm:$0xff]
      %v356 = vld [vmem:[%s245 + $0xa8] sm:$0xff]
      %v357 = vld [vmem:[%s245 + $0xb0] sm:$0xff]
      %v358 = vld [vmem:[%s245 + $0xb8] sm:$0xff]
      %v359 = vld [vmem:[%s245 + $0xc0] sm:$0xff]
      %v360 = vld [vmem:[%s245 + $0xc8] sm:$0xff]
      %v361 = vld [vmem:[%s245 + $0xd0] sm:$0xff]
      %v362 = vld [vmem:[%s245 + $0xd8] sm:$0xff]
      %v363 = vld [vmem:[%s245 + $0xe0] sm:$0xff]
      %v364 = vld [vmem:[%s245 + $0xe8] sm:$0xff]
      %v365 = vld [vmem:[%s245 + $0xf0] sm:$0xff]
      %v366 = vld [vmem:[%s245 + $0xf8] sm:$0xff]
      %vm367 = vcmask 130048
      %v369 = vsel %vm367, %v254, 0
      %v372 = vsel %vm367, %v256, 0
      %v375 = vsel %vm367, %v258, 0
      %v378 = vsel %vm367, %v260, 0
      %v381 = vsel %vm367, %v262, 0
      %v384 = vsel %vm367, %v264, 0
      %v387 = vsel %vm367, %v266, 0
      %v390 = vsel %vm367, %v268, 0
      %v393 = vsel %vm367, %v270, 0
      %v396 = vsel %vm367, %v272, 0
      %v399 = vsel %vm367, %v274, 0
      %v402 = vsel %vm367, %v276, 0
      %v405 = vsel %vm367, %v278, 0
      %v408 = vsel %vm367, %v280, 0
      %v411 = vsel %vm367, %v282, 0
      %v414 = vsel %vm367, %v284, 0
      %v417 = vsel %vm367, %v286, 0
      %v420 = vsel %vm367, %v288, 0
      %v423 = vsel %vm367, %v290, 0
      %v426 = vsel %vm367, %v292, 0
      %v429 = vsel %vm367, %v294, 0
      %v432 = vsel %vm367, %v296, 0
      %v435 = vsel %vm367, %v298, 0
      %v438 = vsel %vm367, %v300, 0
      %v441 = vsel %vm367, %v302, 0
      %v444 = vsel %vm367, %v304, 0
      %v447 = vsel %vm367, %v306, 0
      %v450 = vsel %vm367, %v308, 0
      %v453 = vsel %vm367, %v310, 0
      %v456 = vsel %vm367, %v312, 0
      %v459 = vsel %vm367, %v314, 0
      %v462 = vsel %vm367, %v316, 0
      %464 = vmatprep.subr.mxu0 0.0
      %465 = vmatpush1.msra.mxu0 %v317
      %466 = vmatprep.subr.mxu0 0.0
      %467 = vmatpush1.msra.mxu0 %v318
      %468 = vmatprep.subr.mxu0 0.0
      %469 = vmatpush1.msra.mxu0 %v319
      %470 = vmatprep.subr.mxu0 0.0
      %471 = vmatpush1.msra.mxu0 %v320
      %472 = vmatprep.subr.mxu0 0.0
      %473 = vmatpush1.msra.mxu0 %v321
      %474 = vmatprep.subr.mxu0 0.0
      %475 = vmatpush1.msra.mxu0 %v322
      %476 = vmatprep.subr.mxu0 0.0
      %477 = vmatpush1.msra.mxu0 %v323
      %478 = vmatprep.subr.mxu0 0.0
      %479 = vmatpush1.msra.mxu0 %v324
      %480 = vmatprep.subr.mxu0 0.0
      %481 = vmatpush1.msra.mxu0 %v325
      %482 = vmatprep.subr.mxu0 0.0
      %483 = vmatpush1.msra.mxu0 %v326
      %484 = vmatprep.subr.mxu0 0.0
      %485 = vmatpush1.msra.mxu0 %v327
      %486 = vmatprep.subr.mxu0 0.0
      %487 = vmatpush1.msra.mxu0 %v328
      %488 = vmatprep.subr.mxu0 0.0
      %489 = vmatpush1.msra.mxu0 %v329
      %490 = vmatprep.subr.mxu0 0.0
      %491 = vmatpush1.msra.mxu0 %v330
      %492 = vmatprep.subr.mxu0 0.0
      %493 = vmatpush1.msra.mxu0 %v331
      %494 = vmatprep.subr.mxu0 0.0
      %495 = vmatpush1.msra.mxu0 %v332
      %496 = vmatprep.subr.mxu0 0.0
      %497 = vmatpush1.msra.mxu0 %v333
      %498 = vmatprep.subr.mxu0 0.0
      %499 = vmatpush1.msra.mxu0 %v334
      %500 = vmatprep.subr.mxu0 0.0
      %501 = vmatpush1.msra.mxu0 0.0
      %502 = vmatprep.subr.mxu0 0.0
      %503 = vmatpush1.msra.mxu0 0.0
      %504 = vmatprep.subr.mxu0 0.0
      %505 = vmatpush1.msra.mxu0 0.0
      %506 = vmatprep.subr.mxu0 0.0
      %507 = vmatpush1.msra.mxu0 0.0
      %508 = vmatprep.subr.mxu0 0.0
      %509 = vmatpush1.msra.mxu0 0.0
      %510 = vmatprep.subr.mxu0 0.0
      %511 = vmatpush1.msra.mxu0 0.0
      %512 = vmatprep.subr.mxu0 0.0
      %513 = vmatpush1.msra.mxu0 0.0
      %514 = vmatprep.subr.mxu0 0.0
      %515 = vmatpush1.msra.mxu0 0.0
      %516 = vmatprep.subr.mxu0 0.0
      %517 = vmatpush1.msra.mxu0 0.0
      %518 = vmatprep.subr.mxu0 0.0
      %519 = vmatpush1.msra.mxu0 0.0
      %520 = vmatprep.subr.mxu0 0.0
      %521 = vmatpush1.msra.mxu0 0.0
      %522 = vmatprep.subr.mxu0 0.0
      %523 = vmatpush1.msra.mxu0 0.0
      %524 = vmatprep.subr.mxu0 0.0
      %525 = vmatpush1.msra.mxu0 0.0
      %526 = vmatprep.subr.mxu0 0.0
      %527 = vmatpush1.msra.mxu0 0.0
      %528 = vmatprep.mubr.f32.mxu0 %v369
      %529 = vmatmul.mubr.f32.gmra.mrb[0].mxu0 %v253
      %v530 = vpop.f32.mrb[0].mxu0
      %v531 = vadd.f32 %v335, %v530
      %v532 = vpop.f32.mrb[0].mxu0
      %533 = vmatprep.mubr.f32.mxu0 %v372
      %534 = vmatmul.mubr.f32.gmra.mrb[0].mxu0 %v255
      %v535 = vpop.f32.mrb[0].mxu0
      %v536 = vadd.f32 %v336, %v535
      %v537 = vpop.f32.mrb[0].mxu0
      %538 = vmatprep.mubr.f32.mxu0 %v375
      %539 = vmatmul.mubr.f32.gmra.mrb[0].mxu0 %v257
      %v540 = vpop.f32.mrb[0].mxu0
      %v541 = vadd.f32 %v337, %v540
      %v542 = vpop.f32.mrb[0].mxu0
      %543 = vmatprep.mubr.f32.mxu0 %v378
      %544 = vmatmul.mubr.f32.gmra.mrb[0].mxu0 %v259
      %v545 = vpop.f32.mrb[0].mxu0
      %v546 = vadd.f32 %v338, %v545
      %v547 = vpop.f32.mrb[0].mxu0
      %548 = vmatprep.mubr.f32.mxu0 %v381
      %549 = vmatmul.mubr.f32.gmra.mrb[0].mxu0 %v261
      %v550 = vpop.f32.mrb[0].mxu0
      %v551 = vadd.f32 %v339, %v550
      %v552 = vpop.f32.mrb[0].mxu0
      %553 = vmatprep.mubr.f32.mxu0 %v384
      %554 = vmatmul.mubr.f32.gmra.mrb[0].mxu0 %v263
      %v555 = vpop.f32.mrb[0].mxu0
      %v556 = vadd.f32 %v340, %v555
      %v557 = vpop.f32.mrb[0].mxu0
      %558 = vmatprep.mubr.f32.mxu0 %v387
      %559 = vmatmul.mubr.f32.gmra.mrb[0].mxu0 %v265
      %v560 = vpop.f32.mrb[0].mxu0
      %v561 = vadd.f32 %v341, %v560
      %v562 = vpop.f32.mrb[0].mxu0
      %563 = vmatprep.mubr.f32.mxu0 %v390
      %564 = vmatmul.mubr.f32.gmra.mrb[0].mxu0 %v267
      %v565 = vpop.f32.mrb[0].mxu0
      %v566 = vadd.f32 %v342, %v565
      %v567 = vpop.f32.mrb[0].mxu0
      %568 = vmatprep.mubr.f32.mxu0 %v393
      %569 = vmatmul.mubr.f32.gmra.mrb[0].mxu0 %v269
      %v570 = vpop.f32.mrb[0].mxu0
      %v571 = vadd.f32 %v343, %v570
      %v572 = vpop.f32.mrb[0].mxu0
      %573 = vmatprep.mubr.f32.mxu0 %v396
      %574 = vmatmul.mubr.f32.gmra.mrb[0].mxu0 %v271
      %v575 = vpop.f32.mrb[0].mxu0
      %v576 = vadd.f32 %v344, %v575
      %v577 = vpop.f32.mrb[0].mxu0
      %578 = vmatprep.mubr.f32.mxu0 %v399
      %579 = vmatmul.mubr.f32.gmra.mrb[0].mxu0 %v273
      %v580 = vpop.f32.mrb[0].mxu0
      %v581 = vadd.f32 %v345, %v580
      %v582 = vpop.f32.mrb[0].mxu0
      %583 = vmatprep.mubr.f32.mxu0 %v402
      %584 = vmatmul.mubr.f32.gmra.mrb[0].mxu0 %v275
      %v585 = vpop.f32.mrb[0].mxu0
      %v586 = vadd.f32 %v346, %v585
      %v587 = vpop.f32.mrb[0].mxu0
      %588 = vmatprep.mubr.f32.mxu0 %v405
      %589 = vmatmul.mubr.f32.gmra.mrb[0].mxu0 %v277
      %v590 = vpop.f32.mrb[0].mxu0
      %v591 = vadd.f32 %v347, %v590
      %v592 = vpop.f32.mrb[0].mxu0
      %593 = vmatprep.mubr.f32.mxu0 %v408
      %594 = vmatmul.mubr.f32.gmra.mrb[0].mxu0 %v279
      %v595 = vpop.f32.mrb[0].mxu0
      %v596 = vadd.f32 %v348, %v595
      %v597 = vpop.f32.mrb[0].mxu0
      %598 = vmatprep.mubr.f32.mxu0 %v411
      %599 = vmatmul.mubr.f32.gmra.mrb[0].mxu0 %v281
      %v600 = vpop.f32.mrb[0].mxu0
      %v601 = vadd.f32 %v349, %v600
      %v602 = vpop.f32.mrb[0].mxu0
      %603 = vmatprep.mubr.f32.mxu0 %v414
      %604 = vmatmul.mubr.f32.gmra.mrb[0].mxu0 %v283
      %v605 = vpop.f32.mrb[0].mxu0
      %v606 = vadd.f32 %v350, %v605
      %v607 = vpop.f32.mrb[0].mxu0
      %608 = vmatprep.mubr.f32.mxu0 %v417
      %609 = vmatmul.mubr.f32.gmra.mrb[0].mxu0 %v285
      %v610 = vpop.f32.mrb[0].mxu0
      %v611 = vadd.f32 %v351, %v610
      %v612 = vpop.f32.mrb[0].mxu0
      %613 = vmatprep.mubr.f32.mxu0 %v420
      %614 = vmatmul.mubr.f32.gmra.mrb[0].mxu0 %v287
      %v615 = vpop.f32.mrb[0].mxu0
      %v616 = vadd.f32 %v352, %v615
      %v617 = vpop.f32.mrb[0].mxu0
      %618 = vmatprep.mubr.f32.mxu0 %v423
      %619 = vmatmul.mubr.f32.gmra.mrb[0].mxu0 %v289
      %v620 = vpop.f32.mrb[0].mxu0
      %v621 = vadd.f32 %v353, %v620
      %v622 = vpop.f32.mrb[0].mxu0
      %623 = vmatprep.mubr.f32.mxu0 %v426
      %624 = vmatmul.mubr.f32.gmra.mrb[0].mxu0 %v291
      %v625 = vpop.f32.mrb[0].mxu0
      %v626 = vadd.f32 %v354, %v625
      %v627 = vpop.f32.mrb[0].mxu0
      %628 = vmatprep.mubr.f32.mxu0 %v429
      %629 = vmatmul.mubr.f32.gmra.mrb[0].mxu0 %v293
      %v630 = vpop.f32.mrb[0].mxu0
      %v631 = vadd.f32 %v355, %v630
      %v632 = vpop.f32.mrb[0].mxu0
      %633 = vmatprep.mubr.f32.mxu0 %v432
      %634 = vmatmul.mubr.f32.gmra.mrb[0].mxu0 %v295
      %v635 = vpop.f32.mrb[0].mxu0
      %v636 = vadd.f32 %v356, %v635
      %v637 = vpop.f32.mrb[0].mxu0
      %638 = vmatprep.mubr.f32.mxu0 %v435
      %639 = vmatmul.mubr.f32.gmra.mrb[0].mxu0 %v297
      %v640 = vpop.f32.mrb[0].mxu0
      %v641 = vadd.f32 %v357, %v640
      %v642 = vpop.f32.mrb[0].mxu0
      %643 = vmatprep.mubr.f32.mxu0 %v438
      %644 = vmatmul.mubr.f32.gmra.mrb[0].mxu0 %v299
      %v645 = vpop.f32.mrb[0].mxu0
      %v646 = vadd.f32 %v358, %v645
      %v647 = vpop.f32.mrb[0].mxu0
      %648 = vmatprep.mubr.f32.mxu0 %v441
      %649 = vmatmul.mubr.f32.gmra.mrb[0].mxu0 %v301
      %v650 = vpop.f32.mrb[0].mxu0
      %v651 = vadd.f32 %v359, %v650
      %v652 = vpop.f32.mrb[0].mxu0
      %653 = vmatprep.mubr.f32.mxu0 %v444
      %654 = vmatmul.mubr.f32.gmra.mrb[0].mxu0 %v303
      %v655 = vpop.f32.mrb[0].mxu0
      %v656 = vadd.f32 %v360, %v655
      %v657 = vpop.f32.mrb[0].mxu0
      %658 = vmatprep.mubr.f32.mxu0 %v447
      %659 = vmatmul.mubr.f32.gmra.mrb[0].mxu0 %v305
      %v660 = vpop.f32.mrb[0].mxu0
      %v661 = vadd.f32 %v361, %v660
      %v662 = vpop.f32.mrb[0].mxu0
      %663 = vmatprep.mubr.f32.mxu0 %v450
      %664 = vmatmul.mubr.f32.gmra.mrb[0].mxu0 %v307
      %v665 = vpop.f32.mrb[0].mxu0
      %v666 = vadd.f32 %v362, %v665
      %v667 = vpop.f32.mrb[0].mxu0
      %668 = vmatprep.mubr.f32.mxu0 %v453
      %669 = vmatmul.mubr.f32.gmra.mrb[0].mxu0 %v309
      %v670 = vpop.f32.mrb[0].mxu0
      %v671 = vadd.f32 %v363, %v670
      %v672 = vpop.f32.mrb[0].mxu0
      %673 = vmatprep.mubr.f32.mxu0 %v456
      %674 = vmatmul.mubr.f32.gmra.mrb[0].mxu0 %v311
      %v675 = vpop.f32.mrb[0].mxu0
      %v676 = vadd.f32 %v364, %v675
      %v677 = vpop.f32.mrb[0].mxu0
      %678 = vmatprep.mubr.f32.mxu0 %v459
      %679 = vmatmul.mubr.f32.gmra.mrb[0].mxu0 %v313
      %v680 = vpop.f32.mrb[0].mxu0
      %v681 = vadd.f32 %v365, %v680
      %v682 = vpop.f32.mrb[0].mxu0
      %683 = vmatprep.mubr.f32.mxu0 %v462
      %684 = vmatmul.mubr.f32.gmra.mrb[0].mxu0 %v315
      %v685 = vpop.f32.mrb[0].mxu0
      %v686 = vadd.f32 %v366, %v685
      %v687 = vpop.f32.mrb[0].mxu0
      %688 = vdwg.mxu0
      %v689 = vld [vmem:[%s3] sm:$0x1]
      %v691 = vlaneseq
      %v692 = vshrl.u32 %v691, 7
      %v693 = vsub.s32 0, %v692
      %v694 = vrot.slane %v689, %v693
      %v696 = vmul.f32 %v531, %v694
      %v697 = vmul.f32 %v536, %v694
      %v698 = vmul.f32 %v541, %v694
      %v699 = vmul.f32 %v546, %v694
      %v700 = vmul.f32 %v551, %v694
      %v701 = vmul.f32 %v556, %v694
      %v702 = vmul.f32 %v561, %v694
      %v703 = vmul.f32 %v566, %v694
      %v704 = vmul.f32 %v571, %v694
      %v705 = vmul.f32 %v576, %v694
      %v706 = vmul.f32 %v581, %v694
      %v707 = vmul.f32 %v586, %v694
      %v708 = vmul.f32 %v591, %v694
      %v709 = vmul.f32 %v596, %v694
      %v710 = vmul.f32 %v601, %v694
      %v711 = vmul.f32 %v606, %v694
      %v712 = vmul.f32 %v611, %v694
      %v713 = vmul.f32 %v616, %v694
      %v714 = vmul.f32 %v621, %v694
      %v715 = vmul.f32 %v626, %v694
      %v716 = vmul.f32 %v631, %v694
      %v717 = vmul.f32 %v636, %v694
      %v718 = vmul.f32 %v641, %v694
      %v719 = vmul.f32 %v646, %v694
      %v720 = vmul.f32 %v651, %v694
      %v721 = vmul.f32 %v656, %v694
      %v722 = vmul.f32 %v661, %v694
      %v723 = vmul.f32 %v666, %v694
      %v724 = vmul.f32 %v671, %v694
      %v725 = vmul.f32 %v676, %v694
      %v726 = vmul.f32 %v681, %v694
      %v727 = vmul.f32 %v686, %v694
      %v728 = vld [vmem:[%s4] sm:$0x1]
      %v730 = vlaneseq
      %v731 = vshrl.u32 %v730, 7
      %v732 = vsub.s32 0, %v731
      %v733 = vrot.slane %v728, %v732
      %v735 = vadd.f32 %v696, %v733
      %v736 = vadd.f32 %v697, %v733
      %v737 = vadd.f32 %v698, %v733
      %v738 = vadd.f32 %v699, %v733
      %v739 = vadd.f32 %v700, %v733
      %v740 = vadd.f32 %v701, %v733
      %v741 = vadd.f32 %v702, %v733
      %v742 = vadd.f32 %v703, %v733
      %v743 = vadd.f32 %v704, %v733
      %v744 = vadd.f32 %v705, %v733
      %v745 = vadd.f32 %v706, %v733
      %v746 = vadd.f32 %v707, %v733
      %v747 = vadd.f32 %v708, %v733
      %v748 = vadd.f32 %v709, %v733
      %v749 = vadd.f32 %v710, %v733
      %v750 = vadd.f32 %v711, %v733
      %v751 = vadd.f32 %v712, %v733
      %v752 = vadd.f32 %v713, %v733
      %v753 = vadd.f32 %v714, %v733
      %v754 = vadd.f32 %v715, %v733
      %v755 = vadd.f32 %v716, %v733
      %v756 = vadd.f32 %v717, %v733
      %v757 = vadd.f32 %v718, %v733
      %v758 = vadd.f32 %v719, %v733
      %v759 = vadd.f32 %v720, %v733
      %v760 = vadd.f32 %v721, %v733
      %v761 = vadd.f32 %v722, %v733
      %v762 = vadd.f32 %v723, %v733
      %v763 = vadd.f32 %v724, %v733
      %v764 = vadd.f32 %v725, %v733
      %v765 = vadd.f32 %v726, %v733
      %v766 = vadd.f32 %v727, %v733
      %v767 = vmax.f32 %v735, 0.0
      %v768 = vmax.f32 %v736, 0.0
      %v769 = vmax.f32 %v737, 0.0
      %v770 = vmax.f32 %v738, 0.0
      %v771 = vmax.f32 %v739, 0.0
      %v772 = vmax.f32 %v740, 0.0
      %v773 = vmax.f32 %v741, 0.0
      %v774 = vmax.f32 %v742, 0.0
      %v775 = vmax.f32 %v743, 0.0
      %v776 = vmax.f32 %v744, 0.0
      %v777 = vmax.f32 %v745, 0.0
      %v778 = vmax.f32 %v746, 0.0
      %v779 = vmax.f32 %v747, 0.0
      %v780 = vmax.f32 %v748, 0.0
      %v781 = vmax.f32 %v749, 0.0
      %v782 = vmax.f32 %v750, 0.0
      %v783 = vmax.f32 %v751, 0.0
      %v784 = vmax.f32 %v752, 0.0
      %v785 = vmax.f32 %v753, 0.0
      %v786 = vmax.f32 %v754, 0.0
      %v787 = vmax.f32 %v755, 0.0
      %v788 = vmax.f32 %v756, 0.0
      %v789 = vmax.f32 %v757, 0.0
      %v790 = vmax.f32 %v758, 0.0
      %v791 = vmax.f32 %v759, 0.0
      %v792 = vmax.f32 %v760, 0.0
      %v793 = vmax.f32 %v761, 0.0
      %v794 = vmax.f32 %v762, 0.0
      %v795 = vmax.f32 %v763, 0.0
      %v796 = vmax.f32 %v764, 0.0
      %v797 = vmax.f32 %v765, 0.0
      %v798 = vmax.f32 %v766, 0.0
      %799 = vst.msk [vmem:[%s251] sm:$0xff] %vm367, %v767
      %800 = vst.msk [vmem:[%s251 + $0x8] sm:$0xff] %vm367, %v768
      %801 = vst.msk [vmem:[%s251 + $0x10] sm:$0xff] %vm367, %v769
      %802 = vst.msk [vmem:[%s251 + $0x18] sm:$0xff] %vm367, %v770
      %803 = vst.msk [vmem:[%s251 + $0x20] sm:$0xff] %vm367, %v771
      %804 = vst.msk [vmem:[%s251 + $0x28] sm:$0xff] %vm367, %v772
      %805 = vst.msk [vmem:[%s251 + $0x30] sm:$0xff] %vm367, %v773
      %806 = vst.msk [vmem:[%s251 + $0x38] sm:$0xff] %vm367, %v774
      %807 = vst.msk [vmem:[%s251 + $0x40] sm:$0xff] %vm367, %v775
      %808 = vst.msk [vmem:[%s251 + $0x48] sm:$0xff] %vm367, %v776
      %809 = vst.msk [vmem:[%s251 + $0x50] sm:$0xff] %vm367, %v777
      %810 = vst.msk [vmem:[%s251 + $0x58] sm:$0xff] %vm367, %v778
      %811 = vst.msk [vmem:[%s251 + $0x60] sm:$0xff] %vm367, %v779
      %812 = vst.msk [vmem:[%s251 + $0x68] sm:$0xff] %vm367, %v780
      %813 = vst.msk [vmem:[%s251 + $0x70] sm:$0xff] %vm367, %v781
      %814 = vst.msk [vmem:[%s251 + $0x78] sm:$0xff] %vm367, %v782
      %815 = vst.msk [vmem:[%s251 + $0x80] sm:$0xff] %vm367, %v783
      %816 = vst.msk [vmem:[%s251 + $0x88] sm:$0xff] %vm367, %v784
      %817 = vst.msk [vmem:[%s251 + $0x90] sm:$0xff] %vm367, %v785
      %818 = vst.msk [vmem:[%s251 + $0x98] sm:$0xff] %vm367, %v786
      %819 = vst.msk [vmem:[%s251 + $0xa0] sm:$0xff] %vm367, %v787
      %820 = vst.msk [vmem:[%s251 + $0xa8] sm:$0xff] %vm367, %v788
      %821 = vst.msk [vmem:[%s251 + $0xb0] sm:$0xff] %vm367, %v789
      %822 = vst.msk [vmem:[%s251 + $0xb8] sm:$0xff] %vm367, %v790
      %823 = vst.msk [vmem:[%s251 + $0xc0] sm:$0xff] %vm367, %v791
      %824 = vst.msk [vmem:[%s251 + $0xc8] sm:$0xff] %vm367, %v792
      %825 = vst.msk [vmem:[%s251 + $0xd0] sm:$0xff] %vm367, %v793
      %826 = vst.msk [vmem:[%s251 + $0xd8] sm:$0xff] %vm367, %v794
      %827 = vst.msk [vmem:[%s251 + $0xe0] sm:$0xff] %vm367, %v795
      %828 = vst.msk [vmem:[%s251 + $0xe8] sm:$0xff] %vm367, %v796
      %829 = vst.msk [vmem:[%s251 + $0xf0] sm:$0xff] %vm367, %v797
      %830 = vst.msk [vmem:[%s251 + $0xf8] sm:$0xff] %vm367, %v798
      %s831 = smul.u32 32, %s16
      %p832 = scmp.lt.s32.totalorder %s831, 63
      %s833 = scalar_select %p832, %s831, 63
      %s834 = smul.addr %s833, 8
      %s835 = scalar_lea.vmem %s5, %s834
      // Predicated region
      $region41: #{_lambda_.10} parent=39 // pred_check
        %p836 = pneg %p149
      $region42: #{_lambda_.10} parent=39 // pred_check_branch
        %838 = sbr.rel (%p836) target = $region44
      $region43: #{_lambda_.10} parent=39 // pred_region
        %s839 = smul.u32 32, %s16
      $region44: #{_lambda_.10} parent=39 // pred_fallthru
        _
    $region40: #{_lambda_.10} parent=5 // pred_fallthru
      _
    %p840 = scmp.le.s32.totalorder 2, %s11
    // Predicated region
    $region45: #{_lambda_.10} parent=5 // pred_check
      %p841 = pneg %p840
    $region46: #{_lambda_.10} parent=5 // pred_check_branch
      %843 = sbr.rel (%p841) target = $region48
    $region47: #{_lambda_.10} parent=5 // pred_region
      %s844 = ssub.s32 %s11, 2
      // Predicated region
      $region49: #{_lambda_.10} parent=47 // pred_check
        %p845 = pneg %p155
      $region50: #{_lambda_.10} parent=47 // pred_check_branch
        %847 = sbr.rel (%p845) target = $region52
      $region51: #{_lambda_.10} parent=47 // pred_region
        %s848 = smul.u32 32, %s17
        %p849 = scmp.lt.s32.totalorder %s848, 63
        %s850 = scalar_select %p849, %s848, 63
        %s851 = smul.addr %s850, 8
        %s852 = scalar_lea.vmem %s5, %s851
      $region52: #{_lambda_.10} parent=47 // pred_fallthru
        _
    $region48: #{_lambda_.10} parent=5 // pred_fallthru
      _
  $region6: #{_lambda_.10} parent=0 // loop_footer
    %s15 = sadd.s32 1, %s11
  $region7: #{_lambda_.10} parent=0 // loop_footer_branch
    %10 = sbr.rel target = $region3
  $region8: #{_lambda_.10} parent=0 // loop_exit
    _

// kernel: _lambda_.11
$region0: #{_lambda_.11}
  #allocation0 [shape = 'u32[]', space=smem, size = 0x4, offset = 0x4, fixed_abs, tag = 'smem constant byte address 0x4 - core index']
  #allocation1 [shape = 'u32[144,128]{1,0:T(1,128)}', space=vmem, size = 0x12000, scoped, tag = 'internal scratch']
  %s0 = inlined_call_operand.vmem [shape: f32[128,144], index: 0, kind: input, shape index: {}]
  %s1 = inlined_call_operand.vmem [shape: f32[144,32], index: 1, kind: input, shape index: {}]
  %s2 = inlined_call_operand.vmem [shape: f32[1,32], index: 2, kind: input, shape index: {}]
  %s3 = inlined_call_operand.vmem [shape: f32[1,32], index: 3, kind: input, shape index: {}]
  %s4 = inlined_call_operand.vmem [shape: f32[128,32], index: 4, kind: output, shape index: {}]
  %s5 = sld [smem:[#allocation0]]
  $region26: #{_lambda_.11} parent=0
    _
  %s7 = ssub.s32 1, %s5
  %s8 = scalar_select 0, %s7, %s5
  // Predicated region
  $region2: #{_lambda_.11} parent=0 // pred_check
    _
  $region3: #{_lambda_.11} parent=0 // pred_check_branch
    %10 = sbr.rel (0) target = $region5
  $region4: #{_lambda_.11} parent=0 // pred_region
    _
  $region5: #{_lambda_.11} parent=0 // pred_fallthru
    _
  // Predicated region
  $region6: #{_lambda_.11} parent=0 // pred_check
    _
  $region7: #{_lambda_.11} parent=0 // pred_check_branch
    %12 = sbr.rel (0) target = $region9
  $region8: #{_lambda_.11} parent=0 // pred_region
    _
  $region9: #{_lambda_.11} parent=0 // pred_fallthru
    _
  // Predicated region
  $region10: #{_lambda_.11} parent=0 // pred_check
    _
  $region11: #{_lambda_.11} parent=0 // pred_check_branch
    %14 = sbr.rel (0) target = $region13
  $region12: #{_lambda_.11} parent=0 // pred_region
    _
  $region13: #{_lambda_.11} parent=0 // pred_fallthru
    _
  // Predicated region
  $region14: #{_lambda_.11} parent=0 // pred_check
    _
  $region15: #{_lambda_.11} parent=0 // pred_check_branch
    %16 = sbr.rel (0) target = $region17
  $region16: #{_lambda_.11} parent=0 // pred_region
    _
  $region17: #{_lambda_.11} parent=0 // pred_fallthru
    _
  %v17 = vld [vmem:[%s0] sm:$0xff]
  %v18 = vld [vmem:[%s0 + $0x8] sm:$0xff]
  %v19 = vld [vmem:[%s0 + $0x10] sm:$0xff]
  %v20 = vld [vmem:[%s0 + $0x18] sm:$0xff]
  %v21 = vld [vmem:[%s0 + $0x20] sm:$0xff]
  %v22 = vld [vmem:[%s0 + $0x28] sm:$0xff]
  %v23 = vld [vmem:[%s0 + $0x30] sm:$0xff]
  %v24 = vld [vmem:[%s0 + $0x38] sm:$0xff]
  %v25 = vld [vmem:[%s0 + $0x40] sm:$0xff]
  %v26 = vld [vmem:[%s0 + $0x48] sm:$0xff]
  %v27 = vld [vmem:[%s0 + $0x50] sm:$0xff]
  %v28 = vld [vmem:[%s0 + $0x58] sm:$0xff]
  %v29 = vld [vmem:[%s0 + $0x60] sm:$0xff]
  %v30 = vld [vmem:[%s0 + $0x68] sm:$0xff]
  %v31 = vld [vmem:[%s0 + $0x70] sm:$0xff]
  %v32 = vld [vmem:[%s0 + $0x78] sm:$0xff]
  %v33 = vld [vmem:[%s0 + $0x80] sm:$0xff]
  %v34 = vld [vmem:[%s0 + $0x88] sm:$0xff]
  %v35 = vld [vmem:[%s0 + $0x90] sm:$0xff]
  %v36 = vld [vmem:[%s0 + $0x98] sm:$0xff]
  %v37 = vld [vmem:[%s0 + $0xa0] sm:$0xff]
  %v38 = vld [vmem:[%s0 + $0xa8] sm:$0xff]
  %v39 = vld [vmem:[%s0 + $0xb0] sm:$0xff]
  %v40 = vld [vmem:[%s0 + $0xb8] sm:$0xff]
  %v41 = vld [vmem:[%s0 + $0xc0] sm:$0xff]
  %v42 = vld [vmem:[%s0 + $0xc8] sm:$0xff]
  %v43 = vld [vmem:[%s0 + $0xd0] sm:$0xff]
  %v44 = vld [vmem:[%s0 + $0xd8] sm:$0xff]
  %v45 = vld [vmem:[%s0 + $0xe0] sm:$0xff]
  %v46 = vld [vmem:[%s0 + $0xe8] sm:$0xff]
  %v47 = vld [vmem:[%s0 + $0xf0] sm:$0xff]
  %v48 = vld [vmem:[%s0 + $0xf8] sm:$0xff]
  %v49 = vld [vmem:[%s1] sm:$0xff]
  %v50 = vld [vmem:[%s1 + $0x8] sm:$0xff]
  %v51 = vld [vmem:[%s1 + $0x10] sm:$0xff]
  %v52 = vld [vmem:[%s1 + $0x18] sm:$0xff]
  %v53 = vld [vmem:[%s1 + $0x20] sm:$0xff]
  %v54 = vld [vmem:[%s1 + $0x28] sm:$0xff]
  %v55 = vld [vmem:[%s1 + $0x30] sm:$0xff]
  %v56 = vld [vmem:[%s1 + $0x38] sm:$0xff]
  %v57 = vld [vmem:[%s1 + $0x40] sm:$0xff]
  %v58 = vld [vmem:[%s1 + $0x48] sm:$0xff]
  %v59 = vld [vmem:[%s1 + $0x50] sm:$0xff]
  %v60 = vld [vmem:[%s1 + $0x58] sm:$0xff]
  %v61 = vld [vmem:[%s1 + $0x60] sm:$0xff]
  %v62 = vld [vmem:[%s1 + $0x68] sm:$0xff]
  %v63 = vld [vmem:[%s1 + $0x70] sm:$0xff]
  %v64 = vld [vmem:[%s1 + $0x78] sm:$0xff]
  %v65 = vld [vmem:[%s1 + $0x80] sm:$0xff]
  %v66 = vld [vmem:[%s1 + $0x88] sm:$0xff]
  %vm67 = vcmask 130048
  %v69 = vsel %vm67, %v18, 0
  %v72 = vsel %vm67, %v20, 0
  %v75 = vsel %vm67, %v22, 0
  %v78 = vsel %vm67, %v24, 0
  %v81 = vsel %vm67, %v26, 0
  %v84 = vsel %vm67, %v28, 0
  %v87 = vsel %vm67, %v30, 0
  %v90 = vsel %vm67, %v32, 0
  %v93 = vsel %vm67, %v34, 0
  %v96 = vsel %vm67, %v36, 0
  %v99 = vsel %vm67, %v38, 0
  %v102 = vsel %vm67, %v40, 0
  %v105 = vsel %vm67, %v42, 0
  %v108 = vsel %vm67, %v44, 0
  %v111 = vsel %vm67, %v46, 0
  %v114 = vsel %vm67, %v48, 0
  %116 = vmatprep.subr.mxu0 0.0
  %117 = vmatpush1.msra.mxu0 %v49
  %118 = vmatprep.subr.mxu0 0.0
  %119 = vmatpush1.msra.mxu0 %v50
  %120 = vmatprep.subr.mxu0 0.0
  %121 = vmatpush1.msra.mxu0 %v51
  %122 = vmatprep.subr.mxu0 0.0
  %123 = vmatpush1.msra.mxu0 %v52
  %124 = vmatprep.subr.mxu0 0.0
  %125 = vmatpush1.msra.mxu0 %v53
  %126 = vmatprep.subr.mxu0 0.0
  %127 = vmatpush1.msra.mxu0 %v54
  %128 = vmatprep.subr.mxu0 0.0
  %129 = vmatpush1.msra.mxu0 %v55
  %130 = vmatprep.subr.mxu0 0.0
  %131 = vmatpush1.msra.mxu0 %v56
  %132 = vmatprep.subr.mxu0 0.0
  %133 = vmatpush1.msra.mxu0 %v57
  %134 = vmatprep.subr.mxu0 0.0
  %135 = vmatpush1.msra.mxu0 %v58
  %136 = vmatprep.subr.mxu0 0.0
  %137 = vmatpush1.msra.mxu0 %v59
  %138 = vmatprep.subr.mxu0 0.0
  %139 = vmatpush1.msra.mxu0 %v60
  %140 = vmatprep.subr.mxu0 0.0
  %141 = vmatpush1.msra.mxu0 %v61
  %142 = vmatprep.subr.mxu0 0.0
  %143 = vmatpush1.msra.mxu0 %v62
  %144 = vmatprep.subr.mxu0 0.0
  %145 = vmatpush1.msra.mxu0 %v63
  %146 = vmatprep.subr.mxu0 0.0
  %147 = vmatpush1.msra.mxu0 %v64
  %148 = vmatprep.subr.mxu0 0.0
  %149 = vmatpush1.msra.mxu0 %v65
  %150 = vmatprep.subr.mxu0 0.0
  %151 = vmatpush1.msra.mxu0 %v66
  %152 = vmatprep.subr.mxu0 0.0
  %153 = vmatpush1.msra.mxu0 0.0
  %154 = vmatprep.subr.mxu0 0.0
  %155 = vmatpush1.msra.mxu0 0.0
  %156 = vmatprep.subr.mxu0 0.0
  %157 = vmatpush1.msra.mxu0 0.0
  %158 = vmatprep.subr.mxu0 0.0
  %159 = vmatpush1.msra.mxu0 0.0
  %160 = vmatprep.subr.mxu0 0.0
  %161 = vmatpush1.msra.mxu0 0.0
  %162 = vmatprep.subr.mxu0 0.0
  %163 = vmatpush1.msra.mxu0 0.0
  %164 = vmatprep.subr.mxu0 0.0
  %165 = vmatpush1.msra.mxu0 0.0
  %166 = vmatprep.subr.mxu0 0.0
  %167 = vmatpush1.msra.mxu0 0.0
  %168 = vmatprep.subr.mxu0 0.0
  %169 = vmatpush1.msra.mxu0 0.0
  %170 = vmatprep.subr.mxu0 0.0
  %171 = vmatpush1.msra.mxu0 0.0
  %172 = vmatprep.subr.mxu0 0.0
  %173 = vmatpush1.msra.mxu0 0.0
  %174 = vmatprep.subr.mxu0 0.0
  %175 = vmatpush1.msra.mxu0 0.0
  %176 = vmatprep.subr.mxu0 0.0
  %177 = vmatpush1.msra.mxu0 0.0
  %178 = vmatprep.subr.mxu0 0.0
  %179 = vmatpush1.msra.mxu0 0.0
  %180 = vmatprep.mubr.f32.mxu0 %v69
  %181 = vmatmul.mubr.f32.gmra.mrb[0].mxu0 %v17
  %v182 = vpop.f32.mrb[0].mxu0
  %v183 = vadd.f32 0.0, %v182
  %v184 = vpop.f32.mrb[0].mxu0
  %185 = vmatprep.mubr.f32.mxu0 %v72
  %186 = vmatmul.mubr.f32.gmra.mrb[0].mxu0 %v19
  %v187 = vpop.f32.mrb[0].mxu0
  %v188 = vadd.f32 0.0, %v187
  %v189 = vpop.f32.mrb[0].mxu0
  %190 = vmatprep.mubr.f32.mxu0 %v75
  %191 = vmatmul.mubr.f32.gmra.mrb[0].mxu0 %v21
  %v192 = vpop.f32.mrb[0].mxu0
  %v193 = vadd.f32 0.0, %v192
  %v194 = vpop.f32.mrb[0].mxu0
  %195 = vmatprep.mubr.f32.mxu0 %v78
  %196 = vmatmul.mubr.f32.gmra.mrb[0].mxu0 %v23
  %v197 = vpop.f32.mrb[0].mxu0
  %v198 = vadd.f32 0.0, %v197
  %v199 = vpop.f32.mrb[0].mxu0
  %200 = vmatprep.mubr.f32.mxu0 %v81
  %201 = vmatmul.mubr.f32.gmra.mrb[0].mxu0 %v25
  %v202 = vpop.f32.mrb[0].mxu0
  %v203 = vadd.f32 0.0, %v202
  %v204 = vpop.f32.mrb[0].mxu0
  %205 = vmatprep.mubr.f32.mxu0 %v84
  %206 = vmatmul.mubr.f32.gmra.mrb[0].mxu0 %v27
  %v207 = vpop.f32.mrb[0].mxu0
  %v208 = vadd.f32 0.0, %v207
  %v209 = vpop.f32.mrb[0].mxu0
  %210 = vmatprep.mubr.f32.mxu0 %v87
  %211 = vmatmul.mubr.f32.gmra.mrb[0].mxu0 %v29
  %v212 = vpop.f32.mrb[0].mxu0
  %v213 = vadd.f32 0.0, %v212
  %v214 = vpop.f32.mrb[0].mxu0
  %215 = vmatprep.mubr.f32.mxu0 %v90
  %216 = vmatmul.mubr.f32.gmra.mrb[0].mxu0 %v31
  %v217 = vpop.f32.mrb[0].mxu0
  %v218 = vadd.f32 0.0, %v217
  %v219 = vpop.f32.mrb[0].mxu0
  %220 = vmatprep.mubr.f32.mxu0 %v93
  %221 = vmatmul.mubr.f32.gmra.mrb[0].mxu0 %v33
  %v222 = vpop.f32.mrb[0].mxu0
  %v223 = vadd.f32 0.0, %v222
  %v224 = vpop.f32.mrb[0].mxu0
  %225 = vmatprep.mubr.f32.mxu0 %v96
  %226 = vmatmul.mubr.f32.gmra.mrb[0].mxu0 %v35
  %v227 = vpop.f32.mrb[0].mxu0
  %v228 = vadd.f32 0.0, %v227
  %v229 = vpop.f32.mrb[0].mxu0
  %230 = vmatprep.mubr.f32.mxu0 %v99
  %231 = vmatmul.mubr.f32.gmra.mrb[0].mxu0 %v37
  %v232 = vpop.f32.mrb[0].mxu0
  %v233 = vadd.f32 0.0, %v232
  %v234 = vpop.f32.mrb[0].mxu0
  %235 = vmatprep.mubr.f32.mxu0 %v102
  %236 = vmatmul.mubr.f32.gmra.mrb[0].mxu0 %v39
  %v237 = vpop.f32.mrb[0].mxu0
  %v238 = vadd.f32 0.0, %v237
  %v239 = vpop.f32.mrb[0].mxu0
  %240 = vmatprep.mubr.f32.mxu0 %v105
  %241 = vmatmul.mubr.f32.gmra.mrb[0].mxu0 %v41
  %v242 = vpop.f32.mrb[0].mxu0
  %v243 = vadd.f32 0.0, %v242
  %v244 = vpop.f32.mrb[0].mxu0
  %245 = vmatprep.mubr.f32.mxu0 %v108
  %246 = vmatmul.mubr.f32.gmra.mrb[0].mxu0 %v43
  %v247 = vpop.f32.mrb[0].mxu0
  %v248 = vadd.f32 0.0, %v247
  %v249 = vpop.f32.mrb[0].mxu0
  %250 = vmatprep.mubr.f32.mxu0 %v111
  %251 = vmatmul.mubr.f32.gmra.mrb[0].mxu0 %v45
  %v252 = vpop.f32.mrb[0].mxu0
  %v253 = vadd.f32 0.0, %v252
  %v254 = vpop.f32.mrb[0].mxu0
  %255 = vmatprep.mubr.f32.mxu0 %v114
  %256 = vmatmul.mubr.f32.gmra.mrb[0].mxu0 %v47
  %v257 = vpop.f32.mrb[0].mxu0
  %v258 = vadd.f32 0.0, %v257
  %v259 = vpop.f32.mrb[0].mxu0
  %260 = vdwg.mxu0
  %v261 = vld [vmem:[%s2] sm:$0x1]
  %v263 = vlaneseq
  %v264 = vshrl.u32 %v263, 7
  %v265 = vsub.s32 0, %v264
  %v266 = vrot.slane %v261, %v265
  %v268 = vmul.f32 %v183, %v266
  %v269 = vmul.f32 %v188, %v266
  %v270 = vmul.f32 %v193, %v266
  %v271 = vmul.f32 %v198, %v266
  %v272 = vmul.f32 %v203, %v266
  %v273 = vmul.f32 %v208, %v266
  %v274 = vmul.f32 %v213, %v266
  %v275 = vmul.f32 %v218, %v266
  %v276 = vmul.f32 %v223, %v266
  %v277 = vmul.f32 %v228, %v266
  %v278 = vmul.f32 %v233, %v266
  %v279 = vmul.f32 %v238, %v266
  %v280 = vmul.f32 %v243, %v266
  %v281 = vmul.f32 %v248, %v266
  %v282 = vmul.f32 %v253, %v266
  %v283 = vmul.f32 %v258, %v266
  %v284 = vld [vmem:[%s3] sm:$0x1]
  %v286 = vlaneseq
  %v287 = vshrl.u32 %v286, 7
  %v288 = vsub.s32 0, %v287
  %v289 = vrot.slane %v284, %v288
  %v291 = vadd.f32 %v268, %v289
  %v292 = vadd.f32 %v269, %v289
  %v293 = vadd.f32 %v270, %v289
  %v294 = vadd.f32 %v271, %v289
  %v295 = vadd.f32 %v272, %v289
  %v296 = vadd.f32 %v273, %v289
  %v297 = vadd.f32 %v274, %v289
  %v298 = vadd.f32 %v275, %v289
  %v299 = vadd.f32 %v276, %v289
  %v300 = vadd.f32 %v277, %v289
  %v301 = vadd.f32 %v278, %v289
  %v302 = vadd.f32 %v279, %v289
  %v303 = vadd.f32 %v280, %v289
  %v304 = vadd.f32 %v281, %v289
  %v305 = vadd.f32 %v282, %v289
  %v306 = vadd.f32 %v283, %v289
  %v307 = vmax.f32 %v291, 0.0
  %v308 = vmax.f32 %v292, 0.0
  %v309 = vmax.f32 %v293, 0.0
  %v310 = vmax.f32 %v294, 0.0
  %v311 = vmax.f32 %v295, 0.0
  %v312 = vmax.f32 %v296, 0.0
  %v313 = vmax.f32 %v297, 0.0
  %v314 = vmax.f32 %v298, 0.0
  %v315 = vmax.f32 %v299, 0.0
  %v316 = vmax.f32 %v300, 0.0
  %v317 = vmax.f32 %v301, 0.0
  %v318 = vmax.f32 %v302, 0.0
  %v319 = vmax.f32 %v303, 0.0
  %v320 = vmax.f32 %v304, 0.0
  %v321 = vmax.f32 %v305, 0.0
  %v322 = vmax.f32 %v306, 0.0
  %vm323 = vcmask 261120
  %324 = vst.msk [vmem:[%s4] sm:$0xff] %vm323, %v307
  %325 = vst.msk [vmem:[%s4 + $0x8] sm:$0xff] %vm323, %v308
  %326 = vst.msk [vmem:[%s4 + $0x10] sm:$0xff] %vm323, %v309
  %327 = vst.msk [vmem:[%s4 + $0x18] sm:$0xff] %vm323, %v310
  %328 = vst.msk [vmem:[%s4 + $0x20] sm:$0xff] %vm323, %v311
  %329 = vst.msk [vmem:[%s4 + $0x28] sm:$0xff] %vm323, %v312
  %330 = vst.msk [vmem:[%s4 + $0x30] sm:$0xff] %vm323, %v313
  %331 = vst.msk [vmem:[%s4 + $0x38] sm:$0xff] %vm323, %v314
  %332 = vst.msk [vmem:[%s4 + $0x40] sm:$0xff] %vm323, %v315
  %333 = vst.msk [vmem:[%s4 + $0x48] sm:$0xff] %vm323, %v316
  %334 = vst.msk [vmem:[%s4 + $0x50] sm:$0xff] %vm323, %v317
  %335 = vst.msk [vmem:[%s4 + $0x58] sm:$0xff] %vm323, %v318
  %336 = vst.msk [vmem:[%s4 + $0x60] sm:$0xff] %vm323, %v319
  %337 = vst.msk [vmem:[%s4 + $0x68] sm:$0xff] %vm323, %v320
  %338 = vst.msk [vmem:[%s4 + $0x70] sm:$0xff] %vm323, %v321
  %339 = vst.msk [vmem:[%s4 + $0x78] sm:$0xff] %vm323, %v322
  // Predicated region
  $region18: #{_lambda_.11} parent=0 // pred_check
    _
  $region19: #{_lambda_.11} parent=0 // pred_check_branch
    %341 = sbr.rel (0) target = $region21
  $region20: #{_lambda_.11} parent=0 // pred_region
    _
  $region21: #{_lambda_.11} parent=0 // pred_fallthru
    _
  // Predicated region
  $region22: #{_lambda_.11} parent=0 // pred_check
    _
  $region23: #{_lambda_.11} parent=0 // pred_check_branch
    %343 = sbr.rel (0) target = $region25
  $region24: #{_lambda_.11} parent=0 // pred_region
    _
  $region25: #{_lambda_.11} parent=0 // pred_fallthru
    _

// kernel: _lambda_.12
$region0: #{_lambda_.12}
  #allocation0 [shape = 'u32[]', space=smem, size = 0x4, offset = 0x4, fixed_abs, tag = 'smem constant byte address 0x4 - core index']
  #allocation1 [shape = 'u32[144,128]{1,0:T(1,128)}', space=vmem, size = 0x12000, scoped, tag = 'internal scratch']
  %s0 = inlined_call_operand.vmem [shape: f32[128,288], index: 0, kind: input, shape index: {}]
  %s1 = inlined_call_operand.vmem [shape: f32[288,32], index: 1, kind: input, shape index: {}]
  %s2 = inlined_call_operand.vmem [shape: f32[128,16], index: 2, kind: input, shape index: {}]
  %s3 = inlined_call_operand.vmem [shape: f32[16,32], index: 3, kind: input, shape index: {}]
  %s4 = inlined_call_operand.vmem [shape: f32[1,32], index: 4, kind: input, shape index: {}]
  %s5 = inlined_call_operand.vmem [shape: f32[1,32], index: 5, kind: input, shape index: {}]
  %s6 = inlined_call_operand.vmem [shape: f32[128,32], index: 6, kind: output, shape index: {}]
  %s7 = sld [smem:[#allocation0]]
  $region34: #{_lambda_.12} parent=0
    _
  %s9 = ssub.s32 1, %s7
  %s10 = scalar_select 0, %s9, %s7
  // Predicated region
  $region2: #{_lambda_.12} parent=0 // pred_check
    _
  $region3: #{_lambda_.12} parent=0 // pred_check_branch
    %12 = sbr.rel (0) target = $region5
  $region4: #{_lambda_.12} parent=0 // pred_region
    _
  $region5: #{_lambda_.12} parent=0 // pred_fallthru
    _
  // Predicated region
  $region6: #{_lambda_.12} parent=0 // pred_check
    _
  $region7: #{_lambda_.12} parent=0 // pred_check_branch
    %14 = sbr.rel (0) target = $region9
  $region8: #{_lambda_.12} parent=0 // pred_region
    _
  $region9: #{_lambda_.12} parent=0 // pred_fallthru
    _
  // Predicated region
  $region10: #{_lambda_.12} parent=0 // pred_check
    _
  $region11: #{_lambda_.12} parent=0 // pred_check_branch
    %16 = sbr.rel (0) target = $region13
  $region12: #{_lambda_.12} parent=0 // pred_region
    _
  $region13: #{_lambda_.12} parent=0 // pred_fallthru
    _
  // Predicated region
  $region14: #{_lambda_.12} parent=0 // pred_check
    _
  $region15: #{_lambda_.12} parent=0 // pred_check_branch
    %18 = sbr.rel (0) target = $region17
  $region16: #{_lambda_.12} parent=0 // pred_region
    _
  $region17: #{_lambda_.12} parent=0 // pred_fallthru
    _
  // Predicated region
  $region18: #{_lambda_.12} parent=0 // pred_check
    _
  $region19: #{_lambda_.12} parent=0 // pred_check_branch
    %20 = sbr.rel (0) target = $region21
  $region20: #{_lambda_.12} parent=0 // pred_region
    _
  $region21: #{_lambda_.12} parent=0 // pred_fallthru
    _
  // Predicated region
  $region22: #{_lambda_.12} parent=0 // pred_check
    _
  $region23: #{_lambda_.12} parent=0 // pred_check_branch
    %22 = sbr.rel (0) target = $region25
  $region24: #{_lambda_.12} parent=0 // pred_region
    _
  $region25: #{_lambda_.12} parent=0 // pred_fallthru
    _
  %v23 = vld [vmem:[%s0] sm:$0xff]
  %v24 = vld [vmem:[%s0 + $0x8] sm:$0xff]
  %v25 = vld [vmem:[%s0 + $0x10] sm:$0xff]
  %v26 = vld [vmem:[%s0 + $0x18] sm:$0xff]
  %v27 = vld [vmem:[%s0 + $0x20] sm:$0xff]
  %v28 = vld [vmem:[%s0 + $0x28] sm:$0xff]
  %v29 = vld [vmem:[%s0 + $0x30] sm:$0xff]
  %v30 = vld [vmem:[%s0 + $0x38] sm:$0xff]
  %v31 = vld [vmem:[%s0 + $0x40] sm:$0xff]
  %v32 = vld [vmem:[%s0 + $0x48] sm:$0xff]
  %v33 = vld [vmem:[%s0 + $0x50] sm:$0xff]
  %v34 = vld [vmem:[%s0 + $0x58] sm:$0xff]
  %v35 = vld [vmem:[%s0 + $0x60] sm:$0xff]
  %v36 = vld [vmem:[%s0 + $0x68] sm:$0xff]
  %v37 = vld [vmem:[%s0 + $0x70] sm:$0xff]
  %v38 = vld [vmem:[%s0 + $0x78] sm:$0xff]
  %v39 = vld [vmem:[%s0 + $0x80] sm:$0xff]
  %v40 = vld [vmem:[%s0 + $0x88] sm:$0xff]
  %v41 = vld [vmem:[%s0 + $0x90] sm:$0xff]
  %v42 = vld [vmem:[%s0 + $0x98] sm:$0xff]
  %v43 = vld [vmem:[%s0 + $0xa0] sm:$0xff]
  %v44 = vld [vmem:[%s0 + $0xa8] sm:$0xff]
  %v45 = vld [vmem:[%s0 + $0xb0] sm:$0xff]
  %v46 = vld [vmem:[%s0 + $0xb8] sm:$0xff]
  %v47 = vld [vmem:[%s0 + $0xc0] sm:$0xff]
  %v48 = vld [vmem:[%s0 + $0xc8] sm:$0xff]
  %v49 = vld [vmem:[%s0 + $0xd0] sm:$0xff]
  %v50 = vld [vmem:[%s0 + $0xd8] sm:$0xff]
  %v51 = vld [vmem:[%s0 + $0xe0] sm:$0xff]
  %v52 = vld [vmem:[%s0 + $0xe8] sm:$0xff]
  %v53 = vld [vmem:[%s0 + $0xf0] sm:$0xff]
  %v54 = vld [vmem:[%s0 + $0xf8] sm:$0xff]
  %v55 = vld [vmem:[%s0 + $0x100] sm:$0xff]
  %v56 = vld [vmem:[%s0 + $0x108] sm:$0xff]
  %v57 = vld [vmem:[%s0 + $0x110] sm:$0xff]
  %v58 = vld [vmem:[%s0 + $0x118] sm:$0xff]
  %v59 = vld [vmem:[%s0 + $0x120] sm:$0xff]
  %v60 = vld [vmem:[%s0 + $0x128] sm:$0xff]
  %v61 = vld [vmem:[%s0 + $0x130] sm:$0xff]
  %v62 = vld [vmem:[%s0 + $0x138] sm:$0xff]
  %v63 = vld [vmem:[%s0 + $0x140] sm:$0xff]
  %v64 = vld [vmem:[%s0 + $0x148] sm:$0xff]
  %v65 = vld [vmem:[%s0 + $0x150] sm:$0xff]
  %v66 = vld [vmem:[%s0 + $0x158] sm:$0xff]
  %v67 = vld [vmem:[%s0 + $0x160] sm:$0xff]
  %v68 = vld [vmem:[%s0 + $0x168] sm:$0xff]
  %v69 = vld [vmem:[%s0 + $0x170] sm:$0xff]
  %v70 = vld [vmem:[%s0 + $0x178] sm:$0xff]
  %v71 = vld [vmem:[%s1] sm:$0xff]
  %v72 = vld [vmem:[%s1 + $0x8] sm:$0xff]
  %v73 = vld [vmem:[%s1 + $0x10] sm:$0xff]
  %v74 = vld [vmem:[%s1 + $0x18] sm:$0xff]
  %v75 = vld [vmem:[%s1 + $0x20] sm:$0xff]
  %v76 = vld [vmem:[%s1 + $0x28] sm:$0xff]
  %v77 = vld [vmem:[%s1 + $0x30] sm:$0xff]
  %v78 = vld [vmem:[%s1 + $0x38] sm:$0xff]
  %v79 = vld [vmem:[%s1 + $0x40] sm:$0xff]
  %v80 = vld [vmem:[%s1 + $0x48] sm:$0xff]
  %v81 = vld [vmem:[%s1 + $0x50] sm:$0xff]
  %v82 = vld [vmem:[%s1 + $0x58] sm:$0xff]
  %v83 = vld [vmem:[%s1 + $0x60] sm:$0xff]
  %v84 = vld [vmem:[%s1 + $0x68] sm:$0xff]
  %v85 = vld [vmem:[%s1 + $0x70] sm:$0xff]
  %v86 = vld [vmem:[%s1 + $0x78] sm:$0xff]
  %v87 = vld [vmem:[%s1 + $0x80] sm:$0xff]
  %v88 = vld [vmem:[%s1 + $0x88] sm:$0xff]
  %v89 = vld [vmem:[%s1 + $0x90] sm:$0xff]
  %v90 = vld [vmem:[%s1 + $0x98] sm:$0xff]
  %v91 = vld [vmem:[%s1 + $0xa0] sm:$0xff]
  %v92 = vld [vmem:[%s1 + $0xa8] sm:$0xff]
  %v93 = vld [vmem:[%s1 + $0xb0] sm:$0xff]
  %v94 = vld [vmem:[%s1 + $0xb8] sm:$0xff]
  %v95 = vld [vmem:[%s1 + $0xc0] sm:$0xff]
  %v96 = vld [vmem:[%s1 + $0xc8] sm:$0xff]
  %v97 = vld [vmem:[%s1 + $0xd0] sm:$0xff]
  %v98 = vld [vmem:[%s1 + $0xd8] sm:$0xff]
  %v99 = vld [vmem:[%s1 + $0xe0] sm:$0xff]
  %v100 = vld [vmem:[%s1 + $0xe8] sm:$0xff]
  %v101 = vld [vmem:[%s1 + $0xf0] sm:$0xff]
  %v102 = vld [vmem:[%s1 + $0xf8] sm:$0xff]
  %v103 = vld [vmem:[%s1 + $0x100] sm:$0xff]
  %v104 = vld [vmem:[%s1 + $0x108] sm:$0xff]
  %v105 = vld [vmem:[%s1 + $0x110] sm:$0xff]
  %v106 = vld [vmem:[%s1 + $0x118] sm:$0xff]
  %v107 = vld [vmem:[%s2] sm:$0xff]
  %v108 = vld [vmem:[%s2 + $0x8] sm:$0xff]
  %v109 = vld [vmem:[%s2 + $0x10] sm:$0xff]
  %v110 = vld [vmem:[%s2 + $0x18] sm:$0xff]
  %v111 = vld [vmem:[%s2 + $0x20] sm:$0xff]
  %v112 = vld [vmem:[%s2 + $0x28] sm:$0xff]
  %v113 = vld [vmem:[%s2 + $0x30] sm:$0xff]
  %v114 = vld [vmem:[%s2 + $0x38] sm:$0xff]
  %v115 = vld [vmem:[%s2 + $0x40] sm:$0xff]
  %v116 = vld [vmem:[%s2 + $0x48] sm:$0xff]
  %v117 = vld [vmem:[%s2 + $0x50] sm:$0xff]
  %v118 = vld [vmem:[%s2 + $0x58] sm:$0xff]
  %v119 = vld [vmem:[%s2 + $0x60] sm:$0xff]
  %v120 = vld [vmem:[%s2 + $0x68] sm:$0xff]
  %v121 = vld [vmem:[%s2 + $0x70] sm:$0xff]
  %v122 = vld [vmem:[%s2 + $0x78] sm:$0xff]
  %v123 = vld [vmem:[%s3] sm:$0xff]
  %v124 = vld [vmem:[%s3 + $0x8] sm:$0xff]
  %vm125 = vcmask 130048
  %v127 = vsel %vm125, %v107, 0
  %v130 = vsel %vm125, %v108, 0
  %v133 = vsel %vm125, %v109, 0
  %v136 = vsel %vm125, %v110, 0
  %v139 = vsel %vm125, %v111, 0
  %v142 = vsel %vm125, %v112, 0
  %v145 = vsel %vm125, %v113, 0
  %v148 = vsel %vm125, %v114, 0
  %v151 = vsel %vm125, %v115, 0
  %v154 = vsel %vm125, %v116, 0
  %v157 = vsel %vm125, %v117, 0
  %v160 = vsel %vm125, %v118, 0
  %v163 = vsel %vm125, %v119, 0
  %v166 = vsel %vm125, %v120, 0
  %v169 = vsel %vm125, %v121, 0
  %v172 = vsel %vm125, %v122, 0
  %174 = vmatprep.subr.mxu0 0.0
  %175 = vmatpush1.msra.mxu0 %v123
  %176 = vmatprep.subr.mxu0 0.0
  %177 = vmatpush1.msra.mxu0 %v124
  %178 = vmatprep.subr.mxu0 0.0
  %179 = vmatpush1.msra.mxu0 0.0
  %180 = vmatprep.subr.mxu0 0.0
  %181 = vmatpush1.msra.mxu0 0.0
  %182 = vmatprep.subr.mxu0 0.0
  %183 = vmatpush1.msra.mxu0 0.0
  %184 = vmatprep.subr.mxu0 0.0
  %185 = vmatpush1.msra.mxu0 0.0
  %186 = vmatprep.subr.mxu0 0.0
  %187 = vmatpush1.msra.mxu0 0.0
  %188 = vmatprep.subr.mxu0 0.0
  %189 = vmatpush1.msra.mxu0 0.0
  %190 = vmatprep.subr.mxu0 0.0
  %191 = vmatpush1.msra.mxu0 0.0
  %192 = vmatprep.subr.mxu0 0.0
  %193 = vmatpush1.msra.mxu0 0.0
  %194 = vmatprep.subr.mxu0 0.0
  %195 = vmatpush1.msra.mxu0 0.0
  %196 = vmatprep.subr.mxu0 0.0
  %197 = vmatpush1.msra.mxu0 0.0
  %198 = vmatprep.subr.mxu0 0.0
  %199 = vmatpush1.msra.mxu0 0.0
  %200 = vmatprep.subr.mxu0 0.0
  %201 = vmatpush1.msra.mxu0 0.0
  %202 = vmatprep.subr.mxu0 0.0
  %203 = vmatpush1.msra.mxu0 0.0
  %204 = vmatprep.subr.mxu0 0.0
  %205 = vmatpush1.msra.mxu0 0.0
  %206 = vmatprep.subr.mxu0 0.0
  %207 = vmatpush1.msra.mxu0 0.0
  %208 = vmatprep.subr.mxu0 0.0
  %209 = vmatpush1.msra.mxu0 0.0
  %210 = vmatprep.subr.mxu0 0.0
  %211 = vmatpush1.msra.mxu0 0.0
  %212 = vmatprep.subr.mxu0 0.0
  %213 = vmatpush1.msra.mxu0 0.0
  %214 = vmatprep.subr.mxu0 0.0
  %215 = vmatpush1.msra.mxu0 0.0
  %216 = vmatprep.subr.mxu0 0.0
  %217 = vmatpush1.msra.mxu0 0.0
  %218 = vmatprep.subr.mxu0 0.0
  %219 = vmatpush1.msra.mxu0 0.0
  %220 = vmatprep.subr.mxu0 0.0
  %221 = vmatpush1.msra.mxu0 0.0
  %222 = vmatprep.subr.mxu0 0.0
  %223 = vmatpush1.msra.mxu0 0.0
  %224 = vmatprep.subr.mxu0 0.0
  %225 = vmatpush1.msra.mxu0 0.0
  %226 = vmatprep.subr.mxu0 0.0
  %227 = vmatpush1.msra.mxu0 0.0
  %228 = vmatprep.subr.mxu0 0.0
  %229 = vmatpush1.msra.mxu0 0.0
  %230 = vmatprep.subr.mxu0 0.0
  %231 = vmatpush1.msra.mxu0 0.0
  %232 = vmatprep.subr.mxu0 0.0
  %233 = vmatpush1.msra.mxu0 0.0
  %234 = vmatprep.subr.mxu0 0.0
  %235 = vmatpush1.msra.mxu0 0.0
  %236 = vmatprep.subr.mxu0 0.0
  %237 = vmatpush1.msra.mxu0 0.0
  %238 = vmatprep.mubr.f32.mxu0 0.0
  %239 = vmatmul.mubr.f32.gmra.mrb[0].mxu0 %v127
  %v240 = vpop.f32.mrb[0].mxu0
  %v241 = vadd.f32 0.0, %v240
  %v242 = vpop.f32.mrb[0].mxu0
  %243 = vmatprep.mubr.f32.mxu0 0.0
  %244 = vmatmul.mubr.f32.gmra.mrb[0].mxu0 %v130
  %v245 = vpop.f32.mrb[0].mxu0
  %v246 = vadd.f32 0.0, %v245
  %v247 = vpop.f32.mrb[0].mxu0
  %248 = vmatprep.mubr.f32.mxu0 0.0
  %249 = vmatmul.mubr.f32.gmra.mrb[0].mxu0 %v133
  %v250 = vpop.f32.mrb[0].mxu0
  %v251 = vadd.f32 0.0, %v250
  %v252 = vpop.f32.mrb[0].mxu0
  %253 = vmatprep.mubr.f32.mxu0 0.0
  %254 = vmatmul.mubr.f32.gmra.mrb[0].mxu0 %v136
  %v255 = vpop.f32.mrb[0].mxu0
  %v256 = vadd.f32 0.0, %v255
  %v257 = vpop.f32.mrb[0].mxu0
  %258 = vmatprep.mubr.f32.mxu0 0.0
  %259 = vmatmul.mubr.f32.gmra.mrb[0].mxu0 %v139
  %v260 = vpop.f32.mrb[0].mxu0
  %v261 = vadd.f32 0.0, %v260
  %v262 = vpop.f32.mrb[0].mxu0
  %263 = vmatprep.mubr.f32.mxu0 0.0
  %264 = vmatmul.mubr.f32.gmra.mrb[0].mxu0 %v142
  %v265 = vpop.f32.mrb[0].mxu0
  %v266 = vadd.f32 0.0, %v265
  %v267 = vpop.f32.mrb[0].mxu0
  %268 = vmatprep.mubr.f32.mxu0 0.0
  %269 = vmatmul.mubr.f32.gmra.mrb[0].mxu0 %v145
  %v270 = vpop.f32.mrb[0].mxu0
  %v271 = vadd.f32 0.0, %v270
  %v272 = vpop.f32.mrb[0].mxu0
  %273 = vmatprep.mubr.f32.mxu0 0.0
  %274 = vmatmul.mubr.f32.gmra.mrb[0].mxu0 %v148
  %v275 = vpop.f32.mrb[0].mxu0
  %v276 = vadd.f32 0.0, %v275
  %v277 = vpop.f32.mrb[0].mxu0
  %278 = vmatprep.mubr.f32.mxu0 0.0
  %279 = vmatmul.mubr.f32.gmra.mrb[0].mxu0 %v151
  %v280 = vpop.f32.mrb[0].mxu0
  %v281 = vadd.f32 0.0, %v280
  %v282 = vpop.f32.mrb[0].mxu0
  %283 = vmatprep.mubr.f32.mxu0 0.0
  %284 = vmatmul.mubr.f32.gmra.mrb[0].mxu0 %v154
  %v285 = vpop.f32.mrb[0].mxu0
  %v286 = vadd.f32 0.0, %v285
  %v287 = vpop.f32.mrb[0].mxu0
  %288 = vmatprep.mubr.f32.mxu0 0.0
  %289 = vmatmul.mubr.f32.gmra.mrb[0].mxu0 %v157
  %v290 = vpop.f32.mrb[0].mxu0
  %v291 = vadd.f32 0.0, %v290
  %v292 = vpop.f32.mrb[0].mxu0
  %293 = vmatprep.mubr.f32.mxu0 0.0
  %294 = vmatmul.mubr.f32.gmra.mrb[0].mxu0 %v160
  %v295 = vpop.f32.mrb[0].mxu0
  %v296 = vadd.f32 0.0, %v295
  %v297 = vpop.f32.mrb[0].mxu0
  %298 = vmatprep.mubr.f32.mxu0 0.0
  %299 = vmatmul.mubr.f32.gmra.mrb[0].mxu0 %v163
  %v300 = vpop.f32.mrb[0].mxu0
  %v301 = vadd.f32 0.0, %v300
  %v302 = vpop.f32.mrb[0].mxu0
  %303 = vmatprep.mubr.f32.mxu0 0.0
  %304 = vmatmul.mubr.f32.gmra.mrb[0].mxu0 %v166
  %v305 = vpop.f32.mrb[0].mxu0
  %v306 = vadd.f32 0.0, %v305
  %v307 = vpop.f32.mrb[0].mxu0
  %308 = vmatprep.mubr.f32.mxu0 0.0
  %309 = vmatmul.mubr.f32.gmra.mrb[0].mxu0 %v169
  %v310 = vpop.f32.mrb[0].mxu0
  %v311 = vadd.f32 0.0, %v310
  %v312 = vpop.f32.mrb[0].mxu0
  %313 = vmatprep.mubr.f32.mxu0 0.0
  %314 = vmatmul.mubr.f32.gmra.mrb[0].mxu0 %v172
  %v315 = vpop.f32.mrb[0].mxu0
  %v316 = vadd.f32 0.0, %v315
  %v317 = vpop.f32.mrb[0].mxu0
  %318 = vdwg.mxu0
  %vm319 = vcmask 261120
  %v321 = vsel %vm319, %v25, 0
  %v324 = vsel %vm319, %v28, 0
  %v327 = vsel %vm319, %v31, 0
  %v330 = vsel %vm319, %v34, 0
  %v333 = vsel %vm319, %v37, 0
  %v336 = vsel %vm319, %v40, 0
  %v339 = vsel %vm319, %v43, 0
  %v342 = vsel %vm319, %v46, 0
  %v345 = vsel %vm319, %v49, 0
  %v348 = vsel %vm319, %v52, 0
  %v351 = vsel %vm319, %v55, 0
  %v354 = vsel %vm319, %v58, 0
  %v357 = vsel %vm319, %v61, 0
  %v360 = vsel %vm319, %v64, 0
  %v363 = vsel %vm319, %v67, 0
  %v366 = vsel %vm319, %v70, 0
  %368 = vmatprep.subr.mxu0 0.0
  %369 = vmatpush1.msra.mxu0 %v71
  %370 = vmatprep.subr.mxu0 0.0
  %371 = vmatpush1.msra.mxu0 %v72
  %372 = vmatprep.subr.mxu0 0.0
  %373 = vmatpush1.msra.mxu0 %v73
  %374 = vmatprep.subr.mxu0 0.0
  %375 = vmatpush1.msra.mxu0 %v74
  %376 = vmatprep.subr.mxu0 0.0
  %377 = vmatpush1.msra.mxu0 %v75
  %378 = vmatprep.subr.mxu0 0.0
  %379 = vmatpush1.msra.mxu0 %v76
  %380 = vmatprep.subr.mxu0 0.0
  %381 = vmatpush1.msra.mxu0 %v77
  %382 = vmatprep.subr.mxu0 0.0
  %383 = vmatpush1.msra.mxu0 %v78
  %384 = vmatprep.subr.mxu0 0.0
  %385 = vmatpush1.msra.mxu0 %v79
  %386 = vmatprep.subr.mxu0 0.0
  %387 = vmatpush1.msra.mxu0 %v80
  %388 = vmatprep.subr.mxu0 0.0
  %389 = vmatpush1.msra.mxu0 %v81
  %390 = vmatprep.subr.mxu0 0.0
  %391 = vmatpush1.msra.mxu0 %v82
  %392 = vmatprep.subr.mxu0 0.0
  %393 = vmatpush1.msra.mxu0 %v83
  %394 = vmatprep.subr.mxu0 0.0
  %395 = vmatpush1.msra.mxu0 %v84
  %396 = vmatprep.subr.mxu0 0.0
  %397 = vmatpush1.msra.mxu0 %v85
  %398 = vmatprep.subr.mxu0 0.0
  %399 = vmatpush1.msra.mxu0 %v86
  %400 = vmatprep.subr.mxu0 0.0
  %401 = vmatpush1.msra.mxu0 %v87
  %402 = vmatprep.subr.mxu0 0.0
  %403 = vmatpush1.msra.mxu0 %v88
  %404 = vmatprep.subr.mxu0 0.0
  %405 = vmatpush1.msra.mxu0 %v89
  %406 = vmatprep.subr.mxu0 0.0
  %407 = vmatpush1.msra.mxu0 %v90
  %408 = vmatprep.subr.mxu0 0.0
  %409 = vmatpush1.msra.mxu0 %v91
  %410 = vmatprep.subr.mxu0 0.0
  %411 = vmatpush1.msra.mxu0 %v92
  %412 = vmatprep.subr.mxu0 0.0
  %413 = vmatpush1.msra.mxu0 %v93
  %414 = vmatprep.subr.mxu0 0.0
  %415 = vmatpush1.msra.mxu0 %v94
  %416 = vmatprep.subr.mxu0 0.0
  %417 = vmatpush1.msra.mxu0 %v95
  %418 = vmatprep.subr.mxu0 0.0
  %419 = vmatpush1.msra.mxu0 %v96
  %420 = vmatprep.subr.mxu0 0.0
  %421 = vmatpush1.msra.mxu0 %v97
  %422 = vmatprep.subr.mxu0 0.0
  %423 = vmatpush1.msra.mxu0 %v98
  %424 = vmatprep.subr.mxu0 0.0
  %425 = vmatpush1.msra.mxu0 %v99
  %426 = vmatprep.subr.mxu0 0.0
  %427 = vmatpush1.msra.mxu0 %v100
  %428 = vmatprep.subr.mxu0 0.0
  %429 = vmatpush1.msra.mxu0 %v101
  %430 = vmatprep.subr.mxu0 0.0
  %431 = vmatpush1.msra.mxu0 %v102
  %432 = vmatprep.mubr.f32.mxu0 %v24
  %433 = vmatmul.mubr.f32.gmra.mrb[0].mxu0 %v23
  %v434 = vpop.f32.mrb[0].mxu0
  %v435 = vadd.f32 %v241, %v434
  %v436 = vpop.f32.mrb[0].mxu0
  %437 = vmatprep.mubr.f32.mxu0 %v27
  %438 = vmatmul.mubr.f32.gmra.mrb[0].mxu0 %v26
  %v439 = vpop.f32.mrb[0].mxu0
  %v440 = vadd.f32 %v246, %v439
  %v441 = vpop.f32.mrb[0].mxu0
  %442 = vmatprep.mubr.f32.mxu0 %v30
  %443 = vmatmul.mubr.f32.gmra.mrb[0].mxu0 %v29
  %v444 = vpop.f32.mrb[0].mxu0
  %v445 = vadd.f32 %v251, %v444
  %v446 = vpop.f32.mrb[0].mxu0
  %447 = vmatprep.mubr.f32.mxu0 %v33
  %448 = vmatmul.mubr.f32.gmra.mrb[0].mxu0 %v32
  %v449 = vpop.f32.mrb[0].mxu0
  %v450 = vadd.f32 %v256, %v449
  %v451 = vpop.f32.mrb[0].mxu0
  %452 = vmatprep.mubr.f32.mxu0 %v36
  %453 = vmatmul.mubr.f32.gmra.mrb[0].mxu0 %v35
  %v454 = vpop.f32.mrb[0].mxu0
  %v455 = vadd.f32 %v261, %v454
  %v456 = vpop.f32.mrb[0].mxu0
  %457 = vmatprep.mubr.f32.mxu0 %v39
  %458 = vmatmul.mubr.f32.gmra.mrb[0].mxu0 %v38
  %v459 = vpop.f32.mrb[0].mxu0
  %v460 = vadd.f32 %v266, %v459
  %v461 = vpop.f32.mrb[0].mxu0
  %462 = vmatprep.mubr.f32.mxu0 %v42
  %463 = vmatmul.mubr.f32.gmra.mrb[0].mxu0 %v41
  %v464 = vpop.f32.mrb[0].mxu0
  %v465 = vadd.f32 %v271, %v464
  %v466 = vpop.f32.mrb[0].mxu0
  %467 = vmatprep.mubr.f32.mxu0 %v45
  %468 = vmatmul.mubr.f32.gmra.mrb[0].mxu0 %v44
  %v469 = vpop.f32.mrb[0].mxu0
  %v470 = vadd.f32 %v276, %v469
  %v471 = vpop.f32.mrb[0].mxu0
  %472 = vmatprep.mubr.f32.mxu0 %v48
  %473 = vmatmul.mubr.f32.gmra.mrb[0].mxu0 %v47
  %v474 = vpop.f32.mrb[0].mxu0
  %v475 = vadd.f32 %v281, %v474
  %v476 = vpop.f32.mrb[0].mxu0
  %477 = vmatprep.mubr.f32.mxu0 %v51
  %478 = vmatmul.mubr.f32.gmra.mrb[0].mxu0 %v50
  %v479 = vpop.f32.mrb[0].mxu0
  %v480 = vadd.f32 %v286, %v479
  %v481 = vpop.f32.mrb[0].mxu0
  %482 = vmatprep.mubr.f32.mxu0 %v54
  %483 = vmatmul.mubr.f32.gmra.mrb[0].mxu0 %v53
  %v484 = vpop.f32.mrb[0].mxu0
  %v485 = vadd.f32 %v291, %v484
  %v486 = vpop.f32.mrb[0].mxu0
  %487 = vmatprep.mubr.f32.mxu0 %v57
  %488 = vmatmul.mubr.f32.gmra.mrb[0].mxu0 %v56
  %v489 = vpop.f32.mrb[0].mxu0
  %v490 = vadd.f32 %v296, %v489
  %v491 = vpop.f32.mrb[0].mxu0
  %492 = vmatprep.mubr.f32.mxu0 %v60
  %493 = vmatmul.mubr.f32.gmra.mrb[0].mxu0 %v59
  %v494 = vpop.f32.mrb[0].mxu0
  %v495 = vadd.f32 %v301, %v494
  %v496 = vpop.f32.mrb[0].mxu0
  %497 = vmatprep.mubr.f32.mxu0 %v63
  %498 = vmatmul.mubr.f32.gmra.mrb[0].mxu0 %v62
  %v499 = vpop.f32.mrb[0].mxu0
  %v500 = vadd.f32 %v306, %v499
  %v501 = vpop.f32.mrb[0].mxu0
  %502 = vmatprep.mubr.f32.mxu0 %v66
  %503 = vmatmul.mubr.f32.gmra.mrb[0].mxu0 %v65
  %v504 = vpop.f32.mrb[0].mxu0
  %v505 = vadd.f32 %v311, %v504
  %v506 = vpop.f32.mrb[0].mxu0
  %507 = vmatprep.mubr.f32.mxu0 %v69
  %508 = vmatmul.mubr.f32.gmra.mrb[0].mxu0 %v68
  %v509 = vpop.f32.mrb[0].mxu0
  %v510 = vadd.f32 %v316, %v509
  %v511 = vpop.f32.mrb[0].mxu0
  %512 = vdwg.mxu0
  %513 = vmatprep.subr.mxu0 0.0
  %514 = vmatpush1.msra.mxu0 %v103
  %515 = vmatprep.subr.mxu0 0.0
  %516 = vmatpush1.msra.mxu0 %v104
  %517 = vmatprep.subr.mxu0 0.0
  %518 = vmatpush1.msra.mxu0 %v105
  %519 = vmatprep.subr.mxu0 0.0
  %520 = vmatpush1.msra.mxu0 %v106
  %521 = vmatprep.subr.mxu0 0.0
  %522 = vmatpush1.msra.mxu0 0.0
  %523 = vmatprep.subr.mxu0 0.0
  %524 = vmatpush1.msra.mxu0 0.0
  %525 = vmatprep.subr.mxu0 0.0
  %526 = vmatpush1.msra.mxu0 0.0
  %527 = vmatprep.subr.mxu0 0.0
  %528 = vmatpush1.msra.mxu0 0.0
  %529 = vmatprep.subr.mxu0 0.0
  %530 = vmatpush1.msra.mxu0 0.0
  %531 = vmatprep.subr.mxu0 0.0
  %532 = vmatpush1.msra.mxu0 0.0
  %533 = vmatprep.subr.mxu0 0.0
  %534 = vmatpush1.msra.mxu0 0.0
  %535 = vmatprep.subr.mxu0 0.0
  %536 = vmatpush1.msra.mxu0 0.0
  %537 = vmatprep.subr.mxu0 0.0
  %538 = vmatpush1.msra.mxu0 0.0
  %539 = vmatprep.subr.mxu0 0.0
  %540 = vmatpush1.msra.mxu0 0.0
  %541 = vmatprep.subr.mxu0 0.0
  %542 = vmatpush1.msra.mxu0 0.0
  %543 = vmatprep.subr.mxu0 0.0
  %544 = vmatpush1.msra.mxu0 0.0
  %545 = vmatprep.subr.mxu0 0.0
  %546 = vmatpush1.msra.mxu0 0.0
  %547 = vmatprep.subr.mxu0 0.0
  %548 = vmatpush1.msra.mxu0 0.0
  %549 = vmatprep.subr.mxu0 0.0
  %550 = vmatpush1.msra.mxu0 0.0
  %551 = vmatprep.subr.mxu0 0.0
  %552 = vmatpush1.msra.mxu0 0.0
  %553 = vmatprep.subr.mxu0 0.0
  %554 = vmatpush1.msra.mxu0 0.0
  %555 = vmatprep.subr.mxu0 0.0
  %556 = vmatpush1.msra.mxu0 0.0
  %557 = vmatprep.subr.mxu0 0.0
  %558 = vmatpush1.msra.mxu0 0.0
  %559 = vmatprep.subr.mxu0 0.0
  %560 = vmatpush1.msra.mxu0 0.0
  %561 = vmatprep.subr.mxu0 0.0
  %562 = vmatpush1.msra.mxu0 0.0
  %563 = vmatprep.subr.mxu0 0.0
  %564 = vmatpush1.msra.mxu0 0.0
  %565 = vmatprep.subr.mxu0 0.0
  %566 = vmatpush1.msra.mxu0 0.0
  %567 = vmatprep.subr.mxu0 0.0
  %568 = vmatpush1.msra.mxu0 0.0
  %569 = vmatprep.subr.mxu0 0.0
  %570 = vmatpush1.msra.mxu0 0.0
  %571 = vmatprep.subr.mxu0 0.0
  %572 = vmatpush1.msra.mxu0 0.0
  %573 = vmatprep.subr.mxu0 0.0
  %574 = vmatpush1.msra.mxu0 0.0
  %575 = vmatprep.subr.mxu0 0.0
  %576 = vmatpush1.msra.mxu0 0.0
  %577 = vmatprep.mubr.f32.mxu0 0.0
  %578 = vmatmul.mubr.f32.gmra.mrb[0].mxu0 %v321
  %v579 = vpop.f32.mrb[0].mxu0
  %v580 = vadd.f32 %v435, %v579
  %v581 = vpop.f32.mrb[0].mxu0
  %582 = vmatprep.mubr.f32.mxu0 0.0
  %583 = vmatmul.mubr.f32.gmra.mrb[0].mxu0 %v324
  %v584 = vpop.f32.mrb[0].mxu0
  %v585 = vadd.f32 %v440, %v584
  %v586 = vpop.f32.mrb[0].mxu0
  %587 = vmatprep.mubr.f32.mxu0 0.0
  %588 = vmatmul.mubr.f32.gmra.mrb[0].mxu0 %v327
  %v589 = vpop.f32.mrb[0].mxu0
  %v590 = vadd.f32 %v445, %v589
  %v591 = vpop.f32.mrb[0].mxu0
  %592 = vmatprep.mubr.f32.mxu0 0.0
  %593 = vmatmul.mubr.f32.gmra.mrb[0].mxu0 %v330
  %v594 = vpop.f32.mrb[0].mxu0
  %v595 = vadd.f32 %v450, %v594
  %v596 = vpop.f32.mrb[0].mxu0
  %597 = vmatprep.mubr.f32.mxu0 0.0
  %598 = vmatmul.mubr.f32.gmra.mrb[0].mxu0 %v333
  %v599 = vpop.f32.mrb[0].mxu0
  %v600 = vadd.f32 %v455, %v599
  %v601 = vpop.f32.mrb[0].mxu0
  %602 = vmatprep.mubr.f32.mxu0 0.0
  %603 = vmatmul.mubr.f32.gmra.mrb[0].mxu0 %v336
  %v604 = vpop.f32.mrb[0].mxu0
  %v605 = vadd.f32 %v460, %v604
  %v606 = vpop.f32.mrb[0].mxu0
  %607 = vmatprep.mubr.f32.mxu0 0.0
  %608 = vmatmul.mubr.f32.gmra.mrb[0].mxu0 %v339
  %v609 = vpop.f32.mrb[0].mxu0
  %v610 = vadd.f32 %v465, %v609
  %v611 = vpop.f32.mrb[0].mxu0
  %612 = vmatprep.mubr.f32.mxu0 0.0
  %613 = vmatmul.mubr.f32.gmra.mrb[0].mxu0 %v342
  %v614 = vpop.f32.mrb[0].mxu0
  %v615 = vadd.f32 %v470, %v614
  %v616 = vpop.f32.mrb[0].mxu0
  %617 = vmatprep.mubr.f32.mxu0 0.0
  %618 = vmatmul.mubr.f32.gmra.mrb[0].mxu0 %v345
  %v619 = vpop.f32.mrb[0].mxu0
  %v620 = vadd.f32 %v475, %v619
  %v621 = vpop.f32.mrb[0].mxu0
  %622 = vmatprep.mubr.f32.mxu0 0.0
  %623 = vmatmul.mubr.f32.gmra.mrb[0].mxu0 %v348
  %v624 = vpop.f32.mrb[0].mxu0
  %v625 = vadd.f32 %v480, %v624
  %v626 = vpop.f32.mrb[0].mxu0
  %627 = vmatprep.mubr.f32.mxu0 0.0
  %628 = vmatmul.mubr.f32.gmra.mrb[0].mxu0 %v351
  %v629 = vpop.f32.mrb[0].mxu0
  %v630 = vadd.f32 %v485, %v629
  %v631 = vpop.f32.mrb[0].mxu0
  %632 = vmatprep.mubr.f32.mxu0 0.0
  %633 = vmatmul.mubr.f32.gmra.mrb[0].mxu0 %v354
  %v634 = vpop.f32.mrb[0].mxu0
  %v635 = vadd.f32 %v490, %v634
  %v636 = vpop.f32.mrb[0].mxu0
  %637 = vmatprep.mubr.f32.mxu0 0.0
  %638 = vmatmul.mubr.f32.gmra.mrb[0].mxu0 %v357
  %v639 = vpop.f32.mrb[0].mxu0
  %v640 = vadd.f32 %v495, %v639
  %v641 = vpop.f32.mrb[0].mxu0
  %642 = vmatprep.mubr.f32.mxu0 0.0
  %643 = vmatmul.mubr.f32.gmra.mrb[0].mxu0 %v360
  %v644 = vpop.f32.mrb[0].mxu0
  %v645 = vadd.f32 %v500, %v644
  %v646 = vpop.f32.mrb[0].mxu0
  %647 = vmatprep.mubr.f32.mxu0 0.0
  %648 = vmatmul.mubr.f32.gmra.mrb[0].mxu0 %v363
  %v649 = vpop.f32.mrb[0].mxu0
  %v650 = vadd.f32 %v505, %v649
  %v651 = vpop.f32.mrb[0].mxu0
  %652 = vmatprep.mubr.f32.mxu0 0.0
  %653 = vmatmul.mubr.f32.gmra.mrb[0].mxu0 %v366
  %v654 = vpop.f32.mrb[0].mxu0
  %v655 = vadd.f32 %v510, %v654
  %v656 = vpop.f32.mrb[0].mxu0
  %657 = vdwg.mxu0
  %v658 = vld [vmem:[%s4] sm:$0x1]
  %v660 = vlaneseq
  %v661 = vshrl.u32 %v660, 7
  %v662 = vsub.s32 0, %v661
  %v663 = vrot.slane %v658, %v662
  %v665 = vmul.f32 %v580, %v663
  %v666 = vmul.f32 %v585, %v663
  %v667 = vmul.f32 %v590, %v663
  %v668 = vmul.f32 %v595, %v663
  %v669 = vmul.f32 %v600, %v663
  %v670 = vmul.f32 %v605, %v663
  %v671 = vmul.f32 %v610, %v663
  %v672 = vmul.f32 %v615, %v663
  %v673 = vmul.f32 %v620, %v663
  %v674 = vmul.f32 %v625, %v663
  %v675 = vmul.f32 %v630, %v663
  %v676 = vmul.f32 %v635, %v663
  %v677 = vmul.f32 %v640, %v663
  %v678 = vmul.f32 %v645, %v663
  %v679 = vmul.f32 %v650, %v663
  %v680 = vmul.f32 %v655, %v663
  %v681 = vld [vmem:[%s5] sm:$0x1]
  %v683 = vlaneseq
  %v684 = vshrl.u32 %v683, 7
  %v685 = vsub.s32 0, %v684
  %v686 = vrot.slane %v681, %v685
  %v688 = vadd.f32 %v665, %v686
  %v689 = vadd.f32 %v666, %v686
  %v690 = vadd.f32 %v667, %v686
  %v691 = vadd.f32 %v668, %v686
  %v692 = vadd.f32 %v669, %v686
  %v693 = vadd.f32 %v670, %v686
  %v694 = vadd.f32 %v671, %v686
  %v695 = vadd.f32 %v672, %v686
  %v696 = vadd.f32 %v673, %v686
  %v697 = vadd.f32 %v674, %v686
  %v698 = vadd.f32 %v675, %v686
  %v699 = vadd.f32 %v676, %v686
  %v700 = vadd.f32 %v677, %v686
  %v701 = vadd.f32 %v678, %v686
  %v702 = vadd.f32 %v679, %v686
  %v703 = vadd.f32 %v680, %v686
  %v704 = vmax.f32 %v688, 0.0
  %v705 = vmax.f32 %v689, 0.0
  %v706 = vmax.f32 %v690, 0.0
  %v707 = vmax.f32 %v691, 0.0
  %v708 = vmax.f32 %v692, 0.0
  %v709 = vmax.f32 %v693, 0.0
  %v710 = vmax.f32 %v694, 0.0
  %v711 = vmax.f32 %v695, 0.0
  %v712 = vmax.f32 %v696, 0.0
  %v713 = vmax.f32 %v697, 0.0
  %v714 = vmax.f32 %v698, 0.0
  %v715 = vmax.f32 %v699, 0.0
  %v716 = vmax.f32 %v700, 0.0
  %v717 = vmax.f32 %v701, 0.0
  %v718 = vmax.f32 %v702, 0.0
  %v719 = vmax.f32 %v703, 0.0
  %720 = vst.msk [vmem:[%s6] sm:$0xff] %vm319, %v704
  %721 = vst.msk [vmem:[%s6 + $0x8] sm:$0xff] %vm319, %v705
  %722 = vst.msk [vmem:[%s6 + $0x10] sm:$0xff] %vm319, %v706
  %723 = vst.msk [vmem:[%s6 + $0x18] sm:$0xff] %vm319, %v707
  %724 = vst.msk [vmem:[%s6 + $0x20] sm:$0xff] %vm319, %v708
  %725 = vst.msk [vmem:[%s6 + $0x28] sm:$0xff] %vm319, %v709
  %726 = vst.msk [vmem:[%s6 + $0x30] sm:$0xff] %vm319, %v710
  %727 = vst.msk [vmem:[%s6 + $0x38] sm:$0xff] %vm319, %v711
  %728 = vst.msk [vmem:[%s6 + $0x40] sm:$0xff] %vm319, %v712
  %729 = vst.msk [vmem:[%s6 + $0x48] sm:$0xff] %vm319, %v713
  %730 = vst.msk [vmem:[%s6 + $0x50] sm:$0xff] %vm319, %v714
  %731 = vst.msk [vmem:[%s6 + $0x58] sm:$0xff] %vm319, %v715
  %732 = vst.msk [vmem:[%s6 + $0x60] sm:$0xff] %vm319, %v716
  %733 = vst.msk [vmem:[%s6 + $0x68] sm:$0xff] %vm319, %v717
  %734 = vst.msk [vmem:[%s6 + $0x70] sm:$0xff] %vm319, %v718
  %735 = vst.msk [vmem:[%s6 + $0x78] sm:$0xff] %vm319, %v719
  // Predicated region
  $region26: #{_lambda_.12} parent=0 // pred_check
    _
  $region27: #{_lambda_.12} parent=0 // pred_check_branch
    %737 = sbr.rel (0) target = $region29
  $region28: #{_lambda_.12} parent=0 // pred_region
    _
  $region29: #{_lambda_.12} parent=0 // pred_fallthru
    _
  // Predicated region
  $region30: #{_lambda_.12} parent=0 // pred_check
    _
  $region31: #{_lambda_.12} parent=0 // pred_check_branch
    %739 = sbr.rel (0) target = $region33
  $region32: #{_lambda_.12} parent=0 // pred_region
    _
  $region33: #{_lambda_.12} parent=0 // pred_fallthru
    _

// kernel: _lambda_.15
$region0: #{_lambda_.15}
  #allocation0 [shape = 'u32[]', space=smem, size = 0x4, offset = 0x4, fixed_abs, tag = 'smem constant byte address 0x4 - core index']
  #allocation1 [shape = 'u32[144,128]{1,0:T(1,128)}', space=vmem, size = 0x12000, scoped, tag = 'internal scratch']
  %s0 = inlined_call_operand.vmem [shape: f32[2,16,64], index: 0, kind: input, shape index: {}]
  %s1 = inlined_call_operand.vmem [shape: f32[64,8], index: 1, kind: input, shape index: {}]
  %s2 = inlined_call_operand.vmem [shape: f32[1,8], index: 2, kind: input, shape index: {}]
  %s3 = inlined_call_operand.hbm [shape: f32[2,8], index: 3, kind: output, shape index: {}]
  %s4 = sld [smem:[#allocation0]]
  $region22: #{_lambda_.15} parent=0
    _
  %s6 = ssub.s32 1, %s4
  %s7 = scalar_select 0, %s6, %s4
  $region1: #{_lambda_.15} parent=0
    #allocation2 [shape = 'u8[1024]{0}', space=vmem, size = 0x400, scoped, tag = 'output window, operand 0, single buffered']
    #allocation3 [shape = 's32[1]{0}', space=sflag, size = 0x4, scoped, tag = 'scoped memory for _lambda_.15']
    %8 = vsyncpa [#allocation3], 0
    // Predicated region
    $region2: #{_lambda_.15} parent=1 // pred_check
      _
    $region3: #{_lambda_.15} parent=1 // pred_check_branch
      %10 = sbr.rel (0) target = $region5
    $region4: #{_lambda_.15} parent=1 // pred_region
      _
    $region5: #{_lambda_.15} parent=1 // pred_fallthru
      _
    // Predicated region
    $region6: #{_lambda_.15} parent=1 // pred_check
      _
    $region7: #{_lambda_.15} parent=1 // pred_check_branch
      %12 = sbr.rel (0) target = $region9
    $region8: #{_lambda_.15} parent=1 // pred_region
      _
    $region9: #{_lambda_.15} parent=1 // pred_fallthru
      _
    // Predicated region
    $region10: #{_lambda_.15} parent=1 // pred_check
      _
    $region11: #{_lambda_.15} parent=1 // pred_check_branch
      %14 = sbr.rel (0) target = $region13
    $region12: #{_lambda_.15} parent=1 // pred_region
      _
    $region13: #{_lambda_.15} parent=1 // pred_fallthru
      _
    %v15 = vld [vmem:[%s0] sm:$0xff]
    %v16 = vld [vmem:[%s0 + $0x8] sm:$0xff]
    %v17 = vld [vmem:[%s0 + $0x10] sm:$0xff]
    %v18 = vld [vmem:[%s0 + $0x18] sm:$0xff]
    %vm19 = vcmask 523264
    %v20 = vsel %vm19, %v15, 0.0
    %v21 = vsel %vm19, %v16, 0.0
    %v22 = vadd.f32 %v20, %v21
    %v23 = vrot.slane %v22, 4
    %v24 = vadd.f32 %v22, %v23
    %v25 = vrot.slane %v24, 2
    %v26 = vadd.f32 %v24, %v25
    %v27 = vrot.slane %v26, 1
    %v28 = vadd.f32 %v26, %v27
    %v29 = vsel %vm19, %v17, 0.0
    %v30 = vsel %vm19, %v18, 0.0
    %v31 = vadd.f32 %v29, %v30
    %v32 = vrot.slane %v31, 4
    %v33 = vadd.f32 %v31, %v32
    %v34 = vrot.slane %v33, 2
    %v35 = vadd.f32 %v33, %v34
    %v36 = vrot.slane %v35, 1
    %v37 = vadd.f32 %v35, %v36
    %v38 = vrcp.pop 16.0
    %v39 = vmul.f32 %v28, %v38
    %v40 = vmul.f32 %v37, %v38
    %v41 = vld [vmem:[%s1] sm:$0xff]
    %v42 = vld [vmem:[%s1 + $0x8] sm:$0xff]
    %v43 = vld [vmem:[%s1 + $0x10] sm:$0xff]
    %v44 = vld [vmem:[%s1 + $0x18] sm:$0xff]
    %v45 = vld [vmem:[%s1 + $0x20] sm:$0xff]
    %v46 = vld [vmem:[%s1 + $0x28] sm:$0xff]
    %v47 = vld [vmem:[%s1 + $0x30] sm:$0xff]
    %v48 = vld [vmem:[%s1 + $0x38] sm:$0xff]
    %v49 = vld [vmem:[%s2] sm:$0x1]
    %v51 = vlaneseq
    %v52 = vshrl.u32 %v51, 7
    %v53 = vsub.s32 0, %v52
    %v54 = vrot.slane %v49, %v53
    %vm58 = vcmask 1041409
    %v59 = vsel %vm58, %v40, %v39
    %v60 = vsel %vm19, %v59, 0
    %62 = vmatprep.subr.mxu0 0.0
    %63 = vmatpush1.msra.mxu0 %v41
    %64 = vmatprep.subr.mxu0 0.0
    %65 = vmatpush1.msra.mxu0 %v42
    %66 = vmatprep.subr.mxu0 0.0
    %67 = vmatpush1.msra.mxu0 %v43
    %68 = vmatprep.subr.mxu0 0.0
    %69 = vmatpush1.msra.mxu0 %v44
    %70 = vmatprep.subr.mxu0 0.0
    %71 = vmatpush1.msra.mxu0 %v45
    %72 = vmatprep.subr.mxu0 0.0
    %73 = vmatpush1.msra.mxu0 %v46
    %74 = vmatprep.subr.mxu0 0.0
    %75 = vmatpush1.msra.mxu0 %v47
    %76 = vmatprep.subr.mxu0 0.0
    %77 = vmatpush1.msra.mxu0 %v48
    %78 = vmatprep.subr.mxu0 0.0
    %79 = vmatpush1.msra.mxu0 0.0
    %80 = vmatprep.subr.mxu0 0.0
    %81 = vmatpush1.msra.mxu0 0.0
    %82 = vmatprep.subr.mxu0 0.0
    %83 = vmatpush1.msra.mxu0 0.0
    %84 = vmatprep.subr.mxu0 0.0
    %85 = vmatpush1.msra.mxu0 0.0
    %86 = vmatprep.subr.mxu0 0.0
    %87 = vmatpush1.msra.mxu0 0.0
    %88 = vmatprep.subr.mxu0 0.0
    %89 = vmatpush1.msra.mxu0 0.0
    %90 = vmatprep.subr.mxu0 0.0
    %91 = vmatpush1.msra.mxu0 0.0
    %92 = vmatprep.subr.mxu0 0.0
    %93 = vmatpush1.msra.mxu0 0.0
    %94 = vmatprep.subr.mxu0 0.0
    %95 = vmatpush1.msra.mxu0 0.0
    %96 = vmatprep.subr.mxu0 0.0
    %97 = vmatpush1.msra.mxu0 0.0
    %98 = vmatprep.subr.mxu0 0.0
    %99 = vmatpush1.msra.mxu0 0.0
    %100 = vmatprep.subr.mxu0 0.0
    %101 = vmatpush1.msra.mxu0 0.0
    %102 = vmatprep.subr.mxu0 0.0
    %103 = vmatpush1.msra.mxu0 0.0
    %104 = vmatprep.subr.mxu0 0.0
    %105 = vmatpush1.msra.mxu0 0.0
    %106 = vmatprep.subr.mxu0 0.0
    %107 = vmatpush1.msra.mxu0 0.0
    %108 = vmatprep.subr.mxu0 0.0
    %109 = vmatpush1.msra.mxu0 0.0
    %110 = vmatprep.subr.mxu0 0.0
    %111 = vmatpush1.msra.mxu0 0.0
    %112 = vmatprep.subr.mxu0 0.0
    %113 = vmatpush1.msra.mxu0 0.0
    %114 = vmatprep.subr.mxu0 0.0
    %115 = vmatpush1.msra.mxu0 0.0
    %116 = vmatprep.subr.mxu0 0.0
    %117 = vmatpush1.msra.mxu0 0.0
    %118 = vmatprep.subr.mxu0 0.0
    %119 = vmatpush1.msra.mxu0 0.0
    %120 = vmatprep.subr.mxu0 0.0
    %121 = vmatpush1.msra.mxu0 0.0
    %122 = vmatprep.subr.mxu0 0.0
    %123 = vmatpush1.msra.mxu0 0.0
    %124 = vmatprep.subr.mxu0 0.0
    %125 = vmatpush1.msra.mxu0 0.0
    %126 = vmatprep.mubr.f32.mxu0 0.0
    %127 = vmatmul.mubr.f32.gmra.mrb[0].mxu0 %v60
    %v128 = vpop.f32.mrb[0].mxu0
    %v129 = vadd.f32 %v54, %v128
    %v130 = vpop.f32.mrb[0].mxu0
    %131 = vdwg.mxu0
    %vm132 = vcmask 58368
    %133 = vst.msk [vmem:[#allocation2] sm:$0x3] %vm132, %v129
    // Predicated region
    $region14: #{_lambda_.15} parent=1 // pred_check
      _
    $region15: #{_lambda_.15} parent=1 // pred_check_branch
      %135 = sbr.rel (0) target = $region17
    $region16: #{_lambda_.15} parent=1 // pred_region
      %s137 = ssub.s32 32, 32
      %138 = vsyncadd [#allocation3], %s137
      %s140 = sshll.u32 [#allocation2], 4
      %s141 = int_to_ptr.vmem [resolvable:$true] %s140
      %143 = dma.vmem_to_hbm [thread:$0]  %s141, 32, %s3, [#allocation3]
    $region17: #{_lambda_.15} parent=1 // pred_fallthru
      _
    // Predicated region
    $region18: #{_lambda_.15} parent=1 // pred_check
      _
    $region19: #{_lambda_.15} parent=1 // pred_check_branch
      %145 = sbr.rel (0) target = $region21
    $region20: #{_lambda_.15} parent=1 // pred_region
      %146 = dma.done [#allocation3], 32
    $region21: #{_lambda_.15} parent=1 // pred_fallthru
      _
    %147 = vsyncpa [#allocation3], 1

// kernel: _lambda_.13
$region0: #{_lambda_.13}
  #allocation0 [shape = 'u32[]', space=smem, size = 0x4, offset = 0x4, fixed_abs, tag = 'smem constant byte address 0x4 - core index']
  #allocation1 [shape = 'u32[144,128]{1,0:T(1,128)}', space=vmem, size = 0x12000, scoped, tag = 'internal scratch']
  %s0 = inlined_call_operand.vmem [shape: f32[32,288], index: 0, kind: input, shape index: {}]
  %s1 = inlined_call_operand.vmem [shape: f32[288,64], index: 1, kind: input, shape index: {}]
  %s2 = inlined_call_operand.vmem [shape: f32[1,64], index: 2, kind: input, shape index: {}]
  %s3 = inlined_call_operand.vmem [shape: f32[1,64], index: 3, kind: input, shape index: {}]
  %s4 = inlined_call_operand.vmem [shape: f32[32,64], index: 4, kind: output, shape index: {}]
  %s5 = sld [smem:[#allocation0]]
  $region26: #{_lambda_.13} parent=0
    _
  %s7 = ssub.s32 1, %s5
  %s8 = scalar_select 0, %s7, %s5
  // Predicated region
  $region2: #{_lambda_.13} parent=0 // pred_check
    _
  $region3: #{_lambda_.13} parent=0 // pred_check_branch
    %10 = sbr.rel (0) target = $region5
  $region4: #{_lambda_.13} parent=0 // pred_region
    _
  $region5: #{_lambda_.13} parent=0 // pred_fallthru
    _
  // Predicated region
  $region6: #{_lambda_.13} parent=0 // pred_check
    _
  $region7: #{_lambda_.13} parent=0 // pred_check_branch
    %12 = sbr.rel (0) target = $region9
  $region8: #{_lambda_.13} parent=0 // pred_region
    _
  $region9: #{_lambda_.13} parent=0 // pred_fallthru
    _
  // Predicated region
  $region10: #{_lambda_.13} parent=0 // pred_check
    _
  $region11: #{_lambda_.13} parent=0 // pred_check_branch
    %14 = sbr.rel (0) target = $region13
  $region12: #{_lambda_.13} parent=0 // pred_region
    _
  $region13: #{_lambda_.13} parent=0 // pred_fallthru
    _
  // Predicated region
  $region14: #{_lambda_.13} parent=0 // pred_check
    _
  $region15: #{_lambda_.13} parent=0 // pred_check_branch
    %16 = sbr.rel (0) target = $region17
  $region16: #{_lambda_.13} parent=0 // pred_region
    _
  $region17: #{_lambda_.13} parent=0 // pred_fallthru
    _
  %v17 = vld [vmem:[%s0] sm:$0xff]
  %v18 = vld [vmem:[%s0 + $0x8] sm:$0xff]
  %v19 = vld [vmem:[%s0 + $0x10] sm:$0xff]
  %v20 = vld [vmem:[%s0 + $0x18] sm:$0xff]
  %v21 = vld [vmem:[%s0 + $0x20] sm:$0xff]
  %v22 = vld [vmem:[%s0 + $0x28] sm:$0xff]
  %v23 = vld [vmem:[%s0 + $0x30] sm:$0xff]
  %v24 = vld [vmem:[%s0 + $0x38] sm:$0xff]
  %v25 = vld [vmem:[%s0 + $0x40] sm:$0xff]
  %v26 = vld [vmem:[%s0 + $0x48] sm:$0xff]
  %v27 = vld [vmem:[%s0 + $0x50] sm:$0xff]
  %v28 = vld [vmem:[%s0 + $0x58] sm:$0xff]
  %v29 = vld [vmem:[%s1] sm:$0xff]
  %v30 = vld [vmem:[%s1 + $0x8] sm:$0xff]
  %v31 = vld [vmem:[%s1 + $0x10] sm:$0xff]
  %v32 = vld [vmem:[%s1 + $0x18] sm:$0xff]
  %v33 = vld [vmem:[%s1 + $0x20] sm:$0xff]
  %v34 = vld [vmem:[%s1 + $0x28] sm:$0xff]
  %v35 = vld [vmem:[%s1 + $0x30] sm:$0xff]
  %v36 = vld [vmem:[%s1 + $0x38] sm:$0xff]
  %v37 = vld [vmem:[%s1 + $0x40] sm:$0xff]
  %v38 = vld [vmem:[%s1 + $0x48] sm:$0xff]
  %v39 = vld [vmem:[%s1 + $0x50] sm:$0xff]
  %v40 = vld [vmem:[%s1 + $0x58] sm:$0xff]
  %v41 = vld [vmem:[%s1 + $0x60] sm:$0xff]
  %v42 = vld [vmem:[%s1 + $0x68] sm:$0xff]
  %v43 = vld [vmem:[%s1 + $0x70] sm:$0xff]
  %v44 = vld [vmem:[%s1 + $0x78] sm:$0xff]
  %v45 = vld [vmem:[%s1 + $0x80] sm:$0xff]
  %v46 = vld [vmem:[%s1 + $0x88] sm:$0xff]
  %v47 = vld [vmem:[%s1 + $0x90] sm:$0xff]
  %v48 = vld [vmem:[%s1 + $0x98] sm:$0xff]
  %v49 = vld [vmem:[%s1 + $0xa0] sm:$0xff]
  %v50 = vld [vmem:[%s1 + $0xa8] sm:$0xff]
  %v51 = vld [vmem:[%s1 + $0xb0] sm:$0xff]
  %v52 = vld [vmem:[%s1 + $0xb8] sm:$0xff]
  %v53 = vld [vmem:[%s1 + $0xc0] sm:$0xff]
  %v54 = vld [vmem:[%s1 + $0xc8] sm:$0xff]
  %v55 = vld [vmem:[%s1 + $0xd0] sm:$0xff]
  %v56 = vld [vmem:[%s1 + $0xd8] sm:$0xff]
  %v57 = vld [vmem:[%s1 + $0xe0] sm:$0xff]
  %v58 = vld [vmem:[%s1 + $0xe8] sm:$0xff]
  %v59 = vld [vmem:[%s1 + $0xf0] sm:$0xff]
  %v60 = vld [vmem:[%s1 + $0xf8] sm:$0xff]
  %v61 = vld [vmem:[%s1 + $0x100] sm:$0xff]
  %v62 = vld [vmem:[%s1 + $0x108] sm:$0xff]
  %v63 = vld [vmem:[%s1 + $0x110] sm:$0xff]
  %v64 = vld [vmem:[%s1 + $0x118] sm:$0xff]
  %vm65 = vcmask 261120
  %v67 = vsel %vm65, %v19, 0
  %v70 = vsel %vm65, %v22, 0
  %v73 = vsel %vm65, %v25, 0
  %v76 = vsel %vm65, %v28, 0
  %78 = vmatprep.subr.mxu0 0.0
  %79 = vmatpush1.msra.mxu0 %v29
  %80 = vmatprep.subr.mxu0 0.0
  %81 = vmatpush1.msra.mxu0 %v30
  %82 = vmatprep.subr.mxu0 0.0
  %83 = vmatpush1.msra.mxu0 %v31
  %84 = vmatprep.subr.mxu0 0.0
  %85 = vmatpush1.msra.mxu0 %v32
  %86 = vmatprep.subr.mxu0 0.0
  %87 = vmatpush1.msra.mxu0 %v33
  %88 = vmatprep.subr.mxu0 0.0
  %89 = vmatpush1.msra.mxu0 %v34
  %90 = vmatprep.subr.mxu0 0.0
  %91 = vmatpush1.msra.mxu0 %v35
  %92 = vmatprep.subr.mxu0 0.0
  %93 = vmatpush1.msra.mxu0 %v36
  %94 = vmatprep.subr.mxu0 0.0
  %95 = vmatpush1.msra.mxu0 %v37
  %96 = vmatprep.subr.mxu0 0.0
  %97 = vmatpush1.msra.mxu0 %v38
  %98 = vmatprep.subr.mxu0 0.0
  %99 = vmatpush1.msra.mxu0 %v39
  %100 = vmatprep.subr.mxu0 0.0
  %101 = vmatpush1.msra.mxu0 %v40
  %102 = vmatprep.subr.mxu0 0.0
  %103 = vmatpush1.msra.mxu0 %v41
  %104 = vmatprep.subr.mxu0 0.0
  %105 = vmatpush1.msra.mxu0 %v42
  %106 = vmatprep.subr.mxu0 0.0
  %107 = vmatpush1.msra.mxu0 %v43
  %108 = vmatprep.subr.mxu0 0.0
  %109 = vmatpush1.msra.mxu0 %v44
  %110 = vmatprep.subr.mxu0 0.0
  %111 = vmatpush1.msra.mxu0 %v45
  %112 = vmatprep.subr.mxu0 0.0
  %113 = vmatpush1.msra.mxu0 %v46
  %114 = vmatprep.subr.mxu0 0.0
  %115 = vmatpush1.msra.mxu0 %v47
  %116 = vmatprep.subr.mxu0 0.0
  %117 = vmatpush1.msra.mxu0 %v48
  %118 = vmatprep.subr.mxu0 0.0
  %119 = vmatpush1.msra.mxu0 %v49
  %120 = vmatprep.subr.mxu0 0.0
  %121 = vmatpush1.msra.mxu0 %v50
  %122 = vmatprep.subr.mxu0 0.0
  %123 = vmatpush1.msra.mxu0 %v51
  %124 = vmatprep.subr.mxu0 0.0
  %125 = vmatpush1.msra.mxu0 %v52
  %126 = vmatprep.subr.mxu0 0.0
  %127 = vmatpush1.msra.mxu0 %v53
  %128 = vmatprep.subr.mxu0 0.0
  %129 = vmatpush1.msra.mxu0 %v54
  %130 = vmatprep.subr.mxu0 0.0
  %131 = vmatpush1.msra.mxu0 %v55
  %132 = vmatprep.subr.mxu0 0.0
  %133 = vmatpush1.msra.mxu0 %v56
  %134 = vmatprep.subr.mxu0 0.0
  %135 = vmatpush1.msra.mxu0 %v57
  %136 = vmatprep.subr.mxu0 0.0
  %137 = vmatpush1.msra.mxu0 %v58
  %138 = vmatprep.subr.mxu0 0.0
  %139 = vmatpush1.msra.mxu0 %v59
  %140 = vmatprep.subr.mxu0 0.0
  %141 = vmatpush1.msra.mxu0 %v60
  %142 = vmatprep.mubr.f32.mxu0 %v18
  %143 = vmatmul.mubr.f32.gmra.mrb[0].mxu0 %v17
  %v144 = vpop.f32.mrb[0].mxu0
  %v145 = vadd.f32 0.0, %v144
  %v146 = vpop.f32.mrb[0].mxu0
  %147 = vmatprep.mubr.f32.mxu0 %v21
  %148 = vmatmul.mubr.f32.gmra.mrb[0].mxu0 %v20
  %v149 = vpop.f32.mrb[0].mxu0
  %v150 = vadd.f32 0.0, %v149
  %v151 = vpop.f32.mrb[0].mxu0
  %152 = vmatprep.mubr.f32.mxu0 %v24
  %153 = vmatmul.mubr.f32.gmra.mrb[0].mxu0 %v23
  %v154 = vpop.f32.mrb[0].mxu0
  %v155 = vadd.f32 0.0, %v154
  %v156 = vpop.f32.mrb[0].mxu0
  %157 = vmatprep.mubr.f32.mxu0 %v27
  %158 = vmatmul.mubr.f32.gmra.mrb[0].mxu0 %v26
  %v159 = vpop.f32.mrb[0].mxu0
  %v160 = vadd.f32 0.0, %v159
  %v161 = vpop.f32.mrb[0].mxu0
  %162 = vdwg.mxu0
  %163 = vmatprep.subr.mxu0 0.0
  %164 = vmatpush1.msra.mxu0 %v61
  %165 = vmatprep.subr.mxu0 0.0
  %166 = vmatpush1.msra.mxu0 %v62
  %167 = vmatprep.subr.mxu0 0.0
  %168 = vmatpush1.msra.mxu0 %v63
  %169 = vmatprep.subr.mxu0 0.0
  %170 = vmatpush1.msra.mxu0 %v64
  %171 = vmatprep.subr.mxu0 0.0
  %172 = vmatpush1.msra.mxu0 0.0
  %173 = vmatprep.subr.mxu0 0.0
  %174 = vmatpush1.msra.mxu0 0.0
  %175 = vmatprep.subr.mxu0 0.0
  %176 = vmatpush1.msra.mxu0 0.0
  %177 = vmatprep.subr.mxu0 0.0
  %178 = vmatpush1.msra.mxu0 0.0
  %179 = vmatprep.subr.mxu0 0.0
  %180 = vmatpush1.msra.mxu0 0.0
  %181 = vmatprep.subr.mxu0 0.0
  %182 = vmatpush1.msra.mxu0 0.0
  %183 = vmatprep.subr.mxu0 0.0
  %184 = vmatpush1.msra.mxu0 0.0
  %185 = vmatprep.subr.mxu0 0.0
  %186 = vmatpush1.msra.mxu0 0.0
  %187 = vmatprep.subr.mxu0 0.0
  %188 = vmatpush1.msra.mxu0 0.0
  %189 = vmatprep.subr.mxu0 0.0
  %190 = vmatpush1.msra.mxu0 0.0
  %191 = vmatprep.subr.mxu0 0.0
  %192 = vmatpush1.msra.mxu0 0.0
  %193 = vmatprep.subr.mxu0 0.0
  %194 = vmatpush1.msra.mxu0 0.0
  %195 = vmatprep.subr.mxu0 0.0
  %196 = vmatpush1.msra.mxu0 0.0
  %197 = vmatprep.subr.mxu0 0.0
  %198 = vmatpush1.msra.mxu0 0.0
  %199 = vmatprep.subr.mxu0 0.0
  %200 = vmatpush1.msra.mxu0 0.0
  %201 = vmatprep.subr.mxu0 0.0
  %202 = vmatpush1.msra.mxu0 0.0
  %203 = vmatprep.subr.mxu0 0.0
  %204 = vmatpush1.msra.mxu0 0.0
  %205 = vmatprep.subr.mxu0 0.0
  %206 = vmatpush1.msra.mxu0 0.0
  %207 = vmatprep.subr.mxu0 0.0
  %208 = vmatpush1.msra.mxu0 0.0
  %209 = vmatprep.subr.mxu0 0.0
  %210 = vmatpush1.msra.mxu0 0.0
  %211 = vmatprep.subr.mxu0 0.0
  %212 = vmatpush1.msra.mxu0 0.0
  %213 = vmatprep.subr.mxu0 0.0
  %214 = vmatpush1.msra.mxu0 0.0
  %215 = vmatprep.subr.mxu0 0.0
  %216 = vmatpush1.msra.mxu0 0.0
  %217 = vmatprep.subr.mxu0 0.0
  %218 = vmatpush1.msra.mxu0 0.0
  %219 = vmatprep.subr.mxu0 0.0
  %220 = vmatpush1.msra.mxu0 0.0
  %221 = vmatprep.subr.mxu0 0.0
  %222 = vmatpush1.msra.mxu0 0.0
  %223 = vmatprep.subr.mxu0 0.0
  %224 = vmatpush1.msra.mxu0 0.0
  %225 = vmatprep.subr.mxu0 0.0
  %226 = vmatpush1.msra.mxu0 0.0
  %227 = vmatprep.mubr.f32.mxu0 0.0
  %228 = vmatmul.mubr.f32.gmra.mrb[0].mxu0 %v67
  %v229 = vpop.f32.mrb[0].mxu0
  %v230 = vadd.f32 %v145, %v229
  %v231 = vpop.f32.mrb[0].mxu0
  %232 = vmatprep.mubr.f32.mxu0 0.0
  %233 = vmatmul.mubr.f32.gmra.mrb[0].mxu0 %v70
  %v234 = vpop.f32.mrb[0].mxu0
  %v235 = vadd.f32 %v150, %v234
  %v236 = vpop.f32.mrb[0].mxu0
  %237 = vmatprep.mubr.f32.mxu0 0.0
  %238 = vmatmul.mubr.f32.gmra.mrb[0].mxu0 %v73
  %v239 = vpop.f32.mrb[0].mxu0
  %v240 = vadd.f32 %v155, %v239
  %v241 = vpop.f32.mrb[0].mxu0
  %242 = vmatprep.mubr.f32.mxu0 0.0
  %243 = vmatmul.mubr.f32.gmra.mrb[0].mxu0 %v76
  %v244 = vpop.f32.mrb[0].mxu0
  %v245 = vadd.f32 %v160, %v244
  %v246 = vpop.f32.mrb[0].mxu0
  %247 = vdwg.mxu0
  %v248 = vld [vmem:[%s2] sm:$0x1]
  %v250 = vlaneseq
  %v251 = vshrl.u32 %v250, 7
  %v252 = vsub.s32 0, %v251
  %v253 = vrot.slane %v248, %v252
  %v255 = vmul.f32 %v230, %v253
  %v256 = vmul.f32 %v235, %v253
  %v257 = vmul.f32 %v240, %v253
  %v258 = vmul.f32 %v245, %v253
  %v259 = vld [vmem:[%s3] sm:$0x1]
  %v261 = vlaneseq
  %v262 = vshrl.u32 %v261, 7
  %v263 = vsub.s32 0, %v262
  %v264 = vrot.slane %v259, %v263
  %v266 = vadd.f32 %v255, %v264
  %v267 = vadd.f32 %v256, %v264
  %v268 = vadd.f32 %v257, %v264
  %v269 = vadd.f32 %v258, %v264
  %v270 = vmax.f32 %v266, 0.0
  %v271 = vmax.f32 %v267, 0.0
  %v272 = vmax.f32 %v268, 0.0
  %v273 = vmax.f32 %v269, 0.0
  %vm274 = vcmask 523264
  %275 = vst.msk [vmem:[%s4] sm:$0xff] %vm274, %v270
  %276 = vst.msk [vmem:[%s4 + $0x8] sm:$0xff] %vm274, %v271
  %277 = vst.msk [vmem:[%s4 + $0x10] sm:$0xff] %vm274, %v272
  %278 = vst.msk [vmem:[%s4 + $0x18] sm:$0xff] %vm274, %v273
  // Predicated region
  $region18: #{_lambda_.13} parent=0 // pred_check
    _
  $region19: #{_lambda_.13} parent=0 // pred_check_branch
    %280 = sbr.rel (0) target = $region21
  $region20: #{_lambda_.13} parent=0 // pred_region
    _
  $region21: #{_lambda_.13} parent=0 // pred_fallthru
    _
  // Predicated region
  $region22: #{_lambda_.13} parent=0 // pred_check
    _
  $region23: #{_lambda_.13} parent=0 // pred_check_branch
    %282 = sbr.rel (0) target = $region25
  $region24: #{_lambda_.13} parent=0 // pred_region
    _
  $region25: #{_lambda_.13} parent=0 // pred_fallthru
    _

// kernel: _lambda_.14
$region0: #{_lambda_.14}
  #allocation0 [shape = 'u32[]', space=smem, size = 0x4, offset = 0x4, fixed_abs, tag = 'smem constant byte address 0x4 - core index']
  #allocation1 [shape = 'u32[144,128]{1,0:T(1,128)}', space=vmem, size = 0x12000, scoped, tag = 'internal scratch']
  %s0 = inlined_call_operand.vmem [shape: f32[32,576], index: 0, kind: input, shape index: {}]
  %s1 = inlined_call_operand.vmem [shape: f32[576,64], index: 1, kind: input, shape index: {}]
  %s2 = inlined_call_operand.vmem [shape: f32[32,32], index: 2, kind: input, shape index: {}]
  %s3 = inlined_call_operand.vmem [shape: f32[32,64], index: 3, kind: input, shape index: {}]
  %s4 = inlined_call_operand.vmem [shape: f32[1,64], index: 4, kind: input, shape index: {}]
  %s5 = inlined_call_operand.vmem [shape: f32[1,64], index: 5, kind: input, shape index: {}]
  %s6 = inlined_call_operand.vmem [shape: f32[32,64], index: 6, kind: output, shape index: {}]
  %s7 = sld [smem:[#allocation0]]
  $region34: #{_lambda_.14} parent=0
    _
  %s9 = ssub.s32 1, %s7
  %s10 = scalar_select 0, %s9, %s7
  // Predicated region
  $region2: #{_lambda_.14} parent=0 // pred_check
    _
  $region3: #{_lambda_.14} parent=0 // pred_check_branch
    %12 = sbr.rel (0) target = $region5
  $region4: #{_lambda_.14} parent=0 // pred_region
    _
  $region5: #{_lambda_.14} parent=0 // pred_fallthru
    _
  // Predicated region
  $region6: #{_lambda_.14} parent=0 // pred_check
    _
  $region7: #{_lambda_.14} parent=0 // pred_check_branch
    %14 = sbr.rel (0) target = $region9
  $region8: #{_lambda_.14} parent=0 // pred_region
    _
  $region9: #{_lambda_.14} parent=0 // pred_fallthru
    _
  // Predicated region
  $region10: #{_lambda_.14} parent=0 // pred_check
    _
  $region11: #{_lambda_.14} parent=0 // pred_check_branch
    %16 = sbr.rel (0) target = $region13
  $region12: #{_lambda_.14} parent=0 // pred_region
    _
  $region13: #{_lambda_.14} parent=0 // pred_fallthru
    _
  // Predicated region
  $region14: #{_lambda_.14} parent=0 // pred_check
    _
  $region15: #{_lambda_.14} parent=0 // pred_check_branch
    %18 = sbr.rel (0) target = $region17
  $region16: #{_lambda_.14} parent=0 // pred_region
    _
  $region17: #{_lambda_.14} parent=0 // pred_fallthru
    _
  // Predicated region
  $region18: #{_lambda_.14} parent=0 // pred_check
    _
  $region19: #{_lambda_.14} parent=0 // pred_check_branch
    %20 = sbr.rel (0) target = $region21
  $region20: #{_lambda_.14} parent=0 // pred_region
    _
  $region21: #{_lambda_.14} parent=0 // pred_fallthru
    _
  // Predicated region
  $region22: #{_lambda_.14} parent=0 // pred_check
    _
  $region23: #{_lambda_.14} parent=0 // pred_check_branch
    %22 = sbr.rel (0) target = $region25
  $region24: #{_lambda_.14} parent=0 // pred_region
    _
  $region25: #{_lambda_.14} parent=0 // pred_fallthru
    _
  %v23 = vld [vmem:[%s0] sm:$0xff]
  %v24 = vld [vmem:[%s0 + $0x8] sm:$0xff]
  %v25 = vld [vmem:[%s0 + $0x10] sm:$0xff]
  %v26 = vld [vmem:[%s0 + $0x18] sm:$0xff]
  %v27 = vld [vmem:[%s0 + $0x20] sm:$0xff]
  %v28 = vld [vmem:[%s0 + $0x28] sm:$0xff]
  %v29 = vld [vmem:[%s0 + $0x30] sm:$0xff]
  %v30 = vld [vmem:[%s0 + $0x38] sm:$0xff]
  %v31 = vld [vmem:[%s0 + $0x40] sm:$0xff]
  %v32 = vld [vmem:[%s0 + $0x48] sm:$0xff]
  %v33 = vld [vmem:[%s0 + $0x50] sm:$0xff]
  %v34 = vld [vmem:[%s0 + $0x58] sm:$0xff]
  %v35 = vld [vmem:[%s0 + $0x60] sm:$0xff]
  %v36 = vld [vmem:[%s0 + $0x68] sm:$0xff]
  %v37 = vld [vmem:[%s0 + $0x70] sm:$0xff]
  %v38 = vld [vmem:[%s0 + $0x78] sm:$0xff]
  %v39 = vld [vmem:[%s0 + $0x80] sm:$0xff]
  %v40 = vld [vmem:[%s0 + $0x88] sm:$0xff]
  %v41 = vld [vmem:[%s0 + $0x90] sm:$0xff]
  %v42 = vld [vmem:[%s0 + $0x98] sm:$0xff]
  %v43 = vld [vmem:[%s1] sm:$0xff]
  %v44 = vld [vmem:[%s1 + $0x8] sm:$0xff]
  %v45 = vld [vmem:[%s1 + $0x10] sm:$0xff]
  %v46 = vld [vmem:[%s1 + $0x18] sm:$0xff]
  %v47 = vld [vmem:[%s1 + $0x20] sm:$0xff]
  %v48 = vld [vmem:[%s1 + $0x28] sm:$0xff]
  %v49 = vld [vmem:[%s1 + $0x30] sm:$0xff]
  %v50 = vld [vmem:[%s1 + $0x38] sm:$0xff]
  %v51 = vld [vmem:[%s1 + $0x40] sm:$0xff]
  %v52 = vld [vmem:[%s1 + $0x48] sm:$0xff]
  %v53 = vld [vmem:[%s1 + $0x50] sm:$0xff]
  %v54 = vld [vmem:[%s1 + $0x58] sm:$0xff]
  %v55 = vld [vmem:[%s1 + $0x60] sm:$0xff]
  %v56 = vld [vmem:[%s1 + $0x68] sm:$0xff]
  %v57 = vld [vmem:[%s1 + $0x70] sm:$0xff]
  %v58 = vld [vmem:[%s1 + $0x78] sm:$0xff]
  %v59 = vld [vmem:[%s1 + $0x80] sm:$0xff]
  %v60 = vld [vmem:[%s1 + $0x88] sm:$0xff]
  %v61 = vld [vmem:[%s1 + $0x90] sm:$0xff]
  %v62 = vld [vmem:[%s1 + $0x98] sm:$0xff]
  %v63 = vld [vmem:[%s1 + $0xa0] sm:$0xff]
  %v64 = vld [vmem:[%s1 + $0xa8] sm:$0xff]
  %v65 = vld [vmem:[%s1 + $0xb0] sm:$0xff]
  %v66 = vld [vmem:[%s1 + $0xb8] sm:$0xff]
  %v67 = vld [vmem:[%s1 + $0xc0] sm:$0xff]
  %v68 = vld [vmem:[%s1 + $0xc8] sm:$0xff]
  %v69 = vld [vmem:[%s1 + $0xd0] sm:$0xff]
  %v70 = vld [vmem:[%s1 + $0xd8] sm:$0xff]
  %v71 = vld [vmem:[%s1 + $0xe0] sm:$0xff]
  %v72 = vld [vmem:[%s1 + $0xe8] sm:$0xff]
  %v73 = vld [vmem:[%s1 + $0xf0] sm:$0xff]
  %v74 = vld [vmem:[%s1 + $0xf8] sm:$0xff]
  %v75 = vld [vmem:[%s1 + $0x100] sm:$0xff]
  %v76 = vld [vmem:[%s1 + $0x108] sm:$0xff]
  %v77 = vld [vmem:[%s1 + $0x110] sm:$0xff]
  %v78 = vld [vmem:[%s1 + $0x118] sm:$0xff]
  %v79 = vld [vmem:[%s1 + $0x120] sm:$0xff]
  %v80 = vld [vmem:[%s1 + $0x128] sm:$0xff]
  %v81 = vld [vmem:[%s1 + $0x130] sm:$0xff]
  %v82 = vld [vmem:[%s1 + $0x138] sm:$0xff]
  %v83 = vld [vmem:[%s1 + $0x140] sm:$0xff]
  %v84 = vld [vmem:[%s1 + $0x148] sm:$0xff]
  %v85 = vld [vmem:[%s1 + $0x150] sm:$0xff]
  %v86 = vld [vmem:[%s1 + $0x158] sm:$0xff]
  %v87 = vld [vmem:[%s1 + $0x160] sm:$0xff]
  %v88 = vld [vmem:[%s1 + $0x168] sm:$0xff]
  %v89 = vld [vmem:[%s1 + $0x170] sm:$0xff]
  %v90 = vld [vmem:[%s1 + $0x178] sm:$0xff]
  %v91 = vld [vmem:[%s1 + $0x180] sm:$0xff]
  %v92 = vld [vmem:[%s1 + $0x188] sm:$0xff]
  %v93 = vld [vmem:[%s1 + $0x190] sm:$0xff]
  %v94 = vld [vmem:[%s1 + $0x198] sm:$0xff]
  %v95 = vld [vmem:[%s1 + $0x1a0] sm:$0xff]
  %v96 = vld [vmem:[%s1 + $0x1a8] sm:$0xff]
  %v97 = vld [vmem:[%s1 + $0x1b0] sm:$0xff]
  %v98 = vld [vmem:[%s1 + $0x1b8] sm:$0xff]
  %v99 = vld [vmem:[%s1 + $0x1c0] sm:$0xff]
  %v100 = vld [vmem:[%s1 + $0x1c8] sm:$0xff]
  %v101 = vld [vmem:[%s1 + $0x1d0] sm:$0xff]
  %v102 = vld [vmem:[%s1 + $0x1d8] sm:$0xff]
  %v103 = vld [vmem:[%s1 + $0x1e0] sm:$0xff]
  %v104 = vld [vmem:[%s1 + $0x1e8] sm:$0xff]
  %v105 = vld [vmem:[%s1 + $0x1f0] sm:$0xff]
  %v106 = vld [vmem:[%s1 + $0x1f8] sm:$0xff]
  %v107 = vld [vmem:[%s1 + $0x200] sm:$0xff]
  %v108 = vld [vmem:[%s1 + $0x208] sm:$0xff]
  %v109 = vld [vmem:[%s1 + $0x210] sm:$0xff]
  %v110 = vld [vmem:[%s1 + $0x218] sm:$0xff]
  %v111 = vld [vmem:[%s1 + $0x220] sm:$0xff]
  %v112 = vld [vmem:[%s1 + $0x228] sm:$0xff]
  %v113 = vld [vmem:[%s1 + $0x230] sm:$0xff]
  %v114 = vld [vmem:[%s1 + $0x238] sm:$0xff]
  %v115 = vld [vmem:[%s2] sm:$0xff]
  %v116 = vld [vmem:[%s2 + $0x8] sm:$0xff]
  %v117 = vld [vmem:[%s2 + $0x10] sm:$0xff]
  %v118 = vld [vmem:[%s2 + $0x18] sm:$0xff]
  %v119 = vld [vmem:[%s3] sm:$0xff]
  %v120 = vld [vmem:[%s3 + $0x8] sm:$0xff]
  %v121 = vld [vmem:[%s3 + $0x10] sm:$0xff]
  %v122 = vld [vmem:[%s3 + $0x18] sm:$0xff]
  %vm123 = vcmask 261120
  %v125 = vsel %vm123, %v115, 0
  %v128 = vsel %vm123, %v116, 0
  %v131 = vsel %vm123, %v117, 0
  %v134 = vsel %vm123, %v118, 0
  %136 = vmatprep.subr.mxu0 0.0
  %137 = vmatpush1.msra.mxu0 %v119
  %138 = vmatprep.subr.mxu0 0.0
  %139 = vmatpush1.msra.mxu0 %v120
  %140 = vmatprep.subr.mxu0 0.0
  %141 = vmatpush1.msra.mxu0 %v121
  %142 = vmatprep.subr.mxu0 0.0
  %143 = vmatpush1.msra.mxu0 %v122
  %144 = vmatprep.subr.mxu0 0.0
  %145 = vmatpush1.msra.mxu0 0.0
  %146 = vmatprep.subr.mxu0 0.0
  %147 = vmatpush1.msra.mxu0 0.0
  %148 = vmatprep.subr.mxu0 0.0
  %149 = vmatpush1.msra.mxu0 0.0
  %150 = vmatprep.subr.mxu0 0.0
  %151 = vmatpush1.msra.mxu0 0.0
  %152 = vmatprep.subr.mxu0 0.0
  %153 = vmatpush1.msra.mxu0 0.0
  %154 = vmatprep.subr.mxu0 0.0
  %155 = vmatpush1.msra.mxu0 0.0
  %156 = vmatprep.subr.mxu0 0.0
  %157 = vmatpush1.msra.mxu0 0.0
  %158 = vmatprep.subr.mxu0 0.0
  %159 = vmatpush1.msra.mxu0 0.0
  %160 = vmatprep.subr.mxu0 0.0
  %161 = vmatpush1.msra.mxu0 0.0
  %162 = vmatprep.subr.mxu0 0.0
  %163 = vmatpush1.msra.mxu0 0.0
  %164 = vmatprep.subr.mxu0 0.0
  %165 = vmatpush1.msra.mxu0 0.0
  %166 = vmatprep.subr.mxu0 0.0
  %167 = vmatpush1.msra.mxu0 0.0
  %168 = vmatprep.subr.mxu0 0.0
  %169 = vmatpush1.msra.mxu0 0.0
  %170 = vmatprep.subr.mxu0 0.0
  %171 = vmatpush1.msra.mxu0 0.0
  %172 = vmatprep.subr.mxu0 0.0
  %173 = vmatpush1.msra.mxu0 0.0
  %174 = vmatprep.subr.mxu0 0.0
  %175 = vmatpush1.msra.mxu0 0.0
  %176 = vmatprep.subr.mxu0 0.0
  %177 = vmatpush1.msra.mxu0 0.0
  %178 = vmatprep.subr.mxu0 0.0
  %179 = vmatpush1.msra.mxu0 0.0
  %180 = vmatprep.subr.mxu0 0.0
  %181 = vmatpush1.msra.mxu0 0.0
  %182 = vmatprep.subr.mxu0 0.0
  %183 = vmatpush1.msra.mxu0 0.0
  %184 = vmatprep.subr.mxu0 0.0
  %185 = vmatpush1.msra.mxu0 0.0
  %186 = vmatprep.subr.mxu0 0.0
  %187 = vmatpush1.msra.mxu0 0.0
  %188 = vmatprep.subr.mxu0 0.0
  %189 = vmatpush1.msra.mxu0 0.0
  %190 = vmatprep.subr.mxu0 0.0
  %191 = vmatpush1.msra.mxu0 0.0
  %192 = vmatprep.subr.mxu0 0.0
  %193 = vmatpush1.msra.mxu0 0.0
  %194 = vmatprep.subr.mxu0 0.0
  %195 = vmatpush1.msra.mxu0 0.0
  %196 = vmatprep.subr.mxu0 0.0
  %197 = vmatpush1.msra.mxu0 0.0
  %198 = vmatprep.subr.mxu0 0.0
  %199 = vmatpush1.msra.mxu0 0.0
  %200 = vmatprep.mubr.f32.mxu0 0.0
  %201 = vmatmul.mubr.f32.gmra.mrb[0].mxu0 %v125
  %v202 = vpop.f32.mrb[0].mxu0
  %v203 = vadd.f32 0.0, %v202
  %v204 = vpop.f32.mrb[0].mxu0
  %205 = vmatprep.mubr.f32.mxu0 0.0
  %206 = vmatmul.mubr.f32.gmra.mrb[0].mxu0 %v128
  %v207 = vpop.f32.mrb[0].mxu0
  %v208 = vadd.f32 0.0, %v207
  %v209 = vpop.f32.mrb[0].mxu0
  %210 = vmatprep.mubr.f32.mxu0 0.0
  %211 = vmatmul.mubr.f32.gmra.mrb[0].mxu0 %v131
  %v212 = vpop.f32.mrb[0].mxu0
  %v213 = vadd.f32 0.0, %v212
  %v214 = vpop.f32.mrb[0].mxu0
  %215 = vmatprep.mubr.f32.mxu0 0.0
  %216 = vmatmul.mubr.f32.gmra.mrb[0].mxu0 %v134
  %v217 = vpop.f32.mrb[0].mxu0
  %v218 = vadd.f32 0.0, %v217
  %v219 = vpop.f32.mrb[0].mxu0
  %220 = vdwg.mxu0
  %vm221 = vcmask 523264
  %v223 = vsel %vm221, %v27, 0
  %v226 = vsel %vm221, %v32, 0
  %v229 = vsel %vm221, %v37, 0
  %v232 = vsel %vm221, %v42, 0
  %234 = vmatprep.subr.mxu0 0.0
  %235 = vmatpush1.msra.mxu0 %v43
  %236 = vmatprep.subr.mxu0 0.0
  %237 = vmatpush1.msra.mxu0 %v44
  %238 = vmatprep.subr.mxu0 0.0
  %239 = vmatpush1.msra.mxu0 %v45
  %240 = vmatprep.subr.mxu0 0.0
  %241 = vmatpush1.msra.mxu0 %v46
  %242 = vmatprep.subr.mxu0 0.0
  %243 = vmatpush1.msra.mxu0 %v47
  %244 = vmatprep.subr.mxu0 0.0
  %245 = vmatpush1.msra.mxu0 %v48
  %246 = vmatprep.subr.mxu0 0.0
  %247 = vmatpush1.msra.mxu0 %v49
  %248 = vmatprep.subr.mxu0 0.0
  %249 = vmatpush1.msra.mxu0 %v50
  %250 = vmatprep.subr.mxu0 0.0
  %251 = vmatpush1.msra.mxu0 %v51
  %252 = vmatprep.subr.mxu0 0.0
  %253 = vmatpush1.msra.mxu0 %v52
  %254 = vmatprep.subr.mxu0 0.0
  %255 = vmatpush1.msra.mxu0 %v53
  %256 = vmatprep.subr.mxu0 0.0
  %257 = vmatpush1.msra.mxu0 %v54
  %258 = vmatprep.subr.mxu0 0.0
  %259 = vmatpush1.msra.mxu0 %v55
  %260 = vmatprep.subr.mxu0 0.0
  %261 = vmatpush1.msra.mxu0 %v56
  %262 = vmatprep.subr.mxu0 0.0
  %263 = vmatpush1.msra.mxu0 %v57
  %264 = vmatprep.subr.mxu0 0.0
  %265 = vmatpush1.msra.mxu0 %v58
  %266 = vmatprep.subr.mxu0 0.0
  %267 = vmatpush1.msra.mxu0 %v59
  %268 = vmatprep.subr.mxu0 0.0
  %269 = vmatpush1.msra.mxu0 %v60
  %270 = vmatprep.subr.mxu0 0.0
  %271 = vmatpush1.msra.mxu0 %v61
  %272 = vmatprep.subr.mxu0 0.0
  %273 = vmatpush1.msra.mxu0 %v62
  %274 = vmatprep.subr.mxu0 0.0
  %275 = vmatpush1.msra.mxu0 %v63
  %276 = vmatprep.subr.mxu0 0.0
  %277 = vmatpush1.msra.mxu0 %v64
  %278 = vmatprep.subr.mxu0 0.0
  %279 = vmatpush1.msra.mxu0 %v65
  %280 = vmatprep.subr.mxu0 0.0
  %281 = vmatpush1.msra.mxu0 %v66
  %282 = vmatprep.subr.mxu0 0.0
  %283 = vmatpush1.msra.mxu0 %v67
  %284 = vmatprep.subr.mxu0 0.0
  %285 = vmatpush1.msra.mxu0 %v68
  %286 = vmatprep.subr.mxu0 0.0
  %287 = vmatpush1.msra.mxu0 %v69
  %288 = vmatprep.subr.mxu0 0.0
  %289 = vmatpush1.msra.mxu0 %v70
  %290 = vmatprep.subr.mxu0 0.0
  %291 = vmatpush1.msra.mxu0 %v71
  %292 = vmatprep.subr.mxu0 0.0
  %293 = vmatpush1.msra.mxu0 %v72
  %294 = vmatprep.subr.mxu0 0.0
  %295 = vmatpush1.msra.mxu0 %v73
  %296 = vmatprep.subr.mxu0 0.0
  %297 = vmatpush1.msra.mxu0 %v74
  %298 = vmatprep.mubr.f32.mxu0 %v24
  %299 = vmatmul.mubr.f32.gmra.mrb[0].mxu0 %v23
  %v300 = vpop.f32.mrb[0].mxu0
  %v301 = vadd.f32 %v203, %v300
  %v302 = vpop.f32.mrb[0].mxu0
  %303 = vmatprep.mubr.f32.mxu0 %v29
  %304 = vmatmul.mubr.f32.gmra.mrb[0].mxu0 %v28
  %v305 = vpop.f32.mrb[0].mxu0
  %v306 = vadd.f32 %v208, %v305
  %v307 = vpop.f32.mrb[0].mxu0
  %308 = vmatprep.mubr.f32.mxu0 %v34
  %309 = vmatmul.mubr.f32.gmra.mrb[0].mxu0 %v33
  %v310 = vpop.f32.mrb[0].mxu0
  %v311 = vadd.f32 %v213, %v310
  %v312 = vpop.f32.mrb[0].mxu0
  %313 = vmatprep.mubr.f32.mxu0 %v39
  %314 = vmatmul.mubr.f32.gmra.mrb[0].mxu0 %v38
  %v315 = vpop.f32.mrb[0].mxu0
  %v316 = vadd.f32 %v218, %v315
  %v317 = vpop.f32.mrb[0].mxu0
  %318 = vdwg.mxu0
  %319 = vmatprep.subr.mxu0 0.0
  %320 = vmatpush1.msra.mxu0 %v75
  %321 = vmatprep.subr.mxu0 0.0
  %322 = vmatpush1.msra.mxu0 %v76
  %323 = vmatprep.subr.mxu0 0.0
  %324 = vmatpush1.msra.mxu0 %v77
  %325 = vmatprep.subr.mxu0 0.0
  %326 = vmatpush1.msra.mxu0 %v78
  %327 = vmatprep.subr.mxu0 0.0
  %328 = vmatpush1.msra.mxu0 %v79
  %329 = vmatprep.subr.mxu0 0.0
  %330 = vmatpush1.msra.mxu0 %v80
  %331 = vmatprep.subr.mxu0 0.0
  %332 = vmatpush1.msra.mxu0 %v81
  %333 = vmatprep.subr.mxu0 0.0
  %334 = vmatpush1.msra.mxu0 %v82
  %335 = vmatprep.subr.mxu0 0.0
  %336 = vmatpush1.msra.mxu0 %v83
  %337 = vmatprep.subr.mxu0 0.0
  %338 = vmatpush1.msra.mxu0 %v84
  %339 = vmatprep.subr.mxu0 0.0
  %340 = vmatpush1.msra.mxu0 %v85
  %341 = vmatprep.subr.mxu0 0.0
  %342 = vmatpush1.msra.mxu0 %v86
  %343 = vmatprep.subr.mxu0 0.0
  %344 = vmatpush1.msra.mxu0 %v87
  %345 = vmatprep.subr.mxu0 0.0
  %346 = vmatpush1.msra.mxu0 %v88
  %347 = vmatprep.subr.mxu0 0.0
  %348 = vmatpush1.msra.mxu0 %v89
  %349 = vmatprep.subr.mxu0 0.0
  %350 = vmatpush1.msra.mxu0 %v90
  %351 = vmatprep.subr.mxu0 0.0
  %352 = vmatpush1.msra.mxu0 %v91
  %353 = vmatprep.subr.mxu0 0.0
  %354 = vmatpush1.msra.mxu0 %v92
  %355 = vmatprep.subr.mxu0 0.0
  %356 = vmatpush1.msra.mxu0 %v93
  %357 = vmatprep.subr.mxu0 0.0
  %358 = vmatpush1.msra.mxu0 %v94
  %359 = vmatprep.subr.mxu0 0.0
  %360 = vmatpush1.msra.mxu0 %v95
  %361 = vmatprep.subr.mxu0 0.0
  %362 = vmatpush1.msra.mxu0 %v96
  %363 = vmatprep.subr.mxu0 0.0
  %364 = vmatpush1.msra.mxu0 %v97
  %365 = vmatprep.subr.mxu0 0.0
  %366 = vmatpush1.msra.mxu0 %v98
  %367 = vmatprep.subr.mxu0 0.0
  %368 = vmatpush1.msra.mxu0 %v99
  %369 = vmatprep.subr.mxu0 0.0
  %370 = vmatpush1.msra.mxu0 %v100
  %371 = vmatprep.subr.mxu0 0.0
  %372 = vmatpush1.msra.mxu0 %v101
  %373 = vmatprep.subr.mxu0 0.0
  %374 = vmatpush1.msra.mxu0 %v102
  %375 = vmatprep.subr.mxu0 0.0
  %376 = vmatpush1.msra.mxu0 %v103
  %377 = vmatprep.subr.mxu0 0.0
  %378 = vmatpush1.msra.mxu0 %v104
  %379 = vmatprep.subr.mxu0 0.0
  %380 = vmatpush1.msra.mxu0 %v105
  %381 = vmatprep.subr.mxu0 0.0
  %382 = vmatpush1.msra.mxu0 %v106
  %383 = vmatprep.mubr.f32.mxu0 %v26
  %384 = vmatmul.mubr.f32.gmra.mrb[0].mxu0 %v25
  %v385 = vpop.f32.mrb[0].mxu0
  %v386 = vadd.f32 %v301, %v385
  %v387 = vpop.f32.mrb[0].mxu0
  %388 = vmatprep.mubr.f32.mxu0 %v31
  %389 = vmatmul.mubr.f32.gmra.mrb[0].mxu0 %v30
  %v390 = vpop.f32.mrb[0].mxu0
  %v391 = vadd.f32 %v306, %v390
  %v392 = vpop.f32.mrb[0].mxu0
  %393 = vmatprep.mubr.f32.mxu0 %v36
  %394 = vmatmul.mubr.f32.gmra.mrb[0].mxu0 %v35
  %v395 = vpop.f32.mrb[0].mxu0
  %v396 = vadd.f32 %v311, %v395
  %v397 = vpop.f32.mrb[0].mxu0
  %398 = vmatprep.mubr.f32.mxu0 %v41
  %399 = vmatmul.mubr.f32.gmra.mrb[0].mxu0 %v40
  %v400 = vpop.f32.mrb[0].mxu0
  %v401 = vadd.f32 %v316, %v400
  %v402 = vpop.f32.mrb[0].mxu0
  %403 = vdwg.mxu0
  %404 = vmatprep.subr.mxu0 0.0
  %405 = vmatpush1.msra.mxu0 %v107
  %406 = vmatprep.subr.mxu0 0.0
  %407 = vmatpush1.msra.mxu0 %v108
  %408 = vmatprep.subr.mxu0 0.0
  %409 = vmatpush1.msra.mxu0 %v109
  %410 = vmatprep.subr.mxu0 0.0
  %411 = vmatpush1.msra.mxu0 %v110
  %412 = vmatprep.subr.mxu0 0.0
  %413 = vmatpush1.msra.mxu0 %v111
  %414 = vmatprep.subr.mxu0 0.0
  %415 = vmatpush1.msra.mxu0 %v112
  %416 = vmatprep.subr.mxu0 0.0
  %417 = vmatpush1.msra.mxu0 %v113
  %418 = vmatprep.subr.mxu0 0.0
  %419 = vmatpush1.msra.mxu0 %v114
  %420 = vmatprep.subr.mxu0 0.0
  %421 = vmatpush1.msra.mxu0 0.0
  %422 = vmatprep.subr.mxu0 0.0
  %423 = vmatpush1.msra.mxu0 0.0
  %424 = vmatprep.subr.mxu0 0.0
  %425 = vmatpush1.msra.mxu0 0.0
  %426 = vmatprep.subr.mxu0 0.0
  %427 = vmatpush1.msra.mxu0 0.0
  %428 = vmatprep.subr.mxu0 0.0
  %429 = vmatpush1.msra.mxu0 0.0
  %430 = vmatprep.subr.mxu0 0.0
  %431 = vmatpush1.msra.mxu0 0.0
  %432 = vmatprep.subr.mxu0 0.0
  %433 = vmatpush1.msra.mxu0 0.0
  %434 = vmatprep.subr.mxu0 0.0
  %435 = vmatpush1.msra.mxu0 0.0
  %436 = vmatprep.subr.mxu0 0.0
  %437 = vmatpush1.msra.mxu0 0.0
  %438 = vmatprep.subr.mxu0 0.0
  %439 = vmatpush1.msra.mxu0 0.0
  %440 = vmatprep.subr.mxu0 0.0
  %441 = vmatpush1.msra.mxu0 0.0
  %442 = vmatprep.subr.mxu0 0.0
  %443 = vmatpush1.msra.mxu0 0.0
  %444 = vmatprep.subr.mxu0 0.0
  %445 = vmatpush1.msra.mxu0 0.0
  %446 = vmatprep.subr.mxu0 0.0
  %447 = vmatpush1.msra.mxu0 0.0
  %448 = vmatprep.subr.mxu0 0.0
  %449 = vmatpush1.msra.mxu0 0.0
  %450 = vmatprep.subr.mxu0 0.0
  %451 = vmatpush1.msra.mxu0 0.0
  %452 = vmatprep.subr.mxu0 0.0
  %453 = vmatpush1.msra.mxu0 0.0
  %454 = vmatprep.subr.mxu0 0.0
  %455 = vmatpush1.msra.mxu0 0.0
  %456 = vmatprep.subr.mxu0 0.0
  %457 = vmatpush1.msra.mxu0 0.0
  %458 = vmatprep.subr.mxu0 0.0
  %459 = vmatpush1.msra.mxu0 0.0
  %460 = vmatprep.subr.mxu0 0.0
  %461 = vmatpush1.msra.mxu0 0.0
  %462 = vmatprep.subr.mxu0 0.0
  %463 = vmatpush1.msra.mxu0 0.0
  %464 = vmatprep.subr.mxu0 0.0
  %465 = vmatpush1.msra.mxu0 0.0
  %466 = vmatprep.subr.mxu0 0.0
  %467 = vmatpush1.msra.mxu0 0.0
  %468 = vmatprep.mubr.f32.mxu0 0.0
  %469 = vmatmul.mubr.f32.gmra.mrb[0].mxu0 %v223
  %v470 = vpop.f32.mrb[0].mxu0
  %v471 = vadd.f32 %v386, %v470
  %v472 = vpop.f32.mrb[0].mxu0
  %473 = vmatprep.mubr.f32.mxu0 0.0
  %474 = vmatmul.mubr.f32.gmra.mrb[0].mxu0 %v226
  %v475 = vpop.f32.mrb[0].mxu0
  %v476 = vadd.f32 %v391, %v475
  %v477 = vpop.f32.mrb[0].mxu0
  %478 = vmatprep.mubr.f32.mxu0 0.0
  %479 = vmatmul.mubr.f32.gmra.mrb[0].mxu0 %v229
  %v480 = vpop.f32.mrb[0].mxu0
  %v481 = vadd.f32 %v396, %v480
  %v482 = vpop.f32.mrb[0].mxu0
  %483 = vmatprep.mubr.f32.mxu0 0.0
  %484 = vmatmul.mubr.f32.gmra.mrb[0].mxu0 %v232
  %v485 = vpop.f32.mrb[0].mxu0
  %v486 = vadd.f32 %v401, %v485
  %v487 = vpop.f32.mrb[0].mxu0
  %488 = vdwg.mxu0
  %v489 = vld [vmem:[%s4] sm:$0x1]
  %v491 = vlaneseq
  %v492 = vshrl.u32 %v491, 7
  %v493 = vsub.s32 0, %v492
  %v494 = vrot.slane %v489, %v493
  %v496 = vmul.f32 %v471, %v494
  %v497 = vmul.f32 %v476, %v494
  %v498 = vmul.f32 %v481, %v494
  %v499 = vmul.f32 %v486, %v494
  %v500 = vld [vmem:[%s5] sm:$0x1]
  %v502 = vlaneseq
  %v503 = vshrl.u32 %v502, 7
  %v504 = vsub.s32 0, %v503
  %v505 = vrot.slane %v500, %v504
  %v507 = vadd.f32 %v496, %v505
  %v508 = vadd.f32 %v497, %v505
  %v509 = vadd.f32 %v498, %v505
  %v510 = vadd.f32 %v499, %v505
  %v511 = vmax.f32 %v507, 0.0
  %v512 = vmax.f32 %v508, 0.0
  %v513 = vmax.f32 %v509, 0.0
  %v514 = vmax.f32 %v510, 0.0
  %515 = vst.msk [vmem:[%s6] sm:$0xff] %vm221, %v511
  %516 = vst.msk [vmem:[%s6 + $0x8] sm:$0xff] %vm221, %v512
  %517 = vst.msk [vmem:[%s6 + $0x10] sm:$0xff] %vm221, %v513
  %518 = vst.msk [vmem:[%s6 + $0x18] sm:$0xff] %vm221, %v514
  // Predicated region
  $region26: #{_lambda_.14} parent=0 // pred_check
    _
  $region27: #{_lambda_.14} parent=0 // pred_check_branch
    %520 = sbr.rel (0) target = $region29
  $region28: #{_lambda_.14} parent=0 // pred_region
    _
  $region29: #{_lambda_.14} parent=0 // pred_fallthru
    _
  // Predicated region
  $region30: #{_lambda_.14} parent=0 // pred_check
    _
  $region31: #{_lambda_.14} parent=0 // pred_check_branch
    %522 = sbr.rel (0) target = $region33
  $region32: #{_lambda_.14} parent=0 // pred_region
    _
  $region33: #{_lambda_.14} parent=0 // pred_fallthru
    _

</llo_original>
